<compile_context>
chip_gen: v5e
topology: v5e:2x2
jax: 0.10.0
libtpu: 0.0.40
codegen_flags: <defaults>
</compile_context>

<pallas_src>
import numpy as np
import jax
import jax.numpy as jnp
from jax.experimental import pallas as pl
from jax.experimental.pallas import tpu as pltpu

VMEM = pltpu.MemorySpace.VMEM

# ----------------------------------------------------------------------------
# Model config + static graph structure (deterministic synthetic batch)
# ----------------------------------------------------------------------------
NODE_F, EDGE_F, HIDDEN, OUT_F = 10, 6, 32, 4
NUM_STEPS = 3  # num_step_message_passing

# batched graph: 2 graphs with 5 and 7 nodes, bidirectional rings (in-degree >= 1)
SIZES = [5, 7]
B = len(SIZES)
N = sum(SIZES)
L = max(SIZES)

_src, _dst = [], []
_off = 0
for _s in SIZES:
    for _i in range(_s):
        _a, _b = _off + _i, _off + (_i + 1) % _s
        _src += [_a, _b]
        _dst += [_b, _a]
    _off += _s
SRC = np.array(_src, dtype=np.int32)
DST = np.array(_dst, dtype=np.int32)
E = len(SRC)

# dense graph-structure operands (host-side, static)
DST_MASK = (np.arange(N)[:, None] == DST[None, :]).astype(np.float32)       # (N, E)
DST_NEG = (DST_MASK - 1.0) * 1e30                                           # 0 / -1e30
SRC_ONEHOT = (SRC[:, None] == np.arange(N)[None, :]).astype(np.float32)     # (E, N)
GID = np.concatenate([np.full(s, g, np.int32) for g, s in enumerate(SIZES)])
POS = np.concatenate([np.arange(s, dtype=np.int32) for s in SIZES])
GRAPH_MASK = (GID[None, :] == np.arange(B)[:, None]).astype(np.float32)     # (B, N)
GRAPH_NEG = (GRAPH_MASK - 1.0) * 1e30
VALID = (np.arange(L)[None, :] < np.array(SIZES)[:, None]).astype(np.float32)  # (B, L)
# scatter nodes into the time-major zero-padded sequence: row index = pos*B + gid
SCATTER = np.zeros((L * B, N), np.float32)
SCATTER[POS * B + GID, np.arange(N)] = 1.0                                   # (L*B, N)


# ----------------------------------------------------------------------------
# Single fused kernel
# ----------------------------------------------------------------------------
def cmpnn_fused_kernel(
        node_x_ref, edge_x_ref,
        dst_mask_ref, dst_neg_ref, src_onehot_ref,
        graph_mask_ref, graph_neg_ref, valid_ref, scatter_ref,
        node_w_ref, node_b_ref, edge_w_ref, edge_b_ref,
        msg_w_ref, msg_b_ref, lr_w_ref, lr_b_ref,
        gru_bias_ref,
        wif_ref, bif_ref, whf_ref, bhf_ref,
        wib_ref, bib_ref, whb_ref, bhb_ref,
        ffn1_w_ref, ffn1_b_ref, ffn2_w_ref, ffn2_b_ref,
        out_ref):
    H = HIDDEN

    def mm(a, b):
        return jnp.dot(a, b, preferred_element_type=jnp.float32)

    # ---- embeddings (Linear + ReLU) ----
    node_i = jnp.maximum(mm(node_x_ref[...], node_w_ref[...]) + node_b_ref[...], 0.0)
    edge_i = jnp.maximum(mm(edge_x_ref[...], edge_w_ref[...]) + edge_b_ref[...], 0.0)
    node_h, edge_h = node_i, edge_i

    dst_mask = dst_mask_ref[...]         # (N, E)  0/1
    dst_neg = dst_neg_ref[...]           # (N, E)  0 / -1e30 additive mask
    src_onehot = src_onehot_ref[...]     # (E, N)

    def seg_sum_times_max(eh):
        # segment-sum over incoming edges via MXU, segment-max via additive mask
        s = mm(dst_mask, eh)                                        # (N, H)
        m = jnp.max(eh[None, :, :] + dst_neg[:, :, None], axis=1)   # (N, H)
        return s * m

    # ---- message passing steps (statically unrolled) ----
    for s in range(NUM_STEPS - 1):
        node_h = node_h + seg_sum_times_max(edge_h)
        gathered = mm(src_onehot, node_h)                           # edge h <- src node h
        msg = mm(gathered, msg_w_ref[s]) + msg_b_ref[s]
        edge_h = jnp.maximum(edge_i + msg, 0.0)                     # dropout(p=0) = identity

    # ---- final aggregation + lr(concat([m_final, h, i])) as split-row matmuls ----
    m_final = seg_sum_times_max(edge_h)
    node_h = (mm(m_final, lr_w_ref[:H, :])
              + mm(node_h, lr_w_ref[H:2 * H, :])
              + mm(node_i, lr_w_ref[2 * H:, :])
              + lr_b_ref[...])

    # ---- BatchGRU prep ----
    message = jnp.maximum(node_h + gru_bias_ref[...], 0.0)                       # (N, H)
    h0 = jnp.max(node_h[None, :, :] + graph_neg_ref[...][:, :, None], axis=1)    # (B, H)
    seq = mm(scatter_ref[...], message)                    # (L*B, H) time-major, zero-padded

    # hoist the input projections for all timesteps / gates / both directions
    gx_f_all = mm(seq, wif_ref[...]) + bif_ref[...]        # (L*B, 3H) gates [r|z|n]
    gx_b_all = mm(seq, wib_ref[...]) + bib_ref[...]        # (L*B, 3H)

    whf, bhf = whf_ref[...], bhf_ref[...]                  # hoisted loop-invariant loads
    whb, bhb = whb_ref[...], bhb_ref[...]
    valid = valid_ref[...]                                 # (B, L)

    def gru_cell(gx, gh, h):
        r = jax.nn.sigmoid(gx[:, :H] + gh[:, :H])
        z = jax.nn.sigmoid(gx[:, H:2 * H] + gh[:, H:2 * H])
        n = jnp.tanh(gx[:, 2 * H:] + r * gh[:, 2 * H:])
        return (1.0 - z) * n + z * h

    h_f = h0
    h_b = h0
    sum_f = jnp.zeros((B, H), jnp.float32)
    sum_b = jnp.zeros((B, H), jnp.float32)

    # fully unrolled recurrence (L is small & static); pooling fused in
    for t in range(L):
        gh_f = mm(h_f, whf) + bhf                                   # (B, 3H)
        gh_b = mm(h_b, whb) + bhb
        gx_f = gx_f_all[t * B:(t + 1) * B, :]
        gx_b = gx_b_all[(L - 1 - t) * B:(L - t) * B, :]
        h_f = gru_cell(gx_f, gh_f, h_f)
        h_b = gru_cell(gx_b, gh_b, h_b)
        # masked running sums == dgl.mean_nodes numerator on the un-padded outputs
        sum_f = sum_f + h_f * valid[:, t:t + 1]
        sum_b = sum_b + h_b * valid[:, L - 1 - t:L - t]

    counts = jnp.sum(graph_mask_ref[...], axis=1, keepdims=True)    # (B, 1) nodes per graph
    pf = sum_f / counts
    pb = sum_b / counts

    # ---- FFN head (concat avoided via split-row matmuls) ----
    h1 = jnp.maximum(mm(pf, ffn1_w_ref[:H, :]) + mm(pb, ffn1_w_ref[H:, :])
                     + ffn1_b_ref[...], 0.0)
    out_ref[...] = mm(h1, ffn2_w_ref[...]) + ffn2_b_ref[...]


# ----------------------------------------------------------------------------
# Wrapper
# ----------------------------------------------------------------------------
def cmpnn_forward(params, node_x, edge_x, structure):
    (dst_mask, dst_neg, src_onehot, graph_mask, graph_neg, valid, scatter) = structure
    args = (node_x, edge_x,
            dst_mask, dst_neg, src_onehot, graph_mask, graph_neg, valid, scatter,
            params['node_emb_w'], params['node_emb_b'],
            params['edge_emb_w'], params['edge_emb_b'],
            params['msg_w'], params['msg_b'],
            params['lr_w'], params['lr_b'],
            params['gru_bias'],
            params['gru_wif'], params['gru_bif'], params['gru_whf'], params['gru_bhf'],
            params['gru_wib'], params['gru_bib'], params['gru_whb'], params['gru_bhb'],
            params['ffn1_w'], params['ffn1_b'],
            params['ffn2_w'], params['ffn2_b'])
    return pl.pallas_call(
        cmpnn_fused_kernel,
        out_shape=jax.ShapeDtypeStruct((B, OUT_F), jnp.float32),
        in_specs=[pl.BlockSpec(memory_space=VMEM)] * len(args),
        out_specs=pl.BlockSpec(memory_space=VMEM),
    )(*args)


# ----------------------------------------------------------------------------
# Parameters (deterministic synthetic init)
# ----------------------------------------------------------------------------
def init_params(key):
    def lin(k, fi, fo):
        k1, k2 = jax.random.split(k)
        w = jax.random.normal(k1, (fi, fo), jnp.float32) / np.sqrt(fi)
        b = jax.random.normal(k2, (1, fo), jnp.float32) * 0.01
        return w, b

    keys = jax.random.split(key, 24)
    p = {}
    p['node_emb_w'], p['node_emb_b'] = lin(keys[0], NODE_F, HIDDEN)
    p['edge_emb_w'], p['edge_emb_b'] = lin(keys[1], EDGE_F, HIDDEN)
    msg_w, msg_b = [], []
    for s in range(NUM_STEPS - 1):
        w, b = lin(keys[2 + s], HIDDEN, HIDDEN)
        msg_w.append(w)
        msg_b.append(b)
    p['msg_w'] = jnp.stack(msg_w)                       # (NUM_STEPS-1, H, H)
    p['msg_b'] = jnp.stack(msg_b)                       # (NUM_STEPS-1, 1, H)
    p['lr_w'], p['lr_b'] = lin(keys[5], 3 * HIDDEN, HIDDEN)
    sc = 1.0 / np.sqrt(HIDDEN)
    p['gru_bias'] = jax.random.normal(keys[6], (1, HIDDEN), jnp.float32) * sc
    # GRU weights pre-fused per direction, gate order [r | z | n] (PyTorch convention)
    p['gru_wif'] = jax.random.normal(keys[7], (HIDDEN, 3 * HIDDEN), jnp.float32) * sc
    p['gru_bif'] = jax.random.normal(keys[8], (1, 3 * HIDDEN), jnp.float32) * sc
    p['gru_whf'] = jax.random.normal(keys[9], (HIDDEN, 3 * HIDDEN), jnp.float32) * sc
    p['gru_bhf'] = jax.random.normal(keys[10], (1, 3 * HIDDEN), jnp.float32) * sc
    p['gru_wib'] = jax.random.normal(keys[11], (HIDDEN, 3 * HIDDEN), jnp.float32) * sc
    p['gru_bib'] = jax.random.normal(keys[12], (1, 3 * HIDDEN), jnp.float32) * sc
    p['gru_whb'] = jax.random.normal(keys[13], (HIDDEN, 3 * HIDDEN), jnp.float32) * sc
    p['gru_bhb'] = jax.random.normal(keys[14], (1, 3 * HIDDEN), jnp.float32) * sc
    p['ffn1_w'], p['ffn1_b'] = lin(keys[15], 2 * HIDDEN, HIDDEN)
    p['ffn2_w'], p['ffn2_b'] = lin(keys[16], HIDDEN, OUT_F)
    return p


if __name__ == "__main__":
    key = jax.random.PRNGKey(0)
    kp, kn, ke = jax.random.split(key, 3)
    params = init_params(kp)
    node_x = jax.random.normal(kn, (N, NODE_F), jnp.float32)
    edge_x = jax.random.normal(ke, (E, EDGE_F), jnp.float32)
    structure = tuple(jnp.asarray(a) for a in
                      (DST_MASK, DST_NEG, SRC_ONEHOT, GRAPH_MASK, GRAPH_NEG, VALID, SCATTER))

    fwd = jax.jit(cmpnn_forward)
    out = jax.block_until_ready(fwd(params, node_x, edge_x, structure))
    assert out.shape == (B, OUT_F)
    assert bool(jnp.all(jnp.isfinite(out)))
    print("KERNEL_OK")
</pallas_src>

<mosaic_0001>
module attributes {stable_mosaic.version = 11 : i64} {
  func.func @cmpnn_fused_kernel(%arg0: memref<12x10xf32, #tpu.memory_space<vmem>>, %arg1: memref<24x6xf32, #tpu.memory_space<vmem>>, %arg2: memref<12x24xf32, #tpu.memory_space<vmem>>, %arg3: memref<12x24xf32, #tpu.memory_space<vmem>>, %arg4: memref<24x12xf32, #tpu.memory_space<vmem>>, %arg5: memref<2x12xf32, #tpu.memory_space<vmem>>, %arg6: memref<2x12xf32, #tpu.memory_space<vmem>>, %arg7: memref<2x7xf32, #tpu.memory_space<vmem>>, %arg8: memref<14x12xf32, #tpu.memory_space<vmem>>, %arg9: memref<10x32xf32, #tpu.memory_space<vmem>>, %arg10: memref<1x32xf32, #tpu.memory_space<vmem>>, %arg11: memref<6x32xf32, #tpu.memory_space<vmem>>, %arg12: memref<1x32xf32, #tpu.memory_space<vmem>>, %arg13: memref<2x32x32xf32, #tpu.memory_space<vmem>>, %arg14: memref<2x1x32xf32, #tpu.memory_space<vmem>>, %arg15: memref<96x32xf32, #tpu.memory_space<vmem>>, %arg16: memref<1x32xf32, #tpu.memory_space<vmem>>, %arg17: memref<1x32xf32, #tpu.memory_space<vmem>>, %arg18: memref<32x96xf32, #tpu.memory_space<vmem>>, %arg19: memref<1x96xf32, #tpu.memory_space<vmem>>, %arg20: memref<32x96xf32, #tpu.memory_space<vmem>>, %arg21: memref<1x96xf32, #tpu.memory_space<vmem>>, %arg22: memref<32x96xf32, #tpu.memory_space<vmem>>, %arg23: memref<1x96xf32, #tpu.memory_space<vmem>>, %arg24: memref<32x96xf32, #tpu.memory_space<vmem>>, %arg25: memref<1x96xf32, #tpu.memory_space<vmem>>, %arg26: memref<64x32xf32, #tpu.memory_space<vmem>>, %arg27: memref<1x32xf32, #tpu.memory_space<vmem>>, %arg28: memref<32x4xf32, #tpu.memory_space<vmem>>, %arg29: memref<1x4xf32, #tpu.memory_space<vmem>>, %arg30: memref<2x4xf32, #tpu.memory_space<vmem>>) attributes {dimension_semantics = [], scalar_prefetch = 0 : i64, scratch_operands = 0 : i64, tpu.core_type = #tpu.core_type<tc>} {
    %c0 = arith.constant 0 : index
    %c0_0 = arith.constant 0 : index
    %0 = vector.load %arg0[%c0, %c0_0] : memref<12x10xf32, #tpu.memory_space<vmem>>, vector<12x10xf32>
    %c0_1 = arith.constant 0 : index
    %c0_2 = arith.constant 0 : index
    %1 = vector.load %arg9[%c0_1, %c0_2] : memref<10x32xf32, #tpu.memory_space<vmem>>, vector<10x32xf32>
    %cst = arith.constant dense<0.000000e+00> : vector<12x32xf32>
    %2 = tpu.matmul %0, %1, %cst {dimension_numbers = #tpu.dot_dimension_numbers<[1], [0], [0], [1], [0, 0, 1, 1], [], []>} : vector<12x10xf32>, vector<10x32xf32>, vector<12x32xf32> -> vector<12x32xf32>
    %c0_3 = arith.constant 0 : index
    %c0_4 = arith.constant 0 : index
    %3 = vector.load %arg10[%c0_3, %c0_4] : memref<1x32xf32, #tpu.memory_space<vmem>>, vector<1x32xf32>
    %4 = vector.broadcast %3 : vector<1x32xf32> to vector<12x32xf32>
    %5 = arith.addf %2, %4 : vector<12x32xf32>
    %cst_5 = arith.constant 0.000000e+00 : f32
    %6 = vector.broadcast %cst_5 : f32 to vector<12x32xf32>
    %7 = arith.maximumf %5, %6 : vector<12x32xf32>
    %c0_6 = arith.constant 0 : index
    %c0_7 = arith.constant 0 : index
    %8 = vector.load %arg1[%c0_6, %c0_7] : memref<24x6xf32, #tpu.memory_space<vmem>>, vector<24x6xf32>
    %c0_8 = arith.constant 0 : index
    %c0_9 = arith.constant 0 : index
    %9 = vector.load %arg11[%c0_8, %c0_9] : memref<6x32xf32, #tpu.memory_space<vmem>>, vector<6x32xf32>
    %cst_10 = arith.constant dense<0.000000e+00> : vector<24x32xf32>
    %10 = tpu.matmul %8, %9, %cst_10 {dimension_numbers = #tpu.dot_dimension_numbers<[1], [0], [0], [1], [0, 0, 1, 1], [], []>} : vector<24x6xf32>, vector<6x32xf32>, vector<24x32xf32> -> vector<24x32xf32>
    %c0_11 = arith.constant 0 : index
    %c0_12 = arith.constant 0 : index
    %11 = vector.load %arg12[%c0_11, %c0_12] : memref<1x32xf32, #tpu.memory_space<vmem>>, vector<1x32xf32>
    %12 = vector.broadcast %11 : vector<1x32xf32> to vector<24x32xf32>
    %13 = arith.addf %10, %12 : vector<24x32xf32>
    %cst_13 = arith.constant 0.000000e+00 : f32
    %14 = vector.broadcast %cst_13 : f32 to vector<24x32xf32>
    %15 = arith.maximumf %13, %14 : vector<24x32xf32>
    %c0_14 = arith.constant 0 : index
    %c0_15 = arith.constant 0 : index
    %16 = vector.load %arg2[%c0_14, %c0_15] : memref<12x24xf32, #tpu.memory_space<vmem>>, vector<12x24xf32>
    %c0_16 = arith.constant 0 : index
    %c0_17 = arith.constant 0 : index
    %17 = vector.load %arg3[%c0_16, %c0_17] : memref<12x24xf32, #tpu.memory_space<vmem>>, vector<12x24xf32>
    %c0_18 = arith.constant 0 : index
    %c0_19 = arith.constant 0 : index
    %18 = vector.load %arg4[%c0_18, %c0_19] : memref<24x12xf32, #tpu.memory_space<vmem>>, vector<24x12xf32>
    %cst_20 = arith.constant dense<0.000000e+00> : vector<12x32xf32>
    %19 = tpu.matmul %16, %15, %cst_20 {dimension_numbers = #tpu.dot_dimension_numbers<[1], [0], [0], [1], [0, 0, 1, 1], [], []>} : vector<12x24xf32>, vector<24x32xf32>, vector<12x32xf32> -> vector<12x32xf32>
    %20 = vector.shape_cast %15 : vector<24x32xf32> to vector<1x24x32xf32>
    %21 = vector.shape_cast %17 : vector<12x24xf32> to vector<12x24x1xf32>
    %22 = vector.broadcast %20 : vector<1x24x32xf32> to vector<12x24x32xf32>
    %23 = vector.broadcast %21 : vector<12x24x1xf32> to vector<12x24x32xf32>
    %24 = arith.addf %22, %23 : vector<12x24x32xf32>
    %cst_21 = arith.constant dense<0xFF800000> : vector<12x32xf32>
    %25 = vector.multi_reduction <maximumf>, %24, %cst_21 [1] : vector<12x24x32xf32> to vector<12x32xf32>
    %26 = arith.mulf %19, %25 : vector<12x32xf32>
    %27 = arith.addf %7, %26 : vector<12x32xf32>
    %cst_22 = arith.constant dense<0.000000e+00> : vector<24x32xf32>
    %28 = tpu.matmul %18, %27, %cst_22 {dimension_numbers = #tpu.dot_dimension_numbers<[1], [0], [0], [1], [0, 0, 1, 1], [], []>} : vector<24x12xf32>, vector<12x32xf32>, vector<24x32xf32> -> vector<24x32xf32>
    %c0_23 = arith.constant 0 : index
    %c0_24 = arith.constant 0 : index
    %c0_25 = arith.constant 0 : index
    %29 = vector.load %arg13[%c0_23, %c0_24, %c0_25] : memref<2x32x32xf32, #tpu.memory_space<vmem>>, vector<1x32x32xf32>
    %30 = vector.shape_cast %29 : vector<1x32x32xf32> to vector<32x32xf32>
    %cst_26 = arith.constant dense<0.000000e+00> : vector<24x32xf32>
    %31 = tpu.matmul %28, %30, %cst_26 {dimension_numbers = #tpu.dot_dimension_numbers<[1], [0], [0], [1], [0, 0, 1, 1], [], []>} : vector<24x32xf32>, vector<32x32xf32>, vector<24x32xf32> -> vector<24x32xf32>
    %c0_27 = arith.constant 0 : index
    %c0_28 = arith.constant 0 : index
    %c0_29 = arith.constant 0 : index
    %32 = vector.load %arg14[%c0_27, %c0_28, %c0_29] : memref<2x1x32xf32, #tpu.memory_space<vmem>>, vector<1x1x32xf32>
    %33 = vector.shape_cast %32 : vector<1x1x32xf32> to vector<1x32xf32>
    %34 = vector.broadcast %33 : vector<1x32xf32> to vector<24x32xf32>
    %35 = arith.addf %31, %34 : vector<24x32xf32>
    %36 = arith.addf %15, %35 : vector<24x32xf32>
    %cst_30 = arith.constant 0.000000e+00 : f32
    %37 = vector.broadcast %cst_30 : f32 to vector<24x32xf32>
    %38 = arith.maximumf %36, %37 : vector<24x32xf32>
    %cst_31 = arith.constant dense<0.000000e+00> : vector<12x32xf32>
    %39 = tpu.matmul %16, %38, %cst_31 {dimension_numbers = #tpu.dot_dimension_numbers<[1], [0], [0], [1], [0, 0, 1, 1], [], []>} : vector<12x24xf32>, vector<24x32xf32>, vector<12x32xf32> -> vector<12x32xf32>
    %40 = vector.shape_cast %38 : vector<24x32xf32> to vector<1x24x32xf32>
    %41 = vector.shape_cast %17 : vector<12x24xf32> to vector<12x24x1xf32>
    %42 = vector.broadcast %40 : vector<1x24x32xf32> to vector<12x24x32xf32>
    %43 = vector.broadcast %41 : vector<12x24x1xf32> to vector<12x24x32xf32>
    %44 = arith.addf %42, %43 : vector<12x24x32xf32>
    %cst_32 = arith.constant dense<0xFF800000> : vector<12x32xf32>
    %45 = vector.multi_reduction <maximumf>, %44, %cst_32 [1] : vector<12x24x32xf32> to vector<12x32xf32>
    %46 = arith.mulf %39, %45 : vector<12x32xf32>
    %47 = arith.addf %27, %46 : vector<12x32xf32>
    %cst_33 = arith.constant dense<0.000000e+00> : vector<24x32xf32>
    %48 = tpu.matmul %18, %47, %cst_33 {dimension_numbers = #tpu.dot_dimension_numbers<[1], [0], [0], [1], [0, 0, 1, 1], [], []>} : vector<24x12xf32>, vector<12x32xf32>, vector<24x32xf32> -> vector<24x32xf32>
    %c1 = arith.constant 1 : index
    %c0_34 = arith.constant 0 : index
    %c0_35 = arith.constant 0 : index
    %49 = vector.load %arg13[%c1, %c0_34, %c0_35] : memref<2x32x32xf32, #tpu.memory_space<vmem>>, vector<1x32x32xf32>
    %50 = vector.shape_cast %49 : vector<1x32x32xf32> to vector<32x32xf32>
    %cst_36 = arith.constant dense<0.000000e+00> : vector<24x32xf32>
    %51 = tpu.matmul %48, %50, %cst_36 {dimension_numbers = #tpu.dot_dimension_numbers<[1], [0], [0], [1], [0, 0, 1, 1], [], []>} : vector<24x32xf32>, vector<32x32xf32>, vector<24x32xf32> -> vector<24x32xf32>
    %c1_37 = arith.constant 1 : index
    %c0_38 = arith.constant 0 : index
    %c0_39 = arith.constant 0 : index
    %52 = vector.load %arg14[%c1_37, %c0_38, %c0_39] : memref<2x1x32xf32, #tpu.memory_space<vmem>>, vector<1x1x32xf32>
    %53 = vector.shape_cast %52 : vector<1x1x32xf32> to vector<1x32xf32>
    %54 = vector.broadcast %53 : vector<1x32xf32> to vector<24x32xf32>
    %55 = arith.addf %51, %54 : vector<24x32xf32>
    %56 = arith.addf %15, %55 : vector<24x32xf32>
    %cst_40 = arith.constant 0.000000e+00 : f32
    %57 = vector.broadcast %cst_40 : f32 to vector<24x32xf32>
    %58 = arith.maximumf %56, %57 : vector<24x32xf32>
    %cst_41 = arith.constant dense<0.000000e+00> : vector<12x32xf32>
    %59 = tpu.matmul %16, %58, %cst_41 {dimension_numbers = #tpu.dot_dimension_numbers<[1], [0], [0], [1], [0, 0, 1, 1], [], []>} : vector<12x24xf32>, vector<24x32xf32>, vector<12x32xf32> -> vector<12x32xf32>
    %60 = vector.shape_cast %58 : vector<24x32xf32> to vector<1x24x32xf32>
    %61 = vector.shape_cast %17 : vector<12x24xf32> to vector<12x24x1xf32>
    %62 = vector.broadcast %60 : vector<1x24x32xf32> to vector<12x24x32xf32>
    %63 = vector.broadcast %61 : vector<12x24x1xf32> to vector<12x24x32xf32>
    %64 = arith.addf %62, %63 : vector<12x24x32xf32>
    %cst_42 = arith.constant dense<0xFF800000> : vector<12x32xf32>
    %65 = vector.multi_reduction <maximumf>, %64, %cst_42 [1] : vector<12x24x32xf32> to vector<12x32xf32>
    %66 = arith.mulf %59, %65 : vector<12x32xf32>
    %c0_43 = arith.constant 0 : index
    %c0_44 = arith.constant 0 : index
    %67 = vector.load %arg15[%c0_43, %c0_44] : memref<96x32xf32, #tpu.memory_space<vmem>>, vector<32x32xf32>
    %cst_45 = arith.constant dense<0.000000e+00> : vector<12x32xf32>
    %68 = tpu.matmul %66, %67, %cst_45 {dimension_numbers = #tpu.dot_dimension_numbers<[1], [0], [0], [1], [0, 0, 1, 1], [], []>} : vector<12x32xf32>, vector<32x32xf32>, vector<12x32xf32> -> vector<12x32xf32>
    %c32 = arith.constant 32 : index
    %c0_46 = arith.constant 0 : index
    %69 = vector.load %arg15[%c32, %c0_46] : memref<96x32xf32, #tpu.memory_space<vmem>>, vector<32x32xf32>
    %cst_47 = arith.constant dense<0.000000e+00> : vector<12x32xf32>
    %70 = tpu.matmul %47, %69, %cst_47 {dimension_numbers = #tpu.dot_dimension_numbers<[1], [0], [0], [1], [0, 0, 1, 1], [], []>} : vector<12x32xf32>, vector<32x32xf32>, vector<12x32xf32> -> vector<12x32xf32>
    %71 = arith.addf %68, %70 : vector<12x32xf32>
    %c64 = arith.constant 64 : index
    %c0_48 = arith.constant 0 : index
    %72 = vector.load %arg15[%c64, %c0_48] : memref<96x32xf32, #tpu.memory_space<vmem>>, vector<32x32xf32>
    %cst_49 = arith.constant dense<0.000000e+00> : vector<12x32xf32>
    %73 = tpu.matmul %7, %72, %cst_49 {dimension_numbers = #tpu.dot_dimension_numbers<[1], [0], [0], [1], [0, 0, 1, 1], [], []>} : vector<12x32xf32>, vector<32x32xf32>, vector<12x32xf32> -> vector<12x32xf32>
    %74 = arith.addf %71, %73 : vector<12x32xf32>
    %c0_50 = arith.constant 0 : index
    %c0_51 = arith.constant 0 : index
    %75 = vector.load %arg16[%c0_50, %c0_51] : memref<1x32xf32, #tpu.memory_space<vmem>>, vector<1x32xf32>
    %76 = vector.broadcast %75 : vector<1x32xf32> to vector<12x32xf32>
    %77 = arith.addf %74, %76 : vector<12x32xf32>
    %c0_52 = arith.constant 0 : index
    %c0_53 = arith.constant 0 : index
    %78 = vector.load %arg17[%c0_52, %c0_53] : memref<1x32xf32, #tpu.memory_space<vmem>>, vector<1x32xf32>
    %79 = vector.broadcast %78 : vector<1x32xf32> to vector<12x32xf32>
    %80 = arith.addf %77, %79 : vector<12x32xf32>
    %cst_54 = arith.constant 0.000000e+00 : f32
    %81 = vector.broadcast %cst_54 : f32 to vector<12x32xf32>
    %82 = arith.maximumf %80, %81 : vector<12x32xf32>
    %83 = vector.shape_cast %77 : vector<12x32xf32> to vector<1x12x32xf32>
    %c0_55 = arith.constant 0 : index
    %c0_56 = arith.constant 0 : index
    %84 = vector.load %arg6[%c0_55, %c0_56] : memref<2x12xf32, #tpu.memory_space<vmem>>, vector<2x12xf32>
    %85 = vector.shape_cast %84 : vector<2x12xf32> to vector<2x12x1xf32>
    %86 = vector.broadcast %83 : vector<1x12x32xf32> to vector<2x12x32xf32>
    %87 = vector.broadcast %85 : vector<2x12x1xf32> to vector<2x12x32xf32>
    %88 = arith.addf %86, %87 : vector<2x12x32xf32>
    %cst_57 = arith.constant dense<0xFF800000> : vector<2x32xf32>
    %89 = vector.multi_reduction <maximumf>, %88, %cst_57 [1] : vector<2x12x32xf32> to vector<2x32xf32>
    %c0_58 = arith.constant 0 : index
    %c0_59 = arith.constant 0 : index
    %90 = vector.load %arg8[%c0_58, %c0_59] : memref<14x12xf32, #tpu.memory_space<vmem>>, vector<14x12xf32>
    %cst_60 = arith.constant dense<0.000000e+00> : vector<14x32xf32>
    %91 = tpu.matmul %90, %82, %cst_60 {dimension_numbers = #tpu.dot_dimension_numbers<[1], [0], [0], [1], [0, 0, 1, 1], [], []>} : vector<14x12xf32>, vector<12x32xf32>, vector<14x32xf32> -> vector<14x32xf32>
    %c0_61 = arith.constant 0 : index
    %c0_62 = arith.constant 0 : index
    %92 = vector.load %arg18[%c0_61, %c0_62] : memref<32x96xf32, #tpu.memory_space<vmem>>, vector<32x96xf32>
    %cst_63 = arith.constant dense<0.000000e+00> : vector<14x96xf32>
    %93 = tpu.matmul %91, %92, %cst_63 {dimension_numbers = #tpu.dot_dimension_numbers<[1], [0], [0], [1], [0, 0, 1, 1], [], []>} : vector<14x32xf32>, vector<32x96xf32>, vector<14x96xf32> -> vector<14x96xf32>
    %c0_64 = arith.constant 0 : index
    %c0_65 = arith.constant 0 : index
    %94 = vector.load %arg19[%c0_64, %c0_65] : memref<1x96xf32, #tpu.memory_space<vmem>>, vector<1x96xf32>
    %95 = vector.broadcast %94 : vector<1x96xf32> to vector<14x96xf32>
    %96 = arith.addf %93, %95 : vector<14x96xf32>
    %c0_66 = arith.constant 0 : index
    %c0_67 = arith.constant 0 : index
    %97 = vector.load %arg22[%c0_66, %c0_67] : memref<32x96xf32, #tpu.memory_space<vmem>>, vector<32x96xf32>
    %cst_68 = arith.constant dense<0.000000e+00> : vector<14x96xf32>
    %98 = tpu.matmul %91, %97, %cst_68 {dimension_numbers = #tpu.dot_dimension_numbers<[1], [0], [0], [1], [0, 0, 1, 1], [], []>} : vector<14x32xf32>, vector<32x96xf32>, vector<14x96xf32> -> vector<14x96xf32>
    %c0_69 = arith.constant 0 : index
    %c0_70 = arith.constant 0 : index
    %99 = vector.load %arg23[%c0_69, %c0_70] : memref<1x96xf32, #tpu.memory_space<vmem>>, vector<1x96xf32>
    %100 = vector.broadcast %99 : vector<1x96xf32> to vector<14x96xf32>
    %101 = arith.addf %98, %100 : vector<14x96xf32>
    %c0_71 = arith.constant 0 : index
    %c0_72 = arith.constant 0 : index
    %102 = vector.load %arg20[%c0_71, %c0_72] : memref<32x96xf32, #tpu.memory_space<vmem>>, vector<32x96xf32>
    %c0_73 = arith.constant 0 : index
    %c0_74 = arith.constant 0 : index
    %103 = vector.load %arg21[%c0_73, %c0_74] : memref<1x96xf32, #tpu.memory_space<vmem>>, vector<1x96xf32>
    %c0_75 = arith.constant 0 : index
    %c0_76 = arith.constant 0 : index
    %104 = vector.load %arg24[%c0_75, %c0_76] : memref<32x96xf32, #tpu.memory_space<vmem>>, vector<32x96xf32>
    %c0_77 = arith.constant 0 : index
    %c0_78 = arith.constant 0 : index
    %105 = vector.load %arg25[%c0_77, %c0_78] : memref<1x96xf32, #tpu.memory_space<vmem>>, vector<1x96xf32>
    %c0_79 = arith.constant 0 : index
    %c0_80 = arith.constant 0 : index
    %106 = vector.load %arg7[%c0_79, %c0_80] : memref<2x7xf32, #tpu.memory_space<vmem>>, vector<2x7xf32>
    %cst_81 = arith.constant 0.000000e+00 : f32
    %107 = vector.broadcast %cst_81 : f32 to vector<2x32xf32>
    %cst_82 = arith.constant 0.000000e+00 : f32
    %108 = vector.broadcast %cst_82 : f32 to vector<2x32xf32>
    %cst_83 = arith.constant dense<0.000000e+00> : vector<2x96xf32>
    %109 = tpu.matmul %89, %102, %cst_83 {dimension_numbers = #tpu.dot_dimension_numbers<[1], [0], [0], [1], [0, 0, 1, 1], [], []>} : vector<2x32xf32>, vector<32x96xf32>, vector<2x96xf32> -> vector<2x96xf32>
    %110 = vector.broadcast %103 : vector<1x96xf32> to vector<2x96xf32>
    %111 = arith.addf %109, %110 : vector<2x96xf32>
    %cst_84 = arith.constant dense<0.000000e+00> : vector<2x96xf32>
    %112 = tpu.matmul %89, %104, %cst_84 {dimension_numbers = #tpu.dot_dimension_numbers<[1], [0], [0], [1], [0, 0, 1, 1], [], []>} : vector<2x32xf32>, vector<32x96xf32>, vector<2x96xf32> -> vector<2x96xf32>
    %113 = vector.broadcast %105 : vector<1x96xf32> to vector<2x96xf32>
    %114 = arith.addf %112, %113 : vector<2x96xf32>
    %115 = vector.extract_strided_slice %96 {offsets = [0, 0], sizes = [2, 96], strides = [1, 1]} : vector<14x96xf32> to vector<2x96xf32>
    %116 = vector.extract_strided_slice %101 {offsets = [12, 0], sizes = [2, 96], strides = [1, 1]} : vector<14x96xf32> to vector<2x96xf32>
    %117 = vector.extract_strided_slice %115 {offsets = [0, 0], sizes = [2, 32], strides = [1, 1]} : vector<2x96xf32> to vector<2x32xf32>
    %118 = vector.extract_strided_slice %111 {offsets = [0, 0], sizes = [2, 32], strides = [1, 1]} : vector<2x96xf32> to vector<2x32xf32>
    %119 = arith.addf %117, %118 : vector<2x32xf32>
    %120 = arith.negf %119 : vector<2x32xf32>
    %121 = math.exp %120 : vector<2x32xf32>
    %cst_85 = arith.constant 1.000000e+00 : f32
    %122 = vector.broadcast %cst_85 : f32 to vector<2x32xf32>
    %123 = arith.addf %122, %121 : vector<2x32xf32>
    %124 = arith.divf %122, %123 : vector<2x32xf32>
    %125 = vector.extract_strided_slice %115 {offsets = [0, 32], sizes = [2, 32], strides = [1, 1]} : vector<2x96xf32> to vector<2x32xf32>
    %126 = vector.extract_strided_slice %111 {offsets = [0, 32], sizes = [2, 32], strides = [1, 1]} : vector<2x96xf32> to vector<2x32xf32>
    %127 = arith.addf %125, %126 : vector<2x32xf32>
    %128 = arith.negf %127 : vector<2x32xf32>
    %129 = math.exp %128 : vector<2x32xf32>
    %cst_86 = arith.constant 1.000000e+00 : f32
    %130 = vector.broadcast %cst_86 : f32 to vector<2x32xf32>
    %131 = arith.addf %130, %129 : vector<2x32xf32>
    %132 = arith.divf %130, %131 : vector<2x32xf32>
    %133 = vector.extract_strided_slice %115 {offsets = [0, 64], sizes = [2, 32], strides = [1, 1]} : vector<2x96xf32> to vector<2x32xf32>
    %134 = vector.extract_strided_slice %111 {offsets = [0, 64], sizes = [2, 32], strides = [1, 1]} : vector<2x96xf32> to vector<2x32xf32>
    %135 = arith.mulf %124, %134 : vector<2x32xf32>
    %136 = arith.addf %133, %135 : vector<2x32xf32>
    %137 = math.tanh %136 : vector<2x32xf32>
    %cst_87 = arith.constant 1.000000e+00 : f32
    %138 = vector.broadcast %cst_87 : f32 to vector<2x32xf32>
    %139 = arith.subf %138, %132 : vector<2x32xf32>
    %140 = arith.mulf %139, %137 : vector<2x32xf32>
    %141 = arith.mulf %132, %89 : vector<2x32xf32>
    %142 = arith.addf %140, %141 : vector<2x32xf32>
    %143 = vector.extract_strided_slice %116 {offsets = [0, 0], sizes = [2, 32], strides = [1, 1]} : vector<2x96xf32> to vector<2x32xf32>
    %144 = vector.extract_strided_slice %114 {offsets = [0, 0], sizes = [2, 32], strides = [1, 1]} : vector<2x96xf32> to vector<2x32xf32>
    %145 = arith.addf %143, %144 : vector<2x32xf32>
    %146 = arith.negf %145 : vector<2x32xf32>
    %147 = math.exp %146 : vector<2x32xf32>
    %cst_88 = arith.constant 1.000000e+00 : f32
    %148 = vector.broadcast %cst_88 : f32 to vector<2x32xf32>
    %149 = arith.addf %148, %147 : vector<2x32xf32>
    %150 = arith.divf %148, %149 : vector<2x32xf32>
    %151 = vector.extract_strided_slice %116 {offsets = [0, 32], sizes = [2, 32], strides = [1, 1]} : vector<2x96xf32> to vector<2x32xf32>
    %152 = vector.extract_strided_slice %114 {offsets = [0, 32], sizes = [2, 32], strides = [1, 1]} : vector<2x96xf32> to vector<2x32xf32>
    %153 = arith.addf %151, %152 : vector<2x32xf32>
    %154 = arith.negf %153 : vector<2x32xf32>
    %155 = math.exp %154 : vector<2x32xf32>
    %cst_89 = arith.constant 1.000000e+00 : f32
    %156 = vector.broadcast %cst_89 : f32 to vector<2x32xf32>
    %157 = arith.addf %156, %155 : vector<2x32xf32>
    %158 = arith.divf %156, %157 : vector<2x32xf32>
    %159 = vector.extract_strided_slice %116 {offsets = [0, 64], sizes = [2, 32], strides = [1, 1]} : vector<2x96xf32> to vector<2x32xf32>
    %160 = vector.extract_strided_slice %114 {offsets = [0, 64], sizes = [2, 32], strides = [1, 1]} : vector<2x96xf32> to vector<2x32xf32>
    %161 = arith.mulf %150, %160 : vector<2x32xf32>
    %162 = arith.addf %159, %161 : vector<2x32xf32>
    %163 = math.tanh %162 : vector<2x32xf32>
    %cst_90 = arith.constant 1.000000e+00 : f32
    %164 = vector.broadcast %cst_90 : f32 to vector<2x32xf32>
    %165 = arith.subf %164, %158 : vector<2x32xf32>
    %166 = arith.mulf %165, %163 : vector<2x32xf32>
    %167 = arith.mulf %158, %89 : vector<2x32xf32>
    %168 = arith.addf %166, %167 : vector<2x32xf32>
    %169 = vector.extract_strided_slice %106 {offsets = [0, 0], sizes = [2, 1], strides = [1, 1]} : vector<2x7xf32> to vector<2x1xf32>
    %170 = vector.broadcast %169 : vector<2x1xf32> to vector<2x32xf32>
    %171 = arith.mulf %142, %170 : vector<2x32xf32>
    %172 = arith.addf %107, %171 : vector<2x32xf32>
    %173 = vector.extract_strided_slice %106 {offsets = [0, 6], sizes = [2, 1], strides = [1, 1]} : vector<2x7xf32> to vector<2x1xf32>
    %174 = vector.broadcast %173 : vector<2x1xf32> to vector<2x32xf32>
    %175 = arith.mulf %168, %174 : vector<2x32xf32>
    %176 = arith.addf %108, %175 : vector<2x32xf32>
    %cst_91 = arith.constant dense<0.000000e+00> : vector<2x96xf32>
    %177 = tpu.matmul %142, %102, %cst_91 {dimension_numbers = #tpu.dot_dimension_numbers<[1], [0], [0], [1], [0, 0, 1, 1], [], []>} : vector<2x32xf32>, vector<32x96xf32>, vector<2x96xf32> -> vector<2x96xf32>
    %178 = vector.broadcast %103 : vector<1x96xf32> to vector<2x96xf32>
    %179 = arith.addf %177, %178 : vector<2x96xf32>
    %cst_92 = arith.constant dense<0.000000e+00> : vector<2x96xf32>
    %180 = tpu.matmul %168, %104, %cst_92 {dimension_numbers = #tpu.dot_dimension_numbers<[1], [0], [0], [1], [0, 0, 1, 1], [], []>} : vector<2x32xf32>, vector<32x96xf32>, vector<2x96xf32> -> vector<2x96xf32>
    %181 = vector.broadcast %105 : vector<1x96xf32> to vector<2x96xf32>
    %182 = arith.addf %180, %181 : vector<2x96xf32>
    %183 = vector.extract_strided_slice %96 {offsets = [2, 0], sizes = [2, 96], strides = [1, 1]} : vector<14x96xf32> to vector<2x96xf32>
    %184 = vector.extract_strided_slice %101 {offsets = [10, 0], sizes = [2, 96], strides = [1, 1]} : vector<14x96xf32> to vector<2x96xf32>
    %185 = vector.extract_strided_slice %183 {offsets = [0, 0], sizes = [2, 32], strides = [1, 1]} : vector<2x96xf32> to vector<2x32xf32>
    %186 = vector.extract_strided_slice %179 {offsets = [0, 0], sizes = [2, 32], strides = [1, 1]} : vector<2x96xf32> to vector<2x32xf32>
    %187 = arith.addf %185, %186 : vector<2x32xf32>
    %188 = arith.negf %187 : vector<2x32xf32>
    %189 = math.exp %188 : vector<2x32xf32>
    %cst_93 = arith.constant 1.000000e+00 : f32
    %190 = vector.broadcast %cst_93 : f32 to vector<2x32xf32>
    %191 = arith.addf %190, %189 : vector<2x32xf32>
    %192 = arith.divf %190, %191 : vector<2x32xf32>
    %193 = vector.extract_strided_slice %183 {offsets = [0, 32], sizes = [2, 32], strides = [1, 1]} : vector<2x96xf32> to vector<2x32xf32>
    %194 = vector.extract_strided_slice %179 {offsets = [0, 32], sizes = [2, 32], strides = [1, 1]} : vector<2x96xf32> to vector<2x32xf32>
    %195 = arith.addf %193, %194 : vector<2x32xf32>
    %196 = arith.negf %195 : vector<2x32xf32>
    %197 = math.exp %196 : vector<2x32xf32>
    %cst_94 = arith.constant 1.000000e+00 : f32
    %198 = vector.broadcast %cst_94 : f32 to vector<2x32xf32>
    %199 = arith.addf %198, %197 : vector<2x32xf32>
    %200 = arith.divf %198, %199 : vector<2x32xf32>
    %201 = vector.extract_strided_slice %183 {offsets = [0, 64], sizes = [2, 32], strides = [1, 1]} : vector<2x96xf32> to vector<2x32xf32>
    %202 = vector.extract_strided_slice %179 {offsets = [0, 64], sizes = [2, 32], strides = [1, 1]} : vector<2x96xf32> to vector<2x32xf32>
    %203 = arith.mulf %192, %202 : vector<2x32xf32>
    %204 = arith.addf %201, %203 : vector<2x32xf32>
    %205 = math.tanh %204 : vector<2x32xf32>
    %cst_95 = arith.constant 1.000000e+00 : f32
    %206 = vector.broadcast %cst_95 : f32 to vector<2x32xf32>
    %207 = arith.subf %206, %200 : vector<2x32xf32>
    %208 = arith.mulf %207, %205 : vector<2x32xf32>
    %209 = arith.mulf %200, %142 : vector<2x32xf32>
    %210 = arith.addf %208, %209 : vector<2x32xf32>
    %211 = vector.extract_strided_slice %184 {offsets = [0, 0], sizes = [2, 32], strides = [1, 1]} : vector<2x96xf32> to vector<2x32xf32>
    %212 = vector.extract_strided_slice %182 {offsets = [0, 0], sizes = [2, 32], strides = [1, 1]} : vector<2x96xf32> to vector<2x32xf32>
    %213 = arith.addf %211, %212 : vector<2x32xf32>
    %214 = arith.negf %213 : vector<2x32xf32>
    %215 = math.exp %214 : vector<2x32xf32>
    %cst_96 = arith.constant 1.000000e+00 : f32
    %216 = vector.broadcast %cst_96 : f32 to vector<2x32xf32>
    %217 = arith.addf %216, %215 : vector<2x32xf32>
    %218 = arith.divf %216, %217 : vector<2x32xf32>
    %219 = vector.extract_strided_slice %184 {offsets = [0, 32], sizes = [2, 32], strides = [1, 1]} : vector<2x96xf32> to vector<2x32xf32>
    %220 = vector.extract_strided_slice %182 {offsets = [0, 32], sizes = [2, 32], strides = [1, 1]} : vector<2x96xf32> to vector<2x32xf32>
    %221 = arith.addf %219, %220 : vector<2x32xf32>
    %222 = arith.negf %221 : vector<2x32xf32>
    %223 = math.exp %222 : vector<2x32xf32>
    %cst_97 = arith.constant 1.000000e+00 : f32
    %224 = vector.broadcast %cst_97 : f32 to vector<2x32xf32>
    %225 = arith.addf %224, %223 : vector<2x32xf32>
    %226 = arith.divf %224, %225 : vector<2x32xf32>
    %227 = vector.extract_strided_slice %184 {offsets = [0, 64], sizes = [2, 32], strides = [1, 1]} : vector<2x96xf32> to vector<2x32xf32>
    %228 = vector.extract_strided_slice %182 {offsets = [0, 64], sizes = [2, 32], strides = [1, 1]} : vector<2x96xf32> to vector<2x32xf32>
    %229 = arith.mulf %218, %228 : vector<2x32xf32>
    %230 = arith.addf %227, %229 : vector<2x32xf32>
    %231 = math.tanh %230 : vector<2x32xf32>
    %cst_98 = arith.constant 1.000000e+00 : f32
    %232 = vector.broadcast %cst_98 : f32 to vector<2x32xf32>
    %233 = arith.subf %232, %226 : vector<2x32xf32>
    %234 = arith.mulf %233, %231 : vector<2x32xf32>
    %235 = arith.mulf %226, %168 : vector<2x32xf32>
    %236 = arith.addf %234, %235 : vector<2x32xf32>
    %237 = vector.extract_strided_slice %106 {offsets = [0, 1], sizes = [2, 1], strides = [1, 1]} : vector<2x7xf32> to vector<2x1xf32>
    %238 = vector.broadcast %237 : vector<2x1xf32> to vector<2x32xf32>
    %239 = arith.mulf %210, %238 : vector<2x32xf32>
    %240 = arith.addf %172, %239 : vector<2x32xf32>
    %241 = vector.extract_strided_slice %106 {offsets = [0, 5], sizes = [2, 1], strides = [1, 1]} : vector<2x7xf32> to vector<2x1xf32>
    %242 = vector.broadcast %241 : vector<2x1xf32> to vector<2x32xf32>
    %243 = arith.mulf %236, %242 : vector<2x32xf32>
    %244 = arith.addf %176, %243 : vector<2x32xf32>
    %cst_99 = arith.constant dense<0.000000e+00> : vector<2x96xf32>
    %245 = tpu.matmul %210, %102, %cst_99 {dimension_numbers = #tpu.dot_dimension_numbers<[1], [0], [0], [1], [0, 0, 1, 1], [], []>} : vector<2x32xf32>, vector<32x96xf32>, vector<2x96xf32> -> vector<2x96xf32>
    %246 = vector.broadcast %103 : vector<1x96xf32> to vector<2x96xf32>
    %247 = arith.addf %245, %246 : vector<2x96xf32>
    %cst_100 = arith.constant dense<0.000000e+00> : vector<2x96xf32>
    %248 = tpu.matmul %236, %104, %cst_100 {dimension_numbers = #tpu.dot_dimension_numbers<[1], [0], [0], [1], [0, 0, 1, 1], [], []>} : vector<2x32xf32>, vector<32x96xf32>, vector<2x96xf32> -> vector<2x96xf32>
    %249 = vector.broadcast %105 : vector<1x96xf32> to vector<2x96xf32>
    %250 = arith.addf %248, %249 : vector<2x96xf32>
    %251 = vector.extract_strided_slice %96 {offsets = [4, 0], sizes = [2, 96], strides = [1, 1]} : vector<14x96xf32> to vector<2x96xf32>
    %252 = vector.extract_strided_slice %101 {offsets = [8, 0], sizes = [2, 96], strides = [1, 1]} : vector<14x96xf32> to vector<2x96xf32>
    %253 = vector.extract_strided_slice %251 {offsets = [0, 0], sizes = [2, 32], strides = [1, 1]} : vector<2x96xf32> to vector<2x32xf32>
    %254 = vector.extract_strided_slice %247 {offsets = [0, 0], sizes = [2, 32], strides = [1, 1]} : vector<2x96xf32> to vector<2x32xf32>
    %255 = arith.addf %253, %254 : vector<2x32xf32>
    %256 = arith.negf %255 : vector<2x32xf32>
    %257 = math.exp %256 : vector<2x32xf32>
    %cst_101 = arith.constant 1.000000e+00 : f32
    %258 = vector.broadcast %cst_101 : f32 to vector<2x32xf32>
    %259 = arith.addf %258, %257 : vector<2x32xf32>
    %260 = arith.divf %258, %259 : vector<2x32xf32>
    %261 = vector.extract_strided_slice %251 {offsets = [0, 32], sizes = [2, 32], strides = [1, 1]} : vector<2x96xf32> to vector<2x32xf32>
    %262 = vector.extract_strided_slice %247 {offsets = [0, 32], sizes = [2, 32], strides = [1, 1]} : vector<2x96xf32> to vector<2x32xf32>
    %263 = arith.addf %261, %262 : vector<2x32xf32>
    %264 = arith.negf %263 : vector<2x32xf32>
    %265 = math.exp %264 : vector<2x32xf32>
    %cst_102 = arith.constant 1.000000e+00 : f32
    %266 = vector.broadcast %cst_102 : f32 to vector<2x32xf32>
    %267 = arith.addf %266, %265 : vector<2x32xf32>
    %268 = arith.divf %266, %267 : vector<2x32xf32>
    %269 = vector.extract_strided_slice %251 {offsets = [0, 64], sizes = [2, 32], strides = [1, 1]} : vector<2x96xf32> to vector<2x32xf32>
    %270 = vector.extract_strided_slice %247 {offsets = [0, 64], sizes = [2, 32], strides = [1, 1]} : vector<2x96xf32> to vector<2x32xf32>
    %271 = arith.mulf %260, %270 : vector<2x32xf32>
    %272 = arith.addf %269, %271 : vector<2x32xf32>
    %273 = math.tanh %272 : vector<2x32xf32>
    %cst_103 = arith.constant 1.000000e+00 : f32
    %274 = vector.broadcast %cst_103 : f32 to vector<2x32xf32>
    %275 = arith.subf %274, %268 : vector<2x32xf32>
    %276 = arith.mulf %275, %273 : vector<2x32xf32>
    %277 = arith.mulf %268, %210 : vector<2x32xf32>
    %278 = arith.addf %276, %277 : vector<2x32xf32>
    %279 = vector.extract_strided_slice %252 {offsets = [0, 0], sizes = [2, 32], strides = [1, 1]} : vector<2x96xf32> to vector<2x32xf32>
    %280 = vector.extract_strided_slice %250 {offsets = [0, 0], sizes = [2, 32], strides = [1, 1]} : vector<2x96xf32> to vector<2x32xf32>
    %281 = arith.addf %279, %280 : vector<2x32xf32>
    %282 = arith.negf %281 : vector<2x32xf32>
    %283 = math.exp %282 : vector<2x32xf32>
    %cst_104 = arith.constant 1.000000e+00 : f32
    %284 = vector.broadcast %cst_104 : f32 to vector<2x32xf32>
    %285 = arith.addf %284, %283 : vector<2x32xf32>
    %286 = arith.divf %284, %285 : vector<2x32xf32>
    %287 = vector.extract_strided_slice %252 {offsets = [0, 32], sizes = [2, 32], strides = [1, 1]} : vector<2x96xf32> to vector<2x32xf32>
    %288 = vector.extract_strided_slice %250 {offsets = [0, 32], sizes = [2, 32], strides = [1, 1]} : vector<2x96xf32> to vector<2x32xf32>
    %289 = arith.addf %287, %288 : vector<2x32xf32>
    %290 = arith.negf %289 : vector<2x32xf32>
    %291 = math.exp %290 : vector<2x32xf32>
    %cst_105 = arith.constant 1.000000e+00 : f32
    %292 = vector.broadcast %cst_105 : f32 to vector<2x32xf32>
    %293 = arith.addf %292, %291 : vector<2x32xf32>
    %294 = arith.divf %292, %293 : vector<2x32xf32>
    %295 = vector.extract_strided_slice %252 {offsets = [0, 64], sizes = [2, 32], strides = [1, 1]} : vector<2x96xf32> to vector<2x32xf32>
    %296 = vector.extract_strided_slice %250 {offsets = [0, 64], sizes = [2, 32], strides = [1, 1]} : vector<2x96xf32> to vector<2x32xf32>
    %297 = arith.mulf %286, %296 : vector<2x32xf32>
    %298 = arith.addf %295, %297 : vector<2x32xf32>
    %299 = math.tanh %298 : vector<2x32xf32>
    %cst_106 = arith.constant 1.000000e+00 : f32
    %300 = vector.broadcast %cst_106 : f32 to vector<2x32xf32>
    %301 = arith.subf %300, %294 : vector<2x32xf32>
    %302 = arith.mulf %301, %299 : vector<2x32xf32>
    %303 = arith.mulf %294, %236 : vector<2x32xf32>
    %304 = arith.addf %302, %303 : vector<2x32xf32>
    %305 = vector.extract_strided_slice %106 {offsets = [0, 2], sizes = [2, 1], strides = [1, 1]} : vector<2x7xf32> to vector<2x1xf32>
    %306 = vector.broadcast %305 : vector<2x1xf32> to vector<2x32xf32>
    %307 = arith.mulf %278, %306 : vector<2x32xf32>
    %308 = arith.addf %240, %307 : vector<2x32xf32>
    %309 = vector.extract_strided_slice %106 {offsets = [0, 4], sizes = [2, 1], strides = [1, 1]} : vector<2x7xf32> to vector<2x1xf32>
    %310 = vector.broadcast %309 : vector<2x1xf32> to vector<2x32xf32>
    %311 = arith.mulf %304, %310 : vector<2x32xf32>
    %312 = arith.addf %244, %311 : vector<2x32xf32>
    %cst_107 = arith.constant dense<0.000000e+00> : vector<2x96xf32>
    %313 = tpu.matmul %278, %102, %cst_107 {dimension_numbers = #tpu.dot_dimension_numbers<[1], [0], [0], [1], [0, 0, 1, 1], [], []>} : vector<2x32xf32>, vector<32x96xf32>, vector<2x96xf32> -> vector<2x96xf32>
    %314 = vector.broadcast %103 : vector<1x96xf32> to vector<2x96xf32>
    %315 = arith.addf %313, %314 : vector<2x96xf32>
    %cst_108 = arith.constant dense<0.000000e+00> : vector<2x96xf32>
    %316 = tpu.matmul %304, %104, %cst_108 {dimension_numbers = #tpu.dot_dimension_numbers<[1], [0], [0], [1], [0, 0, 1, 1], [], []>} : vector<2x32xf32>, vector<32x96xf32>, vector<2x96xf32> -> vector<2x96xf32>
    %317 = vector.broadcast %105 : vector<1x96xf32> to vector<2x96xf32>
    %318 = arith.addf %316, %317 : vector<2x96xf32>
    %319 = vector.extract_strided_slice %96 {offsets = [6, 0], sizes = [2, 96], strides = [1, 1]} : vector<14x96xf32> to vector<2x96xf32>
    %320 = vector.extract_strided_slice %101 {offsets = [6, 0], sizes = [2, 96], strides = [1, 1]} : vector<14x96xf32> to vector<2x96xf32>
    %321 = vector.extract_strided_slice %319 {offsets = [0, 0], sizes = [2, 32], strides = [1, 1]} : vector<2x96xf32> to vector<2x32xf32>
    %322 = vector.extract_strided_slice %315 {offsets = [0, 0], sizes = [2, 32], strides = [1, 1]} : vector<2x96xf32> to vector<2x32xf32>
    %323 = arith.addf %321, %322 : vector<2x32xf32>
    %324 = arith.negf %323 : vector<2x32xf32>
    %325 = math.exp %324 : vector<2x32xf32>
    %cst_109 = arith.constant 1.000000e+00 : f32
    %326 = vector.broadcast %cst_109 : f32 to vector<2x32xf32>
    %327 = arith.addf %326, %325 : vector<2x32xf32>
    %328 = arith.divf %326, %327 : vector<2x32xf32>
    %329 = vector.extract_strided_slice %319 {offsets = [0, 32], sizes = [2, 32], strides = [1, 1]} : vector<2x96xf32> to vector<2x32xf32>
    %330 = vector.extract_strided_slice %315 {offsets = [0, 32], sizes = [2, 32], strides = [1, 1]} : vector<2x96xf32> to vector<2x32xf32>
    %331 = arith.addf %329, %330 : vector<2x32xf32>
    %332 = arith.negf %331 : vector<2x32xf32>
    %333 = math.exp %332 : vector<2x32xf32>
    %cst_110 = arith.constant 1.000000e+00 : f32
    %334 = vector.broadcast %cst_110 : f32 to vector<2x32xf32>
    %335 = arith.addf %334, %333 : vector<2x32xf32>
    %336 = arith.divf %334, %335 : vector<2x32xf32>
    %337 = vector.extract_strided_slice %319 {offsets = [0, 64], sizes = [2, 32], strides = [1, 1]} : vector<2x96xf32> to vector<2x32xf32>
    %338 = vector.extract_strided_slice %315 {offsets = [0, 64], sizes = [2, 32], strides = [1, 1]} : vector<2x96xf32> to vector<2x32xf32>
    %339 = arith.mulf %328, %338 : vector<2x32xf32>
    %340 = arith.addf %337, %339 : vector<2x32xf32>
    %341 = math.tanh %340 : vector<2x32xf32>
    %cst_111 = arith.constant 1.000000e+00 : f32
    %342 = vector.broadcast %cst_111 : f32 to vector<2x32xf32>
    %343 = arith.subf %342, %336 : vector<2x32xf32>
    %344 = arith.mulf %343, %341 : vector<2x32xf32>
    %345 = arith.mulf %336, %278 : vector<2x32xf32>
    %346 = arith.addf %344, %345 : vector<2x32xf32>
    %347 = vector.extract_strided_slice %320 {offsets = [0, 0], sizes = [2, 32], strides = [1, 1]} : vector<2x96xf32> to vector<2x32xf32>
    %348 = vector.extract_strided_slice %318 {offsets = [0, 0], sizes = [2, 32], strides = [1, 1]} : vector<2x96xf32> to vector<2x32xf32>
    %349 = arith.addf %347, %348 : vector<2x32xf32>
    %350 = arith.negf %349 : vector<2x32xf32>
    %351 = math.exp %350 : vector<2x32xf32>
    %cst_112 = arith.constant 1.000000e+00 : f32
    %352 = vector.broadcast %cst_112 : f32 to vector<2x32xf32>
    %353 = arith.addf %352, %351 : vector<2x32xf32>
    %354 = arith.divf %352, %353 : vector<2x32xf32>
    %355 = vector.extract_strided_slice %320 {offsets = [0, 32], sizes = [2, 32], strides = [1, 1]} : vector<2x96xf32> to vector<2x32xf32>
    %356 = vector.extract_strided_slice %318 {offsets = [0, 32], sizes = [2, 32], strides = [1, 1]} : vector<2x96xf32> to vector<2x32xf32>
    %357 = arith.addf %355, %356 : vector<2x32xf32>
    %358 = arith.negf %357 : vector<2x32xf32>
    %359 = math.exp %358 : vector<2x32xf32>
    %cst_113 = arith.constant 1.000000e+00 : f32
    %360 = vector.broadcast %cst_113 : f32 to vector<2x32xf32>
    %361 = arith.addf %360, %359 : vector<2x32xf32>
    %362 = arith.divf %360, %361 : vector<2x32xf32>
    %363 = vector.extract_strided_slice %320 {offsets = [0, 64], sizes = [2, 32], strides = [1, 1]} : vector<2x96xf32> to vector<2x32xf32>
    %364 = vector.extract_strided_slice %318 {offsets = [0, 64], sizes = [2, 32], strides = [1, 1]} : vector<2x96xf32> to vector<2x32xf32>
    %365 = arith.mulf %354, %364 : vector<2x32xf32>
    %366 = arith.addf %363, %365 : vector<2x32xf32>
    %367 = math.tanh %366 : vector<2x32xf32>
    %cst_114 = arith.constant 1.000000e+00 : f32
    %368 = vector.broadcast %cst_114 : f32 to vector<2x32xf32>
    %369 = arith.subf %368, %362 : vector<2x32xf32>
    %370 = arith.mulf %369, %367 : vector<2x32xf32>
    %371 = arith.mulf %362, %304 : vector<2x32xf32>
    %372 = arith.addf %370, %371 : vector<2x32xf32>
    %373 = vector.extract_strided_slice %106 {offsets = [0, 3], sizes = [2, 1], strides = [1, 1]} : vector<2x7xf32> to vector<2x1xf32>
    %374 = vector.broadcast %373 : vector<2x1xf32> to vector<2x32xf32>
    %375 = arith.mulf %346, %374 : vector<2x32xf32>
    %376 = arith.addf %308, %375 : vector<2x32xf32>
    %377 = vector.extract_strided_slice %106 {offsets = [0, 3], sizes = [2, 1], strides = [1, 1]} : vector<2x7xf32> to vector<2x1xf32>
    %378 = vector.broadcast %377 : vector<2x1xf32> to vector<2x32xf32>
    %379 = arith.mulf %372, %378 : vector<2x32xf32>
    %380 = arith.addf %312, %379 : vector<2x32xf32>
    %cst_115 = arith.constant dense<0.000000e+00> : vector<2x96xf32>
    %381 = tpu.matmul %346, %102, %cst_115 {dimension_numbers = #tpu.dot_dimension_numbers<[1], [0], [0], [1], [0, 0, 1, 1], [], []>} : vector<2x32xf32>, vector<32x96xf32>, vector<2x96xf32> -> vector<2x96xf32>
    %382 = vector.broadcast %103 : vector<1x96xf32> to vector<2x96xf32>
    %383 = arith.addf %381, %382 : vector<2x96xf32>
    %cst_116 = arith.constant dense<0.000000e+00> : vector<2x96xf32>
    %384 = tpu.matmul %372, %104, %cst_116 {dimension_numbers = #tpu.dot_dimension_numbers<[1], [0], [0], [1], [0, 0, 1, 1], [], []>} : vector<2x32xf32>, vector<32x96xf32>, vector<2x96xf32> -> vector<2x96xf32>
    %385 = vector.broadcast %105 : vector<1x96xf32> to vector<2x96xf32>
    %386 = arith.addf %384, %385 : vector<2x96xf32>
    %387 = vector.extract_strided_slice %96 {offsets = [8, 0], sizes = [2, 96], strides = [1, 1]} : vector<14x96xf32> to vector<2x96xf32>
    %388 = vector.extract_strided_slice %101 {offsets = [4, 0], sizes = [2, 96], strides = [1, 1]} : vector<14x96xf32> to vector<2x96xf32>
    %389 = vector.extract_strided_slice %387 {offsets = [0, 0], sizes = [2, 32], strides = [1, 1]} : vector<2x96xf32> to vector<2x32xf32>
    %390 = vector.extract_strided_slice %383 {offsets = [0, 0], sizes = [2, 32], strides = [1, 1]} : vector<2x96xf32> to vector<2x32xf32>
    %391 = arith.addf %389, %390 : vector<2x32xf32>
    %392 = arith.negf %391 : vector<2x32xf32>
    %393 = math.exp %392 : vector<2x32xf32>
    %cst_117 = arith.constant 1.000000e+00 : f32
    %394 = vector.broadcast %cst_117 : f32 to vector<2x32xf32>
    %395 = arith.addf %394, %393 : vector<2x32xf32>
    %396 = arith.divf %394, %395 : vector<2x32xf32>
    %397 = vector.extract_strided_slice %387 {offsets = [0, 32], sizes = [2, 32], strides = [1, 1]} : vector<2x96xf32> to vector<2x32xf32>
    %398 = vector.extract_strided_slice %383 {offsets = [0, 32], sizes = [2, 32], strides = [1, 1]} : vector<2x96xf32> to vector<2x32xf32>
    %399 = arith.addf %397, %398 : vector<2x32xf32>
    %400 = arith.negf %399 : vector<2x32xf32>
    %401 = math.exp %400 : vector<2x32xf32>
    %cst_118 = arith.constant 1.000000e+00 : f32
    %402 = vector.broadcast %cst_118 : f32 to vector<2x32xf32>
    %403 = arith.addf %402, %401 : vector<2x32xf32>
    %404 = arith.divf %402, %403 : vector<2x32xf32>
    %405 = vector.extract_strided_slice %387 {offsets = [0, 64], sizes = [2, 32], strides = [1, 1]} : vector<2x96xf32> to vector<2x32xf32>
    %406 = vector.extract_strided_slice %383 {offsets = [0, 64], sizes = [2, 32], strides = [1, 1]} : vector<2x96xf32> to vector<2x32xf32>
    %407 = arith.mulf %396, %406 : vector<2x32xf32>
    %408 = arith.addf %405, %407 : vector<2x32xf32>
    %409 = math.tanh %408 : vector<2x32xf32>
    %cst_119 = arith.constant 1.000000e+00 : f32
    %410 = vector.broadcast %cst_119 : f32 to vector<2x32xf32>
    %411 = arith.subf %410, %404 : vector<2x32xf32>
    %412 = arith.mulf %411, %409 : vector<2x32xf32>
    %413 = arith.mulf %404, %346 : vector<2x32xf32>
    %414 = arith.addf %412, %413 : vector<2x32xf32>
    %415 = vector.extract_strided_slice %388 {offsets = [0, 0], sizes = [2, 32], strides = [1, 1]} : vector<2x96xf32> to vector<2x32xf32>
    %416 = vector.extract_strided_slice %386 {offsets = [0, 0], sizes = [2, 32], strides = [1, 1]} : vector<2x96xf32> to vector<2x32xf32>
    %417 = arith.addf %415, %416 : vector<2x32xf32>
    %418 = arith.negf %417 : vector<2x32xf32>
    %419 = math.exp %418 : vector<2x32xf32>
    %cst_120 = arith.constant 1.000000e+00 : f32
    %420 = vector.broadcast %cst_120 : f32 to vector<2x32xf32>
    %421 = arith.addf %420, %419 : vector<2x32xf32>
    %422 = arith.divf %420, %421 : vector<2x32xf32>
    %423 = vector.extract_strided_slice %388 {offsets = [0, 32], sizes = [2, 32], strides = [1, 1]} : vector<2x96xf32> to vector<2x32xf32>
    %424 = vector.extract_strided_slice %386 {offsets = [0, 32], sizes = [2, 32], strides = [1, 1]} : vector<2x96xf32> to vector<2x32xf32>
    %425 = arith.addf %423, %424 : vector<2x32xf32>
    %426 = arith.negf %425 : vector<2x32xf32>
    %427 = math.exp %426 : vector<2x32xf32>
    %cst_121 = arith.constant 1.000000e+00 : f32
    %428 = vector.broadcast %cst_121 : f32 to vector<2x32xf32>
    %429 = arith.addf %428, %427 : vector<2x32xf32>
    %430 = arith.divf %428, %429 : vector<2x32xf32>
    %431 = vector.extract_strided_slice %388 {offsets = [0, 64], sizes = [2, 32], strides = [1, 1]} : vector<2x96xf32> to vector<2x32xf32>
    %432 = vector.extract_strided_slice %386 {offsets = [0, 64], sizes = [2, 32], strides = [1, 1]} : vector<2x96xf32> to vector<2x32xf32>
    %433 = arith.mulf %422, %432 : vector<2x32xf32>
    %434 = arith.addf %431, %433 : vector<2x32xf32>
    %435 = math.tanh %434 : vector<2x32xf32>
    %cst_122 = arith.constant 1.000000e+00 : f32
    %436 = vector.broadcast %cst_122 : f32 to vector<2x32xf32>
    %437 = arith.subf %436, %430 : vector<2x32xf32>
    %438 = arith.mulf %437, %435 : vector<2x32xf32>
    %439 = arith.mulf %430, %372 : vector<2x32xf32>
    %440 = arith.addf %438, %439 : vector<2x32xf32>
    %441 = vector.extract_strided_slice %106 {offsets = [0, 4], sizes = [2, 1], strides = [1, 1]} : vector<2x7xf32> to vector<2x1xf32>
    %442 = vector.broadcast %441 : vector<2x1xf32> to vector<2x32xf32>
    %443 = arith.mulf %414, %442 : vector<2x32xf32>
    %444 = arith.addf %376, %443 : vector<2x32xf32>
    %445 = vector.extract_strided_slice %106 {offsets = [0, 2], sizes = [2, 1], strides = [1, 1]} : vector<2x7xf32> to vector<2x1xf32>
    %446 = vector.broadcast %445 : vector<2x1xf32> to vector<2x32xf32>
    %447 = arith.mulf %440, %446 : vector<2x32xf32>
    %448 = arith.addf %380, %447 : vector<2x32xf32>
    %cst_123 = arith.constant dense<0.000000e+00> : vector<2x96xf32>
    %449 = tpu.matmul %414, %102, %cst_123 {dimension_numbers = #tpu.dot_dimension_numbers<[1], [0], [0], [1], [0, 0, 1, 1], [], []>} : vector<2x32xf32>, vector<32x96xf32>, vector<2x96xf32> -> vector<2x96xf32>
    %450 = vector.broadcast %103 : vector<1x96xf32> to vector<2x96xf32>
    %451 = arith.addf %449, %450 : vector<2x96xf32>
    %cst_124 = arith.constant dense<0.000000e+00> : vector<2x96xf32>
    %452 = tpu.matmul %440, %104, %cst_124 {dimension_numbers = #tpu.dot_dimension_numbers<[1], [0], [0], [1], [0, 0, 1, 1], [], []>} : vector<2x32xf32>, vector<32x96xf32>, vector<2x96xf32> -> vector<2x96xf32>
    %453 = vector.broadcast %105 : vector<1x96xf32> to vector<2x96xf32>
    %454 = arith.addf %452, %453 : vector<2x96xf32>
    %455 = vector.extract_strided_slice %96 {offsets = [10, 0], sizes = [2, 96], strides = [1, 1]} : vector<14x96xf32> to vector<2x96xf32>
    %456 = vector.extract_strided_slice %101 {offsets = [2, 0], sizes = [2, 96], strides = [1, 1]} : vector<14x96xf32> to vector<2x96xf32>
    %457 = vector.extract_strided_slice %455 {offsets = [0, 0], sizes = [2, 32], strides = [1, 1]} : vector<2x96xf32> to vector<2x32xf32>
    %458 = vector.extract_strided_slice %451 {offsets = [0, 0], sizes = [2, 32], strides = [1, 1]} : vector<2x96xf32> to vector<2x32xf32>
    %459 = arith.addf %457, %458 : vector<2x32xf32>
    %460 = arith.negf %459 : vector<2x32xf32>
    %461 = math.exp %460 : vector<2x32xf32>
    %cst_125 = arith.constant 1.000000e+00 : f32
    %462 = vector.broadcast %cst_125 : f32 to vector<2x32xf32>
    %463 = arith.addf %462, %461 : vector<2x32xf32>
    %464 = arith.divf %462, %463 : vector<2x32xf32>
    %465 = vector.extract_strided_slice %455 {offsets = [0, 32], sizes = [2, 32], strides = [1, 1]} : vector<2x96xf32> to vector<2x32xf32>
    %466 = vector.extract_strided_slice %451 {offsets = [0, 32], sizes = [2, 32], strides = [1, 1]} : vector<2x96xf32> to vector<2x32xf32>
    %467 = arith.addf %465, %466 : vector<2x32xf32>
    %468 = arith.negf %467 : vector<2x32xf32>
    %469 = math.exp %468 : vector<2x32xf32>
    %cst_126 = arith.constant 1.000000e+00 : f32
    %470 = vector.broadcast %cst_126 : f32 to vector<2x32xf32>
    %471 = arith.addf %470, %469 : vector<2x32xf32>
    %472 = arith.divf %470, %471 : vector<2x32xf32>
    %473 = vector.extract_strided_slice %455 {offsets = [0, 64], sizes = [2, 32], strides = [1, 1]} : vector<2x96xf32> to vector<2x32xf32>
    %474 = vector.extract_strided_slice %451 {offsets = [0, 64], sizes = [2, 32], strides = [1, 1]} : vector<2x96xf32> to vector<2x32xf32>
    %475 = arith.mulf %464, %474 : vector<2x32xf32>
    %476 = arith.addf %473, %475 : vector<2x32xf32>
    %477 = math.tanh %476 : vector<2x32xf32>
    %cst_127 = arith.constant 1.000000e+00 : f32
    %478 = vector.broadcast %cst_127 : f32 to vector<2x32xf32>
    %479 = arith.subf %478, %472 : vector<2x32xf32>
    %480 = arith.mulf %479, %477 : vector<2x32xf32>
    %481 = arith.mulf %472, %414 : vector<2x32xf32>
    %482 = arith.addf %480, %481 : vector<2x32xf32>
    %483 = vector.extract_strided_slice %456 {offsets = [0, 0], sizes = [2, 32], strides = [1, 1]} : vector<2x96xf32> to vector<2x32xf32>
    %484 = vector.extract_strided_slice %454 {offsets = [0, 0], sizes = [2, 32], strides = [1, 1]} : vector<2x96xf32> to vector<2x32xf32>
    %485 = arith.addf %483, %484 : vector<2x32xf32>
    %486 = arith.negf %485 : vector<2x32xf32>
    %487 = math.exp %486 : vector<2x32xf32>
    %cst_128 = arith.constant 1.000000e+00 : f32
    %488 = vector.broadcast %cst_128 : f32 to vector<2x32xf32>
    %489 = arith.addf %488, %487 : vector<2x32xf32>
    %490 = arith.divf %488, %489 : vector<2x32xf32>
    %491 = vector.extract_strided_slice %456 {offsets = [0, 32], sizes = [2, 32], strides = [1, 1]} : vector<2x96xf32> to vector<2x32xf32>
    %492 = vector.extract_strided_slice %454 {offsets = [0, 32], sizes = [2, 32], strides = [1, 1]} : vector<2x96xf32> to vector<2x32xf32>
    %493 = arith.addf %491, %492 : vector<2x32xf32>
    %494 = arith.negf %493 : vector<2x32xf32>
    %495 = math.exp %494 : vector<2x32xf32>
    %cst_129 = arith.constant 1.000000e+00 : f32
    %496 = vector.broadcast %cst_129 : f32 to vector<2x32xf32>
    %497 = arith.addf %496, %495 : vector<2x32xf32>
    %498 = arith.divf %496, %497 : vector<2x32xf32>
    %499 = vector.extract_strided_slice %456 {offsets = [0, 64], sizes = [2, 32], strides = [1, 1]} : vector<2x96xf32> to vector<2x32xf32>
    %500 = vector.extract_strided_slice %454 {offsets = [0, 64], sizes = [2, 32], strides = [1, 1]} : vector<2x96xf32> to vector<2x32xf32>
    %501 = arith.mulf %490, %500 : vector<2x32xf32>
    %502 = arith.addf %499, %501 : vector<2x32xf32>
    %503 = math.tanh %502 : vector<2x32xf32>
    %cst_130 = arith.constant 1.000000e+00 : f32
    %504 = vector.broadcast %cst_130 : f32 to vector<2x32xf32>
    %505 = arith.subf %504, %498 : vector<2x32xf32>
    %506 = arith.mulf %505, %503 : vector<2x32xf32>
    %507 = arith.mulf %498, %440 : vector<2x32xf32>
    %508 = arith.addf %506, %507 : vector<2x32xf32>
    %509 = vector.extract_strided_slice %106 {offsets = [0, 5], sizes = [2, 1], strides = [1, 1]} : vector<2x7xf32> to vector<2x1xf32>
    %510 = vector.broadcast %509 : vector<2x1xf32> to vector<2x32xf32>
    %511 = arith.mulf %482, %510 : vector<2x32xf32>
    %512 = arith.addf %444, %511 : vector<2x32xf32>
    %513 = vector.extract_strided_slice %106 {offsets = [0, 1], sizes = [2, 1], strides = [1, 1]} : vector<2x7xf32> to vector<2x1xf32>
    %514 = vector.broadcast %513 : vector<2x1xf32> to vector<2x32xf32>
    %515 = arith.mulf %508, %514 : vector<2x32xf32>
    %516 = arith.addf %448, %515 : vector<2x32xf32>
    %cst_131 = arith.constant dense<0.000000e+00> : vector<2x96xf32>
    %517 = tpu.matmul %482, %102, %cst_131 {dimension_numbers = #tpu.dot_dimension_numbers<[1], [0], [0], [1], [0, 0, 1, 1], [], []>} : vector<2x32xf32>, vector<32x96xf32>, vector<2x96xf32> -> vector<2x96xf32>
    %518 = vector.broadcast %103 : vector<1x96xf32> to vector<2x96xf32>
    %519 = arith.addf %517, %518 : vector<2x96xf32>
    %cst_132 = arith.constant dense<0.000000e+00> : vector<2x96xf32>
    %520 = tpu.matmul %508, %104, %cst_132 {dimension_numbers = #tpu.dot_dimension_numbers<[1], [0], [0], [1], [0, 0, 1, 1], [], []>} : vector<2x32xf32>, vector<32x96xf32>, vector<2x96xf32> -> vector<2x96xf32>
    %521 = vector.broadcast %105 : vector<1x96xf32> to vector<2x96xf32>
    %522 = arith.addf %520, %521 : vector<2x96xf32>
    %523 = vector.extract_strided_slice %96 {offsets = [12, 0], sizes = [2, 96], strides = [1, 1]} : vector<14x96xf32> to vector<2x96xf32>
    %524 = vector.extract_strided_slice %101 {offsets = [0, 0], sizes = [2, 96], strides = [1, 1]} : vector<14x96xf32> to vector<2x96xf32>
    %525 = vector.extract_strided_slice %523 {offsets = [0, 0], sizes = [2, 32], strides = [1, 1]} : vector<2x96xf32> to vector<2x32xf32>
    %526 = vector.extract_strided_slice %519 {offsets = [0, 0], sizes = [2, 32], strides = [1, 1]} : vector<2x96xf32> to vector<2x32xf32>
    %527 = arith.addf %525, %526 : vector<2x32xf32>
    %528 = arith.negf %527 : vector<2x32xf32>
    %529 = math.exp %528 : vector<2x32xf32>
    %cst_133 = arith.constant 1.000000e+00 : f32
    %530 = vector.broadcast %cst_133 : f32 to vector<2x32xf32>
    %531 = arith.addf %530, %529 : vector<2x32xf32>
    %532 = arith.divf %530, %531 : vector<2x32xf32>
    %533 = vector.extract_strided_slice %523 {offsets = [0, 32], sizes = [2, 32], strides = [1, 1]} : vector<2x96xf32> to vector<2x32xf32>
    %534 = vector.extract_strided_slice %519 {offsets = [0, 32], sizes = [2, 32], strides = [1, 1]} : vector<2x96xf32> to vector<2x32xf32>
    %535 = arith.addf %533, %534 : vector<2x32xf32>
    %536 = arith.negf %535 : vector<2x32xf32>
    %537 = math.exp %536 : vector<2x32xf32>
    %cst_134 = arith.constant 1.000000e+00 : f32
    %538 = vector.broadcast %cst_134 : f32 to vector<2x32xf32>
    %539 = arith.addf %538, %537 : vector<2x32xf32>
    %540 = arith.divf %538, %539 : vector<2x32xf32>
    %541 = vector.extract_strided_slice %523 {offsets = [0, 64], sizes = [2, 32], strides = [1, 1]} : vector<2x96xf32> to vector<2x32xf32>
    %542 = vector.extract_strided_slice %519 {offsets = [0, 64], sizes = [2, 32], strides = [1, 1]} : vector<2x96xf32> to vector<2x32xf32>
    %543 = arith.mulf %532, %542 : vector<2x32xf32>
    %544 = arith.addf %541, %543 : vector<2x32xf32>
    %545 = math.tanh %544 : vector<2x32xf32>
    %cst_135 = arith.constant 1.000000e+00 : f32
    %546 = vector.broadcast %cst_135 : f32 to vector<2x32xf32>
    %547 = arith.subf %546, %540 : vector<2x32xf32>
    %548 = arith.mulf %547, %545 : vector<2x32xf32>
    %549 = arith.mulf %540, %482 : vector<2x32xf32>
    %550 = arith.addf %548, %549 : vector<2x32xf32>
    %551 = vector.extract_strided_slice %524 {offsets = [0, 0], sizes = [2, 32], strides = [1, 1]} : vector<2x96xf32> to vector<2x32xf32>
    %552 = vector.extract_strided_slice %522 {offsets = [0, 0], sizes = [2, 32], strides = [1, 1]} : vector<2x96xf32> to vector<2x32xf32>
    %553 = arith.addf %551, %552 : vector<2x32xf32>
    %554 = arith.negf %553 : vector<2x32xf32>
    %555 = math.exp %554 : vector<2x32xf32>
    %cst_136 = arith.constant 1.000000e+00 : f32
    %556 = vector.broadcast %cst_136 : f32 to vector<2x32xf32>
    %557 = arith.addf %556, %555 : vector<2x32xf32>
    %558 = arith.divf %556, %557 : vector<2x32xf32>
    %559 = vector.extract_strided_slice %524 {offsets = [0, 32], sizes = [2, 32], strides = [1, 1]} : vector<2x96xf32> to vector<2x32xf32>
    %560 = vector.extract_strided_slice %522 {offsets = [0, 32], sizes = [2, 32], strides = [1, 1]} : vector<2x96xf32> to vector<2x32xf32>
    %561 = arith.addf %559, %560 : vector<2x32xf32>
    %562 = arith.negf %561 : vector<2x32xf32>
    %563 = math.exp %562 : vector<2x32xf32>
    %cst_137 = arith.constant 1.000000e+00 : f32
    %564 = vector.broadcast %cst_137 : f32 to vector<2x32xf32>
    %565 = arith.addf %564, %563 : vector<2x32xf32>
    %566 = arith.divf %564, %565 : vector<2x32xf32>
    %567 = vector.extract_strided_slice %524 {offsets = [0, 64], sizes = [2, 32], strides = [1, 1]} : vector<2x96xf32> to vector<2x32xf32>
    %568 = vector.extract_strided_slice %522 {offsets = [0, 64], sizes = [2, 32], strides = [1, 1]} : vector<2x96xf32> to vector<2x32xf32>
    %569 = arith.mulf %558, %568 : vector<2x32xf32>
    %570 = arith.addf %567, %569 : vector<2x32xf32>
    %571 = math.tanh %570 : vector<2x32xf32>
    %cst_138 = arith.constant 1.000000e+00 : f32
    %572 = vector.broadcast %cst_138 : f32 to vector<2x32xf32>
    %573 = arith.subf %572, %566 : vector<2x32xf32>
    %574 = arith.mulf %573, %571 : vector<2x32xf32>
    %575 = arith.mulf %566, %508 : vector<2x32xf32>
    %576 = arith.addf %574, %575 : vector<2x32xf32>
    %577 = vector.extract_strided_slice %106 {offsets = [0, 6], sizes = [2, 1], strides = [1, 1]} : vector<2x7xf32> to vector<2x1xf32>
    %578 = vector.broadcast %577 : vector<2x1xf32> to vector<2x32xf32>
    %579 = arith.mulf %550, %578 : vector<2x32xf32>
    %580 = arith.addf %512, %579 : vector<2x32xf32>
    %581 = vector.extract_strided_slice %106 {offsets = [0, 0], sizes = [2, 1], strides = [1, 1]} : vector<2x7xf32> to vector<2x1xf32>
    %582 = vector.broadcast %581 : vector<2x1xf32> to vector<2x32xf32>
    %583 = arith.mulf %576, %582 : vector<2x32xf32>
    %584 = arith.addf %516, %583 : vector<2x32xf32>
    %c0_139 = arith.constant 0 : index
    %c0_140 = arith.constant 0 : index
    %585 = vector.load %arg5[%c0_139, %c0_140] : memref<2x12xf32, #tpu.memory_space<vmem>>, vector<2x12xf32>
    %cst_141 = arith.constant dense<0.000000e+00> : vector<2xf32>
    %586 = vector.multi_reduction <add>, %585, %cst_141 [1] : vector<2x12xf32> to vector<2xf32>
    %587 = vector.shape_cast %586 : vector<2xf32> to vector<2x1xf32>
    %588 = vector.broadcast %587 : vector<2x1xf32> to vector<2x32xf32>
    %589 = arith.divf %580, %588 : vector<2x32xf32>
    %590 = vector.broadcast %587 : vector<2x1xf32> to vector<2x32xf32>
    %591 = arith.divf %584, %590 : vector<2x32xf32>
    %c0_142 = arith.constant 0 : index
    %c0_143 = arith.constant 0 : index
    %592 = vector.load %arg26[%c0_142, %c0_143] : memref<64x32xf32, #tpu.memory_space<vmem>>, vector<32x32xf32>
    %cst_144 = arith.constant dense<0.000000e+00> : vector<2x32xf32>
    %593 = tpu.matmul %589, %592, %cst_144 {dimension_numbers = #tpu.dot_dimension_numbers<[1], [0], [0], [1], [0, 0, 1, 1], [], []>} : vector<2x32xf32>, vector<32x32xf32>, vector<2x32xf32> -> vector<2x32xf32>
    %c32_145 = arith.constant 32 : index
    %c0_146 = arith.constant 0 : index
    %594 = vector.load %arg26[%c32_145, %c0_146] : memref<64x32xf32, #tpu.memory_space<vmem>>, vector<32x32xf32>
    %cst_147 = arith.constant dense<0.000000e+00> : vector<2x32xf32>
    %595 = tpu.matmul %591, %594, %cst_147 {dimension_numbers = #tpu.dot_dimension_numbers<[1], [0], [0], [1], [0, 0, 1, 1], [], []>} : vector<2x32xf32>, vector<32x32xf32>, vector<2x32xf32> -> vector<2x32xf32>
    %596 = arith.addf %593, %595 : vector<2x32xf32>
    %c0_148 = arith.constant 0 : index
    %c0_149 = arith.constant 0 : index
    %597 = vector.load %arg27[%c0_148, %c0_149] : memref<1x32xf32, #tpu.memory_space<vmem>>, vector<1x32xf32>
    %598 = vector.broadcast %597 : vector<1x32xf32> to vector<2x32xf32>
    %599 = arith.addf %596, %598 : vector<2x32xf32>
    %cst_150 = arith.constant 0.000000e+00 : f32
    %600 = vector.broadcast %cst_150 : f32 to vector<2x32xf32>
    %601 = arith.maximumf %599, %600 : vector<2x32xf32>
    %c0_151 = arith.constant 0 : index
    %c0_152 = arith.constant 0 : index
    %602 = vector.load %arg28[%c0_151, %c0_152] : memref<32x4xf32, #tpu.memory_space<vmem>>, vector<32x4xf32>
    %cst_153 = arith.constant dense<0.000000e+00> : vector<2x4xf32>
    %603 = tpu.matmul %601, %602, %cst_153 {dimension_numbers = #tpu.dot_dimension_numbers<[1], [0], [0], [1], [0, 0, 1, 1], [], []>} : vector<2x32xf32>, vector<32x4xf32>, vector<2x4xf32> -> vector<2x4xf32>
    %c0_154 = arith.constant 0 : index
    %c0_155 = arith.constant 0 : index
    %604 = vector.load %arg29[%c0_154, %c0_155] : memref<1x4xf32, #tpu.memory_space<vmem>>, vector<1x4xf32>
    %605 = vector.broadcast %604 : vector<1x4xf32> to vector<2x4xf32>
    %606 = arith.addf %603, %605 : vector<2x4xf32>
    %c0_156 = arith.constant 0 : index
    %c0_157 = arith.constant 0 : index
    %607 = vector.load %arg30[%c0_156, %c0_157] : memref<2x4xf32, #tpu.memory_space<vmem>>, vector<2x4xf32>
    tpu.vector_store %arg30[%c0_156, %c0_157], %606 {strides = array<i32>} : memref<2x4xf32, #tpu.memory_space<vmem>>, vector<2x4xf32>,
    return
  }
}

</mosaic_0001>

<llo_original>
// kernel: cmpnn_forward.1
$region0: #{cmpnn_forward.1}
  #allocation0 [shape = 'u32[]', space=smem, size = 0x4, offset = 0x4, fixed_abs, tag = 'smem constant byte address 0x4 - core index']
  #allocation1 [shape = 'u32[72,128]{1,0:T(1,128)}', space=vmem, size = 0x9000, scoped, tag = 'internal scratch']
  %s0 = inlined_call_operand.smem [shape: u32[31], index: -1, kind: input, shape index: {}]
  %s1 = sld [smem:[%s0]]
  %s2 = scalar_lea.smem %s0, 1
  %s3 = sld [smem:[%s2]]
  %s4 = scalar_lea.smem %s0, 2
  %s5 = sld [smem:[%s4]]
  %s6 = scalar_lea.smem %s0, 3
  %s7 = sld [smem:[%s6]]
  %s8 = scalar_lea.smem %s0, 4
  %s9 = sld [smem:[%s8]]
  %s10 = scalar_lea.smem %s0, 5
  %s11 = sld [smem:[%s10]]
  %s12 = scalar_lea.smem %s0, 6
  %s13 = sld [smem:[%s12]]
  %s14 = scalar_lea.smem %s0, 7
  %s15 = sld [smem:[%s14]]
  %s16 = scalar_lea.smem %s0, 8
  %s17 = sld [smem:[%s16]]
  %s18 = scalar_lea.smem %s0, 9
  %s19 = sld [smem:[%s18]]
  %s20 = scalar_lea.smem %s0, 10
  %s21 = sld [smem:[%s20]]
  %s22 = scalar_lea.smem %s0, 11
  %s23 = sld [smem:[%s22]]
  %s24 = scalar_lea.smem %s0, 12
  %s25 = sld [smem:[%s24]]
  %s26 = scalar_lea.smem %s0, 13
  %s27 = sld [smem:[%s26]]
  %s28 = scalar_lea.smem %s0, 14
  %s29 = sld [smem:[%s28]]
  %s30 = scalar_lea.smem %s0, 15
  %s31 = sld [smem:[%s30]]
  %s32 = scalar_lea.smem %s0, 16
  %s33 = sld [smem:[%s32]]
  %s34 = scalar_lea.smem %s0, 17
  %s35 = sld [smem:[%s34]]
  %s36 = scalar_lea.smem %s0, 18
  %s37 = sld [smem:[%s36]]
  %s38 = scalar_lea.smem %s0, 19
  %s39 = sld [smem:[%s38]]
  %s40 = scalar_lea.smem %s0, 20
  %s41 = sld [smem:[%s40]]
  %s42 = scalar_lea.smem %s0, 21
  %s43 = sld [smem:[%s42]]
  %s44 = scalar_lea.smem %s0, 22
  %s45 = sld [smem:[%s44]]
  %s46 = scalar_lea.smem %s0, 23
  %s47 = sld [smem:[%s46]]
  %s48 = scalar_lea.smem %s0, 24
  %s49 = sld [smem:[%s48]]
  %s50 = scalar_lea.smem %s0, 25
  %s51 = sld [smem:[%s50]]
  %s52 = scalar_lea.smem %s0, 26
  %s53 = sld [smem:[%s52]]
  %s54 = scalar_lea.smem %s0, 27
  %s55 = sld [smem:[%s54]]
  %s56 = scalar_lea.smem %s0, 28
  %s57 = sld [smem:[%s56]]
  %s58 = scalar_lea.smem %s0, 29
  %s59 = sld [smem:[%s58]]
  %s60 = scalar_lea.smem %s0, 30
  %s61 = sld [smem:[%s60]]
  %s62 = sld [smem:[#allocation0]]
  $region186: #{cmpnn_forward.1} parent=0
    _
  %s64 = ssub.s32 1, %s62
  %s65 = scalar_select 0, %s64, %s62
  $region1: #{cmpnn_forward.1} parent=0
    #allocation2 [shape = 'u8[1024]{0}', space=vmem, size = 0x400, scoped, tag = 'input window, operand 6, single buffered']
    #allocation3 [shape = 's32[1]{0}', space=sflag, size = 0x4, scoped, tag = 'scoped memory for cmpnn_forward.1']
    #allocation4 [shape = 's32[1]{0}', space=sflag, size = 0x4, scoped, tag = 'scoped memory for cmpnn_forward.1']
    #allocation5 [shape = 'u8[1024]{0}', space=vmem, size = 0x400, scoped, tag = 'input window, operand 7, single buffered']
    #allocation6 [shape = 's32[1]{0}', space=sflag, size = 0x4, scoped, tag = 'scoped memory for cmpnn_forward.1']
    #allocation7 [shape = 'u8[8192]{0}', space=vmem, size = 0x2000, scoped, tag = 'input window, operand 9, single buffered']
    #allocation8 [shape = 'u8[512]{0}', space=vmem, size = 0x400, scoped, tag = 'input window, operand 10, single buffered']
    #allocation9 [shape = 's32[1]{0}', space=sflag, size = 0x4, scoped, tag = 'scoped memory for cmpnn_forward.1']
    #allocation10 [shape = 'u8[512]{0}', space=vmem, size = 0x400, scoped, tag = 'input window, operand 12, single buffered']
    #allocation11 [shape = 'u8[1024]{0}', space=vmem, size = 0x400, scoped, tag = 'input window, operand 14, single buffered']
    #allocation12 [shape = 's32[1]{0}', space=sflag, size = 0x4, scoped, tag = 'scoped memory for cmpnn_forward.1']
    #allocation13 [shape = 'u8[512]{0}', space=vmem, size = 0x400, scoped, tag = 'input window, operand 16, single buffered']
    #allocation14 [shape = 'u8[512]{0}', space=vmem, size = 0x400, scoped, tag = 'input window, operand 17, single buffered']
    #allocation15 [shape = 's32[1]{0}', space=sflag, size = 0x4, scoped, tag = 'scoped memory for cmpnn_forward.1']
    #allocation16 [shape = 'u8[512]{0}', space=vmem, size = 0x400, scoped, tag = 'input window, operand 19, single buffered']
    #allocation17 [shape = 'u8[512]{0}', space=vmem, size = 0x400, scoped, tag = 'input window, operand 21, single buffered']
    #allocation18 [shape = 's32[1]{0}', space=sflag, size = 0x4, scoped, tag = 'scoped memory for cmpnn_forward.1']
    #allocation19 [shape = 'u8[512]{0}', space=vmem, size = 0x400, scoped, tag = 'input window, operand 23, single buffered']
    #allocation20 [shape = 'u8[512]{0}', space=vmem, size = 0x400, scoped, tag = 'input window, operand 25, single buffered']
    #allocation21 [shape = 's32[1]{0}', space=sflag, size = 0x4, scoped, tag = 'scoped memory for cmpnn_forward.1']
    #allocation22 [shape = 'u8[512]{0}', space=vmem, size = 0x400, scoped, tag = 'input window, operand 27, single buffered']
    #allocation23 [shape = 'u8[512]{0}', space=vmem, size = 0x400, scoped, tag = 'input window, operand 29, single buffered']
    #allocation24 [shape = 's32[1]{0}', space=sflag, size = 0x4, scoped, tag = 'scoped memory for cmpnn_forward.1']
    #allocation25 [shape = 'u8[1024]{0}', space=vmem, size = 0x400, scoped, tag = 'output window, operand 0, single buffered']
    %66 = vsyncpa [#allocation3], 0
    %67 = vsyncpa [#allocation6], 0
    %68 = vsyncpa [#allocation9], 0
    %69 = vsyncpa [#allocation12], 0
    %70 = vsyncpa [#allocation15], 0
    %71 = vsyncpa [#allocation18], 0
    %72 = vsyncpa [#allocation21], 0
    %73 = vsyncpa [#allocation24], 0
    %74 = vsyncpa [#allocation4], 0
    // Predicated region
    $region2: #{cmpnn_forward.1} parent=1 // pred_check
      _
    $region3: #{cmpnn_forward.1} parent=1 // pred_check_branch
      %76 = sbr.rel (0) target = $region5
    $region4: #{cmpnn_forward.1} parent=1 // pred_region
      _
    $region5: #{cmpnn_forward.1} parent=1 // pred_fallthru
      _
    // Predicated region
    $region6: #{cmpnn_forward.1} parent=1 // pred_check
      _
    $region7: #{cmpnn_forward.1} parent=1 // pred_check_branch
      %78 = sbr.rel (0) target = $region9
    $region8: #{cmpnn_forward.1} parent=1 // pred_region
      _
    $region9: #{cmpnn_forward.1} parent=1 // pred_fallthru
      _
    // Predicated region
    $region10: #{cmpnn_forward.1} parent=1 // pred_check
      _
    $region11: #{cmpnn_forward.1} parent=1 // pred_check_branch
      %80 = sbr.rel (0) target = $region13
    $region12: #{cmpnn_forward.1} parent=1 // pred_region
      _
    $region13: #{cmpnn_forward.1} parent=1 // pred_fallthru
      _
    // Predicated region
    $region14: #{cmpnn_forward.1} parent=1 // pred_check
      _
    $region15: #{cmpnn_forward.1} parent=1 // pred_check_branch
      %82 = sbr.rel (0) target = $region17
    $region16: #{cmpnn_forward.1} parent=1 // pred_region
      _
    $region17: #{cmpnn_forward.1} parent=1 // pred_fallthru
      _
    // Predicated region
    $region18: #{cmpnn_forward.1} parent=1 // pred_check
      _
    $region19: #{cmpnn_forward.1} parent=1 // pred_check_branch
      %84 = sbr.rel (0) target = $region21
    $region20: #{cmpnn_forward.1} parent=1 // pred_region
      _
    $region21: #{cmpnn_forward.1} parent=1 // pred_fallthru
      _
    // Predicated region
    $region22: #{cmpnn_forward.1} parent=1 // pred_check
      _
    $region23: #{cmpnn_forward.1} parent=1 // pred_check_branch
      %86 = sbr.rel (0) target = $region25
    $region24: #{cmpnn_forward.1} parent=1 // pred_region
      _
    $region25: #{cmpnn_forward.1} parent=1 // pred_fallthru
      _
    // Predicated region
    $region26: #{cmpnn_forward.1} parent=1 // pred_check
      _
    $region27: #{cmpnn_forward.1} parent=1 // pred_check_branch
      %88 = sbr.rel (0) target = $region29
    $region28: #{cmpnn_forward.1} parent=1 // pred_region
      %90 = vsyncadd [#allocation3], 0
      %s92 = sshll.u32 %s13, 4
      %s93 = int_to_ptr.hbm [resolvable:$true] %s92
      %s94 = sshll.u32 [#allocation2], 4
      %s95 = int_to_ptr.vmem [resolvable:$true] %s94
      %97 = dma.hbm_to_vmem [thread:$0]  %s93, 32, %s95, [#allocation3]
    $region29: #{cmpnn_forward.1} parent=1 // pred_fallthru
      _
    // Predicated region
    $region30: #{cmpnn_forward.1} parent=1 // pred_check
      _
    $region31: #{cmpnn_forward.1} parent=1 // pred_check_branch
      %99 = sbr.rel (0) target = $region33
    $region32: #{cmpnn_forward.1} parent=1 // pred_region
      %101 = vsyncadd [#allocation6], 0
      %s103 = sshll.u32 %s15, 4
      %s104 = int_to_ptr.hbm [resolvable:$true] %s103
      %s105 = sshll.u32 [#allocation5], 4
      %s106 = int_to_ptr.vmem [resolvable:$true] %s105
      %108 = dma.hbm_to_vmem [thread:$0]  %s104, 32, %s106, [#allocation6]
    $region33: #{cmpnn_forward.1} parent=1 // pred_fallthru
      _
    // Predicated region
    $region34: #{cmpnn_forward.1} parent=1 // pred_check
      _
    $region35: #{cmpnn_forward.1} parent=1 // pred_check_branch
      %110 = sbr.rel (0) target = $region37
    $region36: #{cmpnn_forward.1} parent=1 // pred_region
      _
    $region37: #{cmpnn_forward.1} parent=1 // pred_fallthru
      _
    // Predicated region
    $region38: #{cmpnn_forward.1} parent=1 // pred_check
      _
    $region39: #{cmpnn_forward.1} parent=1 // pred_check_branch
      %112 = sbr.rel (0) target = $region41
    $region40: #{cmpnn_forward.1} parent=1 // pred_region
      %114 = vsyncadd [#allocation6], 0
      %s115 = sshll.u32 %s19, 4
      %s116 = int_to_ptr.hbm [resolvable:$true] %s115
      %s117 = sshll.u32 [#allocation7], 4
      %s118 = int_to_ptr.vmem [resolvable:$true] %s117
      %123 = dma.hbm_to_vmem [thread:$0]  %s116, 256, %s118, [#allocation6], 128, 128, 8
    $region41: #{cmpnn_forward.1} parent=1 // pred_fallthru
      _
    // Predicated region
    $region42: #{cmpnn_forward.1} parent=1 // pred_check
      _
    $region43: #{cmpnn_forward.1} parent=1 // pred_check_branch
      %125 = sbr.rel (0) target = $region45
    $region44: #{cmpnn_forward.1} parent=1 // pred_region
      %127 = vsyncadd [#allocation9], 0
      %s129 = sshll.u32 %s21, 4
      %s130 = int_to_ptr.hbm [resolvable:$true] %s129
      %s131 = sshll.u32 [#allocation8], 4
      %s132 = int_to_ptr.vmem [resolvable:$true] %s131
      %134 = dma.hbm_to_vmem [thread:$0]  %s130, 16, %s132, [#allocation9]
    $region45: #{cmpnn_forward.1} parent=1 // pred_fallthru
      _
    // Predicated region
    $region46: #{cmpnn_forward.1} parent=1 // pred_check
      _
    $region47: #{cmpnn_forward.1} parent=1 // pred_check_branch
      %136 = sbr.rel (0) target = $region49
    $region48: #{cmpnn_forward.1} parent=1 // pred_region
      _
    $region49: #{cmpnn_forward.1} parent=1 // pred_fallthru
      _
    // Predicated region
    $region50: #{cmpnn_forward.1} parent=1 // pred_check
      _
    $region51: #{cmpnn_forward.1} parent=1 // pred_check_branch
      %138 = sbr.rel (0) target = $region53
    $region52: #{cmpnn_forward.1} parent=1 // pred_region
      %140 = vsyncadd [#allocation9], 0
      %s142 = sshll.u32 %s25, 4
      %s143 = int_to_ptr.hbm [resolvable:$true] %s142
      %s144 = sshll.u32 [#allocation10], 4
      %s145 = int_to_ptr.vmem [resolvable:$true] %s144
      %147 = dma.hbm_to_vmem [thread:$0]  %s143, 16, %s145, [#allocation9]
    $region53: #{cmpnn_forward.1} parent=1 // pred_fallthru
      _
    // Predicated region
    $region54: #{cmpnn_forward.1} parent=1 // pred_check
      _
    $region55: #{cmpnn_forward.1} parent=1 // pred_check_branch
      %149 = sbr.rel (0) target = $region57
    $region56: #{cmpnn_forward.1} parent=1 // pred_region
      _
    $region57: #{cmpnn_forward.1} parent=1 // pred_fallthru
      _
    // Predicated region
    $region58: #{cmpnn_forward.1} parent=1 // pred_check
      _
    $region59: #{cmpnn_forward.1} parent=1 // pred_check_branch
      %151 = sbr.rel (0) target = $region61
    $region60: #{cmpnn_forward.1} parent=1 // pred_region
      %153 = vsyncadd [#allocation12], 0
      %s154 = sshll.u32 %s29, 4
      %s155 = int_to_ptr.hbm [resolvable:$true] %s154
      %s156 = sshll.u32 [#allocation11], 4
      %s157 = int_to_ptr.vmem [resolvable:$true] %s156
      %162 = dma.hbm_to_vmem [thread:$0]  %s155, 32, %s157, [#allocation12], 16, 16, 1
    $region61: #{cmpnn_forward.1} parent=1 // pred_fallthru
      _
    // Predicated region
    $region62: #{cmpnn_forward.1} parent=1 // pred_check
      _
    $region63: #{cmpnn_forward.1} parent=1 // pred_check_branch
      %164 = sbr.rel (0) target = $region65
    $region64: #{cmpnn_forward.1} parent=1 // pred_region
      _
    $region65: #{cmpnn_forward.1} parent=1 // pred_fallthru
      _
    // Predicated region
    $region66: #{cmpnn_forward.1} parent=1 // pred_check
      _
    $region67: #{cmpnn_forward.1} parent=1 // pred_check_branch
      %166 = sbr.rel (0) target = $region69
    $region68: #{cmpnn_forward.1} parent=1 // pred_region
      %168 = vsyncadd [#allocation12], 0
      %s170 = sshll.u32 %s33, 4
      %s171 = int_to_ptr.hbm [resolvable:$true] %s170
      %s172 = sshll.u32 [#allocation13], 4
      %s173 = int_to_ptr.vmem [resolvable:$true] %s172
      %175 = dma.hbm_to_vmem [thread:$0]  %s171, 16, %s173, [#allocation12]
    $region69: #{cmpnn_forward.1} parent=1 // pred_fallthru
      _
    // Predicated region
    $region70: #{cmpnn_forward.1} parent=1 // pred_check
      _
    $region71: #{cmpnn_forward.1} parent=1 // pred_check_branch
      %177 = sbr.rel (0) target = $region73
    $region72: #{cmpnn_forward.1} parent=1 // pred_region
      %179 = vsyncadd [#allocation15], 0
      %s181 = sshll.u32 %s35, 4
      %s182 = int_to_ptr.hbm [resolvable:$true] %s181
      %s183 = sshll.u32 [#allocation14], 4
      %s184 = int_to_ptr.vmem [resolvable:$true] %s183
      %186 = dma.hbm_to_vmem [thread:$0]  %s182, 16, %s184, [#allocation15]
    $region73: #{cmpnn_forward.1} parent=1 // pred_fallthru
      _
    // Predicated region
    $region74: #{cmpnn_forward.1} parent=1 // pred_check
      _
    $region75: #{cmpnn_forward.1} parent=1 // pred_check_branch
      %188 = sbr.rel (0) target = $region77
    $region76: #{cmpnn_forward.1} parent=1 // pred_region
      _
    $region77: #{cmpnn_forward.1} parent=1 // pred_fallthru
      _
    // Predicated region
    $region78: #{cmpnn_forward.1} parent=1 // pred_check
      _
    $region79: #{cmpnn_forward.1} parent=1 // pred_check_branch
      %190 = sbr.rel (0) target = $region81
    $region80: #{cmpnn_forward.1} parent=1 // pred_region
      %192 = vsyncadd [#allocation15], 0
      %s194 = sshll.u32 %s39, 4
      %s195 = int_to_ptr.hbm [resolvable:$true] %s194
      %s196 = sshll.u32 [#allocation16], 4
      %s197 = int_to_ptr.vmem [resolvable:$true] %s196
      %199 = dma.hbm_to_vmem [thread:$0]  %s195, 16, %s197, [#allocation15]
    $region81: #{cmpnn_forward.1} parent=1 // pred_fallthru
      _
    // Predicated region
    $region82: #{cmpnn_forward.1} parent=1 // pred_check
      _
    $region83: #{cmpnn_forward.1} parent=1 // pred_check_branch
      %201 = sbr.rel (0) target = $region85
    $region84: #{cmpnn_forward.1} parent=1 // pred_region
      _
    $region85: #{cmpnn_forward.1} parent=1 // pred_fallthru
      _
    // Predicated region
    $region86: #{cmpnn_forward.1} parent=1 // pred_check
      _
    $region87: #{cmpnn_forward.1} parent=1 // pred_check_branch
      %203 = sbr.rel (0) target = $region89
    $region88: #{cmpnn_forward.1} parent=1 // pred_region
      %205 = vsyncadd [#allocation18], 0
      %s207 = sshll.u32 %s43, 4
      %s208 = int_to_ptr.hbm [resolvable:$true] %s207
      %s209 = sshll.u32 [#allocation17], 4
      %s210 = int_to_ptr.vmem [resolvable:$true] %s209
      %212 = dma.hbm_to_vmem [thread:$0]  %s208, 16, %s210, [#allocation18]
    $region89: #{cmpnn_forward.1} parent=1 // pred_fallthru
      _
    // Predicated region
    $region90: #{cmpnn_forward.1} parent=1 // pred_check
      _
    $region91: #{cmpnn_forward.1} parent=1 // pred_check_branch
      %214 = sbr.rel (0) target = $region93
    $region92: #{cmpnn_forward.1} parent=1 // pred_region
      _
    $region93: #{cmpnn_forward.1} parent=1 // pred_fallthru
      _
    // Predicated region
    $region94: #{cmpnn_forward.1} parent=1 // pred_check
      _
    $region95: #{cmpnn_forward.1} parent=1 // pred_check_branch
      %216 = sbr.rel (0) target = $region97
    $region96: #{cmpnn_forward.1} parent=1 // pred_region
      %218 = vsyncadd [#allocation18], 0
      %s220 = sshll.u32 %s47, 4
      %s221 = int_to_ptr.hbm [resolvable:$true] %s220
      %s222 = sshll.u32 [#allocation19], 4
      %s223 = int_to_ptr.vmem [resolvable:$true] %s222
      %225 = dma.hbm_to_vmem [thread:$0]  %s221, 16, %s223, [#allocation18]
    $region97: #{cmpnn_forward.1} parent=1 // pred_fallthru
      _
    // Predicated region
    $region98: #{cmpnn_forward.1} parent=1 // pred_check
      _
    $region99: #{cmpnn_forward.1} parent=1 // pred_check_branch
      %227 = sbr.rel (0) target = $region101
    $region100: #{cmpnn_forward.1} parent=1 // pred_region
      _
    $region101: #{cmpnn_forward.1} parent=1 // pred_fallthru
      _
    // Predicated region
    $region102: #{cmpnn_forward.1} parent=1 // pred_check
      _
    $region103: #{cmpnn_forward.1} parent=1 // pred_check_branch
      %229 = sbr.rel (0) target = $region105
    $region104: #{cmpnn_forward.1} parent=1 // pred_region
      %231 = vsyncadd [#allocation21], 0
      %s233 = sshll.u32 %s51, 4
      %s234 = int_to_ptr.hbm [resolvable:$true] %s233
      %s235 = sshll.u32 [#allocation20], 4
      %s236 = int_to_ptr.vmem [resolvable:$true] %s235
      %238 = dma.hbm_to_vmem [thread:$0]  %s234, 16, %s236, [#allocation21]
    $region105: #{cmpnn_forward.1} parent=1 // pred_fallthru
      _
    // Predicated region
    $region106: #{cmpnn_forward.1} parent=1 // pred_check
      _
    $region107: #{cmpnn_forward.1} parent=1 // pred_check_branch
      %240 = sbr.rel (0) target = $region109
    $region108: #{cmpnn_forward.1} parent=1 // pred_region
      _
    $region109: #{cmpnn_forward.1} parent=1 // pred_fallthru
      _
    // Predicated region
    $region110: #{cmpnn_forward.1} parent=1 // pred_check
      _
    $region111: #{cmpnn_forward.1} parent=1 // pred_check_branch
      %242 = sbr.rel (0) target = $region113
    $region112: #{cmpnn_forward.1} parent=1 // pred_region
      %244 = vsyncadd [#allocation21], 0
      %s246 = sshll.u32 %s55, 4
      %s247 = int_to_ptr.hbm [resolvable:$true] %s246
      %s248 = sshll.u32 [#allocation22], 4
      %s249 = int_to_ptr.vmem [resolvable:$true] %s248
      %251 = dma.hbm_to_vmem [thread:$0]  %s247, 16, %s249, [#allocation21]
    $region113: #{cmpnn_forward.1} parent=1 // pred_fallthru
      _
    // Predicated region
    $region114: #{cmpnn_forward.1} parent=1 // pred_check
      _
    $region115: #{cmpnn_forward.1} parent=1 // pred_check_branch
      %253 = sbr.rel (0) target = $region117
    $region116: #{cmpnn_forward.1} parent=1 // pred_region
      _
    $region117: #{cmpnn_forward.1} parent=1 // pred_fallthru
      _
    // Predicated region
    $region118: #{cmpnn_forward.1} parent=1 // pred_check
      _
    $region119: #{cmpnn_forward.1} parent=1 // pred_check_branch
      %255 = sbr.rel (0) target = $region121
    $region120: #{cmpnn_forward.1} parent=1 // pred_region
      %257 = vsyncadd [#allocation24], 0
      %s259 = sshll.u32 %s59, 4
      %s260 = int_to_ptr.hbm [resolvable:$true] %s259
      %s261 = sshll.u32 [#allocation23], 4
      %s262 = int_to_ptr.vmem [resolvable:$true] %s261
      %264 = dma.hbm_to_vmem [thread:$0]  %s260, 16, %s262, [#allocation24]
    $region121: #{cmpnn_forward.1} parent=1 // pred_fallthru
      _
    // Predicated region
    $region122: #{cmpnn_forward.1} parent=1 // pred_check
      _
    $region123: #{cmpnn_forward.1} parent=1 // pred_check_branch
      %266 = sbr.rel (0) target = $region125
    $region124: #{cmpnn_forward.1} parent=1 // pred_region
      %268 = dma.done [#allocation3], 32
    $region125: #{cmpnn_forward.1} parent=1 // pred_fallthru
      _
    // Predicated region
    $region126: #{cmpnn_forward.1} parent=1 // pred_check
      _
    $region127: #{cmpnn_forward.1} parent=1 // pred_check_branch
      %270 = sbr.rel (0) target = $region129
    $region128: #{cmpnn_forward.1} parent=1 // pred_region
      %272 = dma.done [#allocation6], 32
    $region129: #{cmpnn_forward.1} parent=1 // pred_fallthru
      _
    // Predicated region
    $region130: #{cmpnn_forward.1} parent=1 // pred_check
      _
    $region131: #{cmpnn_forward.1} parent=1 // pred_check_branch
      %274 = sbr.rel (0) target = $region133
    $region132: #{cmpnn_forward.1} parent=1 // pred_region
      %276 = dma.done [#allocation6], 256
    $region133: #{cmpnn_forward.1} parent=1 // pred_fallthru
      _
    // Predicated region
    $region134: #{cmpnn_forward.1} parent=1 // pred_check
      _
    $region135: #{cmpnn_forward.1} parent=1 // pred_check_branch
      %278 = sbr.rel (0) target = $region137
    $region136: #{cmpnn_forward.1} parent=1 // pred_region
      %280 = dma.done [#allocation9], 16
    $region137: #{cmpnn_forward.1} parent=1 // pred_fallthru
      _
    // Predicated region
    $region138: #{cmpnn_forward.1} parent=1 // pred_check
      _
    $region139: #{cmpnn_forward.1} parent=1 // pred_check_branch
      %282 = sbr.rel (0) target = $region141
    $region140: #{cmpnn_forward.1} parent=1 // pred_region
      %284 = dma.done [#allocation9], 16
    $region141: #{cmpnn_forward.1} parent=1 // pred_fallthru
      _
    // Predicated region
    $region142: #{cmpnn_forward.1} parent=1 // pred_check
      _
    $region143: #{cmpnn_forward.1} parent=1 // pred_check_branch
      %286 = sbr.rel (0) target = $region145
    $region144: #{cmpnn_forward.1} parent=1 // pred_region
      %288 = dma.done [#allocation12], 32
    $region145: #{cmpnn_forward.1} parent=1 // pred_fallthru
      _
    // Predicated region
    $region146: #{cmpnn_forward.1} parent=1 // pred_check
      _
    $region147: #{cmpnn_forward.1} parent=1 // pred_check_branch
      %290 = sbr.rel (0) target = $region149
    $region148: #{cmpnn_forward.1} parent=1 // pred_region
      %292 = dma.done [#allocation12], 16
    $region149: #{cmpnn_forward.1} parent=1 // pred_fallthru
      _
    // Predicated region
    $region150: #{cmpnn_forward.1} parent=1 // pred_check
      _
    $region151: #{cmpnn_forward.1} parent=1 // pred_check_branch
      %294 = sbr.rel (0) target = $region153
    $region152: #{cmpnn_forward.1} parent=1 // pred_region
      %296 = dma.done [#allocation15], 16
    $region153: #{cmpnn_forward.1} parent=1 // pred_fallthru
      _
    // Predicated region
    $region154: #{cmpnn_forward.1} parent=1 // pred_check
      _
    $region155: #{cmpnn_forward.1} parent=1 // pred_check_branch
      %298 = sbr.rel (0) target = $region157
    $region156: #{cmpnn_forward.1} parent=1 // pred_region
      %300 = dma.done [#allocation15], 16
    $region157: #{cmpnn_forward.1} parent=1 // pred_fallthru
      _
    // Predicated region
    $region158: #{cmpnn_forward.1} parent=1 // pred_check
      _
    $region159: #{cmpnn_forward.1} parent=1 // pred_check_branch
      %302 = sbr.rel (0) target = $region161
    $region160: #{cmpnn_forward.1} parent=1 // pred_region
      %304 = dma.done [#allocation18], 16
    $region161: #{cmpnn_forward.1} parent=1 // pred_fallthru
      _
    // Predicated region
    $region162: #{cmpnn_forward.1} parent=1 // pred_check
      _
    $region163: #{cmpnn_forward.1} parent=1 // pred_check_branch
      %306 = sbr.rel (0) target = $region165
    $region164: #{cmpnn_forward.1} parent=1 // pred_region
      %308 = dma.done [#allocation18], 16
    $region165: #{cmpnn_forward.1} parent=1 // pred_fallthru
      _
    // Predicated region
    $region166: #{cmpnn_forward.1} parent=1 // pred_check
      _
    $region167: #{cmpnn_forward.1} parent=1 // pred_check_branch
      %310 = sbr.rel (0) target = $region169
    $region168: #{cmpnn_forward.1} parent=1 // pred_region
      %312 = dma.done [#allocation21], 16
    $region169: #{cmpnn_forward.1} parent=1 // pred_fallthru
      _
    // Predicated region
    $region170: #{cmpnn_forward.1} parent=1 // pred_check
      _
    $region171: #{cmpnn_forward.1} parent=1 // pred_check_branch
      %314 = sbr.rel (0) target = $region173
    $region172: #{cmpnn_forward.1} parent=1 // pred_region
      %316 = dma.done [#allocation21], 16
    $region173: #{cmpnn_forward.1} parent=1 // pred_fallthru
      _
    // Predicated region
    $region174: #{cmpnn_forward.1} parent=1 // pred_check
      _
    $region175: #{cmpnn_forward.1} parent=1 // pred_check_branch
      %318 = sbr.rel (0) target = $region177
    $region176: #{cmpnn_forward.1} parent=1 // pred_region
      %320 = dma.done [#allocation24], 16
    $region177: #{cmpnn_forward.1} parent=1 // pred_fallthru
      _
    %v321 = vld [vmem:[%s1] sm:$0xff]
    %v322 = vld [vmem:[%s1 + $0x8] sm:$0xf]
    %v323 = vld [vmem:[#allocation7] sm:$0xff]
    %v324 = vld [vmem:[#allocation7 + $0x8] sm:$0x3]
    %v325 = vld [vmem:[#allocation8] sm:$0x1]
    %v327 = vperm.slane %v325, 0
    %vm329 = vcmask 80896
    %v331 = vsel %vm329, %v321, 0
    %v334 = vsel %vm329, %v322, 0
    %vm336 = vcmask 1041408
    %v338 = vsel %vm336, %v324, 0
    %340 = vmatpush.msra.mxu0 0.0
    %341 = vmatpush.msra.mxu0 0.0
    %342 = vmatpush.msra.mxu0 0.0
    %343 = vmatpush.msra.mxu0 0.0
    %344 = vmatpush.msra.mxu0 0.0
    %345 = vmatpush.msra.mxu0 0.0
    %346 = vmatpush.msra.mxu0 0.0
    %347 = vmatpush.msra.mxu0 0.0
    %348 = vmatpush.msra.mxu0 0.0
    %349 = vmatpush.msra.mxu0 0.0
    %350 = vmatpush.msra.mxu0 0.0
    %351 = vmatpush.msra.mxu0 0.0
    %352 = vmatpush.msra.mxu0 0.0
    %353 = vmatpush.msra.mxu0 0.0
    %354 = vmatpush.msra.mxu0 %v338
    %355 = vmatpush.msra.mxu0 %v323
    %356 = vmatmul.f32.gmra.mxu0 %v331
    %v357 = vpop.f32.mrf.mxu0
    %v358 = vadd.f32 %v327, %v357
    %359 = vmatmul.f32.gmra.mxu0 %v334
    %v360 = vpop.f32.mrf.mxu0
    %v361 = vadd.f32 %v327, %v360
    %362 = vdwg.mxu0
    %v363 = vmax.f32 %v358, 0.0
    %v364 = vmax.f32 %v361, 0.0
    %v365 = vld [vmem:[%s3] sm:$0xff]
    %v366 = vld [vmem:[%s3 + $0x8] sm:$0xff]
    %v367 = vld [vmem:[%s3 + $0x10] sm:$0xff]
    %v368 = vld [vmem:[%s23] sm:$0x3f]
    %v369 = vld [vmem:[#allocation10] sm:$0x1]
    %v371 = vperm.slane %v369, 0
    %vm373 = vcmask 48128
    %v375 = vsel %vm373, %v365, 0
    %v378 = vsel %vm373, %v366, 0
    %v381 = vsel %vm373, %v367, 0
    %vm383 = vcmask 1045504
    %v385 = vsel %vm383, %v368, 0
    %387 = vmatpush.msra.mxu0 0.0
    %388 = vmatpush.msra.mxu0 0.0
    %389 = vmatpush.msra.mxu0 0.0
    %390 = vmatpush.msra.mxu0 0.0
    %391 = vmatpush.msra.mxu0 0.0
    %392 = vmatpush.msra.mxu0 0.0
    %393 = vmatpush.msra.mxu0 0.0
    %394 = vmatpush.msra.mxu0 0.0
    %395 = vmatpush.msra.mxu0 0.0
    %396 = vmatpush.msra.mxu0 0.0
    %397 = vmatpush.msra.mxu0 0.0
    %398 = vmatpush.msra.mxu0 0.0
    %399 = vmatpush.msra.mxu0 0.0
    %400 = vmatpush.msra.mxu0 0.0
    %401 = vmatpush.msra.mxu0 0.0
    %402 = vmatpush.msra.mxu0 %v385
    %403 = vmatmul.f32.gmra.mxu0 %v375
    %v404 = vpop.f32.mrf.mxu0
    %v405 = vadd.f32 %v371, %v404
    %406 = vmatmul.f32.gmra.mxu0 %v378
    %v407 = vpop.f32.mrf.mxu0
    %v408 = vadd.f32 %v371, %v407
    %409 = vmatmul.f32.gmra.mxu0 %v381
    %v410 = vpop.f32.mrf.mxu0
    %v411 = vadd.f32 %v371, %v410
    %412 = vdwg.mxu0
    %v413 = vmax.f32 %v405, 0.0
    %v414 = vmax.f32 %v408, 0.0
    %v415 = vmax.f32 %v411, 0.0
    %v416 = vld [vmem:[%s5] sm:$0xff]
    %v417 = vld [vmem:[%s5 + $0x8] sm:$0xf]
    %v418 = vld [vmem:[%s7] sm:$0xff]
    %v419 = vld [vmem:[%s7 + $0x8] sm:$0xf]
    %v420 = vld [vmem:[%s9] sm:$0xff]
    %v421 = vld [vmem:[%s9 + $0x8] sm:$0xff]
    %v422 = vld [vmem:[%s9 + $0x10] sm:$0xff]
    %vm423 = vcmask 195584
    %v425 = vsel %vm423, %v416, 0
    %v428 = vsel %vm423, %v417, 0
    %430 = vmatpush.msra.mxu0 0.0
    %431 = vmatpush.msra.mxu0 0.0
    %432 = vmatpush.msra.mxu0 0.0
    %433 = vmatpush.msra.mxu0 0.0
    %434 = vmatpush.msra.mxu0 0.0
    %435 = vmatpush.msra.mxu0 0.0
    %436 = vmatpush.msra.mxu0 0.0
    %437 = vmatpush.msra.mxu0 0.0
    %438 = vmatpush.msra.mxu0 0.0
    %439 = vmatpush.msra.mxu0 0.0
    %440 = vmatpush.msra.mxu0 0.0
    %441 = vmatpush.msra.mxu0 0.0
    %442 = vmatpush.msra.mxu0 0.0
    %443 = vmatpush.msra.mxu0 %v415
    %444 = vmatpush.msra.mxu0 %v414
    %445 = vmatpush.msra.mxu0 %v413
    %446 = vmatmul.f32.gmra.mxu0 %v425
    %v447 = vpop.f32.mrf.mxu0
    %v448 = vadd.f32 0.0, %v447
    %449 = vmatmul.f32.gmra.mxu0 %v428
    %v450 = vpop.f32.mrf.mxu0
    %v451 = vadd.f32 0.0, %v450
    %452 = vdwg.mxu0
    %v453 = vperm.slane %v418, 0
    %v454 = vlaneseq
    %v455 = vshrl.u32 %v454, 7
    %457 = vset.pattern.permute.xlu0 %v455
    %458 = vperm.xlu0 %457, %v453
    %v459 = vpop.permute.xlu0 %458
    %v460 = vlaneseq
    %v461 = vshrl.u32 %v460, 7
    %v462 = vadd.s32 %v461, 8
    %463 = vset.pattern.permute.xlu0 %v462
    %464 = vperm.xlu0 %463, %v453
    %v465 = vpop.permute.xlu0 %464
    %v466 = vlaneseq
    %v467 = vshrl.u32 %v466, 7
    %v468 = vadd.s32 %v467, 16
    %469 = vset.pattern.permute.xlu0 %v468
    %470 = vperm.xlu0 %469, %v453
    %v471 = vpop.permute.xlu0 %470
    %v472 = vperm.slane %v418, 1
    %v473 = vlaneseq
    %v474 = vshrl.u32 %v473, 7
    %476 = vset.pattern.permute.xlu0 %v474
    %477 = vperm.xlu0 %476, %v472
    %v478 = vpop.permute.xlu0 %477
    %v479 = vlaneseq
    %v480 = vshrl.u32 %v479, 7
    %v481 = vadd.s32 %v480, 8
    %482 = vset.pattern.permute.xlu0 %v481
    %483 = vperm.xlu0 %482, %v472
    %v484 = vpop.permute.xlu0 %483
    %v485 = vlaneseq
    %v486 = vshrl.u32 %v485, 7
    %v487 = vadd.s32 %v486, 16
    %488 = vset.pattern.permute.xlu0 %v487
    %489 = vperm.xlu0 %488, %v472
    %v490 = vpop.permute.xlu0 %489
    %v491 = vperm.slane %v418, 2
    %v492 = vlaneseq
    %v493 = vshrl.u32 %v492, 7
    %495 = vset.pattern.permute.xlu0 %v493
    %496 = vperm.xlu0 %495, %v491
    %v497 = vpop.permute.xlu0 %496
    %v498 = vlaneseq
    %v499 = vshrl.u32 %v498, 7
    %v500 = vadd.s32 %v499, 8
    %501 = vset.pattern.permute.xlu0 %v500
    %502 = vperm.xlu0 %501, %v491
    %v503 = vpop.permute.xlu0 %502
    %v504 = vlaneseq
    %v505 = vshrl.u32 %v504, 7
    %v506 = vadd.s32 %v505, 16
    %507 = vset.pattern.permute.xlu0 %v506
    %508 = vperm.xlu0 %507, %v491
    %v509 = vpop.permute.xlu0 %508
    %v510 = vperm.slane %v418, 3
    %v511 = vlaneseq
    %v512 = vshrl.u32 %v511, 7
    %514 = vset.pattern.permute.xlu0 %v512
    %515 = vperm.xlu0 %514, %v510
    %v516 = vpop.permute.xlu0 %515
    %v517 = vlaneseq
    %v518 = vshrl.u32 %v517, 7
    %v519 = vadd.s32 %v518, 8
    %520 = vset.pattern.permute.xlu0 %v519
    %521 = vperm.xlu0 %520, %v510
    %v522 = vpop.permute.xlu0 %521
    %v523 = vlaneseq
    %v524 = vshrl.u32 %v523, 7
    %v525 = vadd.s32 %v524, 16
    %526 = vset.pattern.permute.xlu0 %v525
    %527 = vperm.xlu0 %526, %v510
    %v528 = vpop.permute.xlu0 %527
    %v529 = vperm.slane %v418, 4
    %v530 = vlaneseq
    %v531 = vshrl.u32 %v530, 7
    %533 = vset.pattern.permute.xlu0 %v531
    %534 = vperm.xlu0 %533, %v529
    %v535 = vpop.permute.xlu0 %534
    %v536 = vlaneseq
    %v537 = vshrl.u32 %v536, 7
    %v538 = vadd.s32 %v537, 8
    %539 = vset.pattern.permute.xlu0 %v538
    %540 = vperm.xlu0 %539, %v529
    %v541 = vpop.permute.xlu0 %540
    %v542 = vlaneseq
    %v543 = vshrl.u32 %v542, 7
    %v544 = vadd.s32 %v543, 16
    %545 = vset.pattern.permute.xlu0 %v544
    %546 = vperm.xlu0 %545, %v529
    %v547 = vpop.permute.xlu0 %546
    %v548 = vperm.slane %v418, 5
    %v549 = vlaneseq
    %v550 = vshrl.u32 %v549, 7
    %552 = vset.pattern.permute.xlu0 %v550
    %553 = vperm.xlu0 %552, %v548
    %v554 = vpop.permute.xlu0 %553
    %v555 = vlaneseq
    %v556 = vshrl.u32 %v555, 7
    %v557 = vadd.s32 %v556, 8
    %558 = vset.pattern.permute.xlu0 %v557
    %559 = vperm.xlu0 %558, %v548
    %v560 = vpop.permute.xlu0 %559
    %v561 = vlaneseq
    %v562 = vshrl.u32 %v561, 7
    %v563 = vadd.s32 %v562, 16
    %564 = vset.pattern.permute.xlu0 %v563
    %565 = vperm.xlu0 %564, %v548
    %v566 = vpop.permute.xlu0 %565
    %v567 = vperm.slane %v418, 6
    %v568 = vlaneseq
    %v569 = vshrl.u32 %v568, 7
    %571 = vset.pattern.permute.xlu0 %v569
    %572 = vperm.xlu0 %571, %v567
    %v573 = vpop.permute.xlu0 %572
    %v574 = vlaneseq
    %v575 = vshrl.u32 %v574, 7
    %v576 = vadd.s32 %v575, 8
    %577 = vset.pattern.permute.xlu0 %v576
    %578 = vperm.xlu0 %577, %v567
    %v579 = vpop.permute.xlu0 %578
    %v580 = vlaneseq
    %v581 = vshrl.u32 %v580, 7
    %v582 = vadd.s32 %v581, 16
    %583 = vset.pattern.permute.xlu0 %v582
    %584 = vperm.xlu0 %583, %v567
    %v585 = vpop.permute.xlu0 %584
    %v586 = vperm.slane %v418, 7
    %v587 = vlaneseq
    %v588 = vshrl.u32 %v587, 7
    %590 = vset.pattern.permute.xlu0 %v588
    %591 = vperm.xlu0 %590, %v586
    %v592 = vpop.permute.xlu0 %591
    %v593 = vlaneseq
    %v594 = vshrl.u32 %v593, 7
    %v595 = vadd.s32 %v594, 8
    %596 = vset.pattern.permute.xlu0 %v595
    %597 = vperm.xlu0 %596, %v586
    %v598 = vpop.permute.xlu0 %597
    %v599 = vlaneseq
    %v600 = vshrl.u32 %v599, 7
    %v601 = vadd.s32 %v600, 16
    %602 = vset.pattern.permute.xlu0 %v601
    %603 = vperm.xlu0 %602, %v586
    %v604 = vpop.permute.xlu0 %603
    %v605 = vperm.slane %v419, 0
    %v606 = vlaneseq
    %v607 = vshrl.u32 %v606, 7
    %609 = vset.pattern.permute.xlu0 %v607
    %610 = vperm.xlu0 %609, %v605
    %v611 = vpop.permute.xlu0 %610
    %v612 = vlaneseq
    %v613 = vshrl.u32 %v612, 7
    %v614 = vadd.s32 %v613, 8
    %615 = vset.pattern.permute.xlu0 %v614
    %616 = vperm.xlu0 %615, %v605
    %v617 = vpop.permute.xlu0 %616
    %v618 = vlaneseq
    %v619 = vshrl.u32 %v618, 7
    %v620 = vadd.s32 %v619, 16
    %621 = vset.pattern.permute.xlu0 %v620
    %622 = vperm.xlu0 %621, %v605
    %v623 = vpop.permute.xlu0 %622
    %v624 = vperm.slane %v419, 1
    %v625 = vlaneseq
    %v626 = vshrl.u32 %v625, 7
    %628 = vset.pattern.permute.xlu0 %v626
    %629 = vperm.xlu0 %628, %v624
    %v630 = vpop.permute.xlu0 %629
    %v631 = vlaneseq
    %v632 = vshrl.u32 %v631, 7
    %v633 = vadd.s32 %v632, 8
    %634 = vset.pattern.permute.xlu0 %v633
    %635 = vperm.xlu0 %634, %v624
    %v636 = vpop.permute.xlu0 %635
    %v637 = vlaneseq
    %v638 = vshrl.u32 %v637, 7
    %v639 = vadd.s32 %v638, 16
    %640 = vset.pattern.permute.xlu0 %v639
    %641 = vperm.xlu0 %640, %v624
    %v642 = vpop.permute.xlu0 %641
    %v643 = vperm.slane %v419, 2
    %v644 = vlaneseq
    %v645 = vshrl.u32 %v644, 7
    %647 = vset.pattern.permute.xlu0 %v645
    %648 = vperm.xlu0 %647, %v643
    %v649 = vpop.permute.xlu0 %648
    %v650 = vlaneseq
    %v651 = vshrl.u32 %v650, 7
    %v652 = vadd.s32 %v651, 8
    %653 = vset.pattern.permute.xlu0 %v652
    %654 = vperm.xlu0 %653, %v643
    %v655 = vpop.permute.xlu0 %654
    %v656 = vlaneseq
    %v657 = vshrl.u32 %v656, 7
    %v658 = vadd.s32 %v657, 16
    %659 = vset.pattern.permute.xlu0 %v658
    %660 = vperm.xlu0 %659, %v643
    %v661 = vpop.permute.xlu0 %660
    %v662 = vperm.slane %v419, 3
    %v663 = vlaneseq
    %v664 = vshrl.u32 %v663, 7
    %666 = vset.pattern.permute.xlu0 %v664
    %667 = vperm.xlu0 %666, %v662
    %v668 = vpop.permute.xlu0 %667
    %v669 = vlaneseq
    %v670 = vshrl.u32 %v669, 7
    %v671 = vadd.s32 %v670, 8
    %672 = vset.pattern.permute.xlu0 %v671
    %673 = vperm.xlu0 %672, %v662
    %v674 = vpop.permute.xlu0 %673
    %v675 = vlaneseq
    %v676 = vshrl.u32 %v675, 7
    %v677 = vadd.s32 %v676, 16
    %678 = vset.pattern.permute.xlu0 %v677
    %679 = vperm.xlu0 %678, %v662
    %v680 = vpop.permute.xlu0 %679
    %v681 = vadd.f32 %v413, %v459
    %v682 = vadd.f32 %v414, %v465
    %v683 = vadd.f32 %v415, %v471
    %v684 = vadd.f32 %v413, %v478
    %v685 = vadd.f32 %v414, %v484
    %v686 = vadd.f32 %v415, %v490
    %v687 = vadd.f32 %v413, %v497
    %v688 = vadd.f32 %v414, %v503
    %v689 = vadd.f32 %v415, %v509
    %v690 = vadd.f32 %v413, %v516
    %v691 = vadd.f32 %v414, %v522
    %v692 = vadd.f32 %v415, %v528
    %v693 = vadd.f32 %v413, %v535
    %v694 = vadd.f32 %v414, %v541
    %v695 = vadd.f32 %v415, %v547
    %v696 = vadd.f32 %v413, %v554
    %v697 = vadd.f32 %v414, %v560
    %v698 = vadd.f32 %v415, %v566
    %v699 = vadd.f32 %v413, %v573
    %v700 = vadd.f32 %v414, %v579
    %v701 = vadd.f32 %v415, %v585
    %v702 = vadd.f32 %v413, %v592
    %v703 = vadd.f32 %v414, %v598
    %v704 = vadd.f32 %v415, %v604
    %v705 = vadd.f32 %v413, %v611
    %v706 = vadd.f32 %v414, %v617
    %v707 = vadd.f32 %v415, %v623
    %v708 = vadd.f32 %v413, %v630
    %v709 = vadd.f32 %v414, %v636
    %v710 = vadd.f32 %v415, %v642
    %v711 = vadd.f32 %v413, %v649
    %v712 = vadd.f32 %v414, %v655
    %v713 = vadd.f32 %v415, %v661
    %v714 = vadd.f32 %v413, %v668
    %v715 = vadd.f32 %v414, %v674
    %v716 = vadd.f32 %v415, %v680
    %vm717 = vcmask 261120
    %v718 = vsel %vm717, %v681, -inf
    %v719 = vsel %vm717, %v682, -inf
    %v720 = vmax.f32 %v718, %v719
    %v721 = vsel %vm717, %v683, -inf
    %v722 = vmax.f32 %v720, %v721
    %v723 = vrot.slane %v722, 4
    %v724 = vmax.f32 %v722, %v723
    %v725 = vrot.slane %v724, 2
    %v726 = vmax.f32 %v724, %v725
    %v727 = vrot.slane %v726, 1
    %v728 = vmax.f32 %v726, %v727
    %v729 = vsel %vm717, %v684, -inf
    %v730 = vsel %vm717, %v685, -inf
    %v731 = vmax.f32 %v729, %v730
    %v732 = vsel %vm717, %v686, -inf
    %v733 = vmax.f32 %v731, %v732
    %v734 = vrot.slane %v733, 4
    %v735 = vmax.f32 %v733, %v734
    %v736 = vrot.slane %v735, 2
    %v737 = vmax.f32 %v735, %v736
    %v738 = vrot.slane %v737, 1
    %v739 = vmax.f32 %v737, %v738
    %v740 = vsel %vm717, %v687, -inf
    %v741 = vsel %vm717, %v688, -inf
    %v742 = vmax.f32 %v740, %v741
    %v743 = vsel %vm717, %v689, -inf
    %v744 = vmax.f32 %v742, %v743
    %v745 = vrot.slane %v744, 4
    %v746 = vmax.f32 %v744, %v745
    %v747 = vrot.slane %v746, 2
    %v748 = vmax.f32 %v746, %v747
    %v749 = vrot.slane %v748, 1
    %v750 = vmax.f32 %v748, %v749
    %v751 = vsel %vm717, %v690, -inf
    %v752 = vsel %vm717, %v691, -inf
    %v753 = vmax.f32 %v751, %v752
    %v754 = vsel %vm717, %v692, -inf
    %v755 = vmax.f32 %v753, %v754
    %v756 = vrot.slane %v755, 4
    %v757 = vmax.f32 %v755, %v756
    %v758 = vrot.slane %v757, 2
    %v759 = vmax.f32 %v757, %v758
    %v760 = vrot.slane %v759, 1
    %v761 = vmax.f32 %v759, %v760
    %v762 = vsel %vm717, %v693, -inf
    %v763 = vsel %vm717, %v694, -inf
    %v764 = vmax.f32 %v762, %v763
    %v765 = vsel %vm717, %v695, -inf
    %v766 = vmax.f32 %v764, %v765
    %v767 = vrot.slane %v766, 4
    %v768 = vmax.f32 %v766, %v767
    %v769 = vrot.slane %v768, 2
    %v770 = vmax.f32 %v768, %v769
    %v771 = vrot.slane %v770, 1
    %v772 = vmax.f32 %v770, %v771
    %v773 = vsel %vm717, %v696, -inf
    %v774 = vsel %vm717, %v697, -inf
    %v775 = vmax.f32 %v773, %v774
    %v776 = vsel %vm717, %v698, -inf
    %v777 = vmax.f32 %v775, %v776
    %v778 = vrot.slane %v777, 4
    %v779 = vmax.f32 %v777, %v778
    %v780 = vrot.slane %v779, 2
    %v781 = vmax.f32 %v779, %v780
    %v782 = vrot.slane %v781, 1
    %v783 = vmax.f32 %v781, %v782
    %v784 = vsel %vm717, %v699, -inf
    %v785 = vsel %vm717, %v700, -inf
    %v786 = vmax.f32 %v784, %v785
    %v787 = vsel %vm717, %v701, -inf
    %v788 = vmax.f32 %v786, %v787
    %v789 = vrot.slane %v788, 4
    %v790 = vmax.f32 %v788, %v789
    %v791 = vrot.slane %v790, 2
    %v792 = vmax.f32 %v790, %v791
    %v793 = vrot.slane %v792, 1
    %v794 = vmax.f32 %v792, %v793
    %v795 = vsel %vm717, %v702, -inf
    %v796 = vsel %vm717, %v703, -inf
    %v797 = vmax.f32 %v795, %v796
    %v798 = vsel %vm717, %v704, -inf
    %v799 = vmax.f32 %v797, %v798
    %v800 = vrot.slane %v799, 4
    %v801 = vmax.f32 %v799, %v800
    %v802 = vrot.slane %v801, 2
    %v803 = vmax.f32 %v801, %v802
    %v804 = vrot.slane %v803, 1
    %v805 = vmax.f32 %v803, %v804
    %v806 = vsel %vm717, %v705, -inf
    %v807 = vsel %vm717, %v706, -inf
    %v808 = vmax.f32 %v806, %v807
    %v809 = vsel %vm717, %v707, -inf
    %v810 = vmax.f32 %v808, %v809
    %v811 = vrot.slane %v810, 4
    %v812 = vmax.f32 %v810, %v811
    %v813 = vrot.slane %v812, 2
    %v814 = vmax.f32 %v812, %v813
    %v815 = vrot.slane %v814, 1
    %v816 = vmax.f32 %v814, %v815
    %v817 = vsel %vm717, %v708, -inf
    %v818 = vsel %vm717, %v709, -inf
    %v819 = vmax.f32 %v817, %v818
    %v820 = vsel %vm717, %v710, -inf
    %v821 = vmax.f32 %v819, %v820
    %v822 = vrot.slane %v821, 4
    %v823 = vmax.f32 %v821, %v822
    %v824 = vrot.slane %v823, 2
    %v825 = vmax.f32 %v823, %v824
    %v826 = vrot.slane %v825, 1
    %v827 = vmax.f32 %v825, %v826
    %v828 = vsel %vm717, %v711, -inf
    %v829 = vsel %vm717, %v712, -inf
    %v830 = vmax.f32 %v828, %v829
    %v831 = vsel %vm717, %v713, -inf
    %v832 = vmax.f32 %v830, %v831
    %v833 = vrot.slane %v832, 4
    %v834 = vmax.f32 %v832, %v833
    %v835 = vrot.slane %v834, 2
    %v836 = vmax.f32 %v834, %v835
    %v837 = vrot.slane %v836, 1
    %v838 = vmax.f32 %v836, %v837
    %v839 = vsel %vm717, %v714, -inf
    %v840 = vsel %vm717, %v715, -inf
    %v841 = vmax.f32 %v839, %v840
    %v842 = vsel %vm717, %v716, -inf
    %v843 = vmax.f32 %v841, %v842
    %v844 = vrot.slane %v843, 4
    %v845 = vmax.f32 %v843, %v844
    %v846 = vrot.slane %v845, 2
    %v847 = vmax.f32 %v845, %v846
    %v848 = vrot.slane %v847, 1
    %v849 = vmax.f32 %v847, %v848
    %vm862 = vcmask 1041409
    %v863 = vsel %vm862, %v739, %v728
    %vm864 = vcmask 1042434
    %v865 = vsel %vm864, %v750, %v863
    %vm866 = vcmask 1043459
    %v867 = vsel %vm866, %v761, %v865
    %vm868 = vcmask 1044484
    %v869 = vsel %vm868, %v772, %v867
    %vm870 = vcmask 1045509
    %v871 = vsel %vm870, %v783, %v869
    %vm872 = vcmask 1046534
    %v873 = vsel %vm872, %v794, %v871
    %vm874 = vcmask 1047559
    %v875 = vsel %vm874, %v805, %v873
    %v876 = vsel %vm862, %v827, %v816
    %v877 = vsel %vm864, %v838, %v876
    %v878 = vsel %vm866, %v849, %v877
    %v881 = vmul.f32 %v448, %v875
    %v882 = vmul.f32 %v451, %v878
    %v883 = vadd.f32 %v363, %v881
    %v884 = vadd.f32 %v364, %v882
    %vm885 = vcmask 97280
    %v887 = vsel %vm885, %v420, 0
    %v890 = vsel %vm885, %v421, 0
    %v893 = vsel %vm885, %v422, 0
    %vm895 = vcmask 1043456
    %v897 = vsel %vm895, %v884, 0
    %899 = vmatpush.msra.mxu0 0.0
    %900 = vmatpush.msra.mxu0 0.0
    %901 = vmatpush.msra.mxu0 0.0
    %902 = vmatpush.msra.mxu0 0.0
    %903 = vmatpush.msra.mxu0 0.0
    %904 = vmatpush.msra.mxu0 0.0
    %905 = vmatpush.msra.mxu0 0.0
    %906 = vmatpush.msra.mxu0 0.0
    %907 = vmatpush.msra.mxu0 0.0
    %908 = vmatpush.msra.mxu0 0.0
    %909 = vmatpush.msra.mxu0 0.0
    %910 = vmatpush.msra.mxu0 0.0
    %911 = vmatpush.msra.mxu0 0.0
    %912 = vmatpush.msra.mxu0 0.0
    %913 = vmatpush.msra.mxu0 %v897
    %914 = vmatpush.msra.mxu0 %v883
    %915 = vmatmul.f32.gmra.mxu0 %v887
    %v916 = vpop.f32.mrf.mxu0
    %v917 = vadd.f32 0.0, %v916
    %918 = vmatmul.f32.gmra.mxu0 %v890
    %v919 = vpop.f32.mrf.mxu0
    %v920 = vadd.f32 0.0, %v919
    %921 = vmatmul.f32.gmra.mxu0 %v893
    %v922 = vpop.f32.mrf.mxu0
    %v923 = vadd.f32 0.0, %v922
    %924 = vdwg.mxu0
    %v925 = vld [vmem:[%s27] sm:$0xff]
    %v926 = vld [vmem:[%s27 + $0x8] sm:$0xff]
    %v927 = vld [vmem:[%s27 + $0x10] sm:$0xff]
    %v928 = vld [vmem:[%s27 + $0x18] sm:$0xff]
    %v929 = vld [vmem:[#allocation11] sm:$0x1]
    %v931 = vperm.slane %v929, 0
    %v934 = vsel %vm717, %v917, 0
    %v937 = vsel %vm717, %v920, 0
    %v940 = vsel %vm717, %v923, 0
    %942 = vmatpush.msra.mxu0 0.0
    %943 = vmatpush.msra.mxu0 0.0
    %944 = vmatpush.msra.mxu0 0.0
    %945 = vmatpush.msra.mxu0 0.0
    %946 = vmatpush.msra.mxu0 0.0
    %947 = vmatpush.msra.mxu0 0.0
    %948 = vmatpush.msra.mxu0 0.0
    %949 = vmatpush.msra.mxu0 0.0
    %950 = vmatpush.msra.mxu0 0.0
    %951 = vmatpush.msra.mxu0 0.0
    %952 = vmatpush.msra.mxu0 0.0
    %953 = vmatpush.msra.mxu0 0.0
    %954 = vmatpush.msra.mxu0 %v928
    %955 = vmatpush.msra.mxu0 %v927
    %956 = vmatpush.msra.mxu0 %v926
    %957 = vmatpush.msra.mxu0 %v925
    %958 = vmatmul.f32.gmra.mxu0 %v934
    %v959 = vpop.f32.mrf.mxu0
    %v960 = vadd.f32 %v931, %v959
    %961 = vmatmul.f32.gmra.mxu0 %v937
    %v962 = vpop.f32.mrf.mxu0
    %v963 = vadd.f32 %v931, %v962
    %964 = vmatmul.f32.gmra.mxu0 %v940
    %v965 = vpop.f32.mrf.mxu0
    %v966 = vadd.f32 %v931, %v965
    %967 = vdwg.mxu0
    %v968 = vadd.f32 %v413, %v960
    %v969 = vadd.f32 %v414, %v963
    %v970 = vadd.f32 %v415, %v966
    %v971 = vmax.f32 %v968, 0.0
    %v972 = vmax.f32 %v969, 0.0
    %v973 = vmax.f32 %v970, 0.0
    %974 = vmatpush.msra.mxu0 0.0
    %975 = vmatpush.msra.mxu0 0.0
    %976 = vmatpush.msra.mxu0 0.0
    %977 = vmatpush.msra.mxu0 0.0
    %978 = vmatpush.msra.mxu0 0.0
    %979 = vmatpush.msra.mxu0 0.0
    %980 = vmatpush.msra.mxu0 0.0
    %981 = vmatpush.msra.mxu0 0.0
    %982 = vmatpush.msra.mxu0 0.0
    %983 = vmatpush.msra.mxu0 0.0
    %984 = vmatpush.msra.mxu0 0.0
    %985 = vmatpush.msra.mxu0 0.0
    %986 = vmatpush.msra.mxu0 0.0
    %987 = vmatpush.msra.mxu0 %v973
    %988 = vmatpush.msra.mxu0 %v972
    %989 = vmatpush.msra.mxu0 %v971
    %990 = vmatmul.f32.gmra.mxu0 %v425
    %v991 = vpop.f32.mrf.mxu0
    %v992 = vadd.f32 0.0, %v991
    %993 = vmatmul.f32.gmra.mxu0 %v428
    %v994 = vpop.f32.mrf.mxu0
    %v995 = vadd.f32 0.0, %v994
    %996 = vdwg.mxu0
    %v997 = vadd.f32 %v971, %v459
    %v998 = vadd.f32 %v972, %v465
    %v999 = vadd.f32 %v973, %v471
    %v1000 = vadd.f32 %v971, %v478
    %v1001 = vadd.f32 %v972, %v484
    %v1002 = vadd.f32 %v973, %v490
    %v1003 = vadd.f32 %v971, %v497
    %v1004 = vadd.f32 %v972, %v503
    %v1005 = vadd.f32 %v973, %v509
    %v1006 = vadd.f32 %v971, %v516
    %v1007 = vadd.f32 %v972, %v522
    %v1008 = vadd.f32 %v973, %v528
    %v1009 = vadd.f32 %v971, %v535
    %v1010 = vadd.f32 %v972, %v541
    %v1011 = vadd.f32 %v973, %v547
    %v1012 = vadd.f32 %v971, %v554
    %v1013 = vadd.f32 %v972, %v560
    %v1014 = vadd.f32 %v973, %v566
    %v1015 = vadd.f32 %v971, %v573
    %v1016 = vadd.f32 %v972, %v579
    %v1017 = vadd.f32 %v973, %v585
    %v1018 = vadd.f32 %v971, %v592
    %v1019 = vadd.f32 %v972, %v598
    %v1020 = vadd.f32 %v973, %v604
    %v1021 = vadd.f32 %v971, %v611
    %v1022 = vadd.f32 %v972, %v617
    %v1023 = vadd.f32 %v973, %v623
    %v1024 = vadd.f32 %v971, %v630
    %v1025 = vadd.f32 %v972, %v636
    %v1026 = vadd.f32 %v973, %v642
    %v1027 = vadd.f32 %v971, %v649
    %v1028 = vadd.f32 %v972, %v655
    %v1029 = vadd.f32 %v973, %v661
    %v1030 = vadd.f32 %v971, %v668
    %v1031 = vadd.f32 %v972, %v674
    %v1032 = vadd.f32 %v973, %v680
    %v1033 = vsel %vm717, %v997, -inf
    %v1034 = vsel %vm717, %v998, -inf
    %v1035 = vmax.f32 %v1033, %v1034
    %v1036 = vsel %vm717, %v999, -inf
    %v1037 = vmax.f32 %v1035, %v1036
    %v1038 = vrot.slane %v1037, 4
    %v1039 = vmax.f32 %v1037, %v1038
    %v1040 = vrot.slane %v1039, 2
    %v1041 = vmax.f32 %v1039, %v1040
    %v1042 = vrot.slane %v1041, 1
    %v1043 = vmax.f32 %v1041, %v1042
    %v1044 = vsel %vm717, %v1000, -inf
    %v1045 = vsel %vm717, %v1001, -inf
    %v1046 = vmax.f32 %v1044, %v1045
    %v1047 = vsel %vm717, %v1002, -inf
    %v1048 = vmax.f32 %v1046, %v1047
    %v1049 = vrot.slane %v1048, 4
    %v1050 = vmax.f32 %v1048, %v1049
    %v1051 = vrot.slane %v1050, 2
    %v1052 = vmax.f32 %v1050, %v1051
    %v1053 = vrot.slane %v1052, 1
    %v1054 = vmax.f32 %v1052, %v1053
    %v1055 = vsel %vm717, %v1003, -inf
    %v1056 = vsel %vm717, %v1004, -inf
    %v1057 = vmax.f32 %v1055, %v1056
    %v1058 = vsel %vm717, %v1005, -inf
    %v1059 = vmax.f32 %v1057, %v1058
    %v1060 = vrot.slane %v1059, 4
    %v1061 = vmax.f32 %v1059, %v1060
    %v1062 = vrot.slane %v1061, 2
    %v1063 = vmax.f32 %v1061, %v1062
    %v1064 = vrot.slane %v1063, 1
    %v1065 = vmax.f32 %v1063, %v1064
    %v1066 = vsel %vm717, %v1006, -inf
    %v1067 = vsel %vm717, %v1007, -inf
    %v1068 = vmax.f32 %v1066, %v1067
    %v1069 = vsel %vm717, %v1008, -inf
    %v1070 = vmax.f32 %v1068, %v1069
    %v1071 = vrot.slane %v1070, 4
    %v1072 = vmax.f32 %v1070, %v1071
    %v1073 = vrot.slane %v1072, 2
    %v1074 = vmax.f32 %v1072, %v1073
    %v1075 = vrot.slane %v1074, 1
    %v1076 = vmax.f32 %v1074, %v1075
    %v1077 = vsel %vm717, %v1009, -inf
    %v1078 = vsel %vm717, %v1010, -inf
    %v1079 = vmax.f32 %v1077, %v1078
    %v1080 = vsel %vm717, %v1011, -inf
    %v1081 = vmax.f32 %v1079, %v1080
    %v1082 = vrot.slane %v1081, 4
    %v1083 = vmax.f32 %v1081, %v1082
    %v1084 = vrot.slane %v1083, 2
    %v1085 = vmax.f32 %v1083, %v1084
    %v1086 = vrot.slane %v1085, 1
    %v1087 = vmax.f32 %v1085, %v1086
    %v1088 = vsel %vm717, %v1012, -inf
    %v1089 = vsel %vm717, %v1013, -inf
    %v1090 = vmax.f32 %v1088, %v1089
    %v1091 = vsel %vm717, %v1014, -inf
    %v1092 = vmax.f32 %v1090, %v1091
    %v1093 = vrot.slane %v1092, 4
    %v1094 = vmax.f32 %v1092, %v1093
    %v1095 = vrot.slane %v1094, 2
    %v1096 = vmax.f32 %v1094, %v1095
    %v1097 = vrot.slane %v1096, 1
    %v1098 = vmax.f32 %v1096, %v1097
    %v1099 = vsel %vm717, %v1015, -inf
    %v1100 = vsel %vm717, %v1016, -inf
    %v1101 = vmax.f32 %v1099, %v1100
    %v1102 = vsel %vm717, %v1017, -inf
    %v1103 = vmax.f32 %v1101, %v1102
    %v1104 = vrot.slane %v1103, 4
    %v1105 = vmax.f32 %v1103, %v1104
    %v1106 = vrot.slane %v1105, 2
    %v1107 = vmax.f32 %v1105, %v1106
    %v1108 = vrot.slane %v1107, 1
    %v1109 = vmax.f32 %v1107, %v1108
    %v1110 = vsel %vm717, %v1018, -inf
    %v1111 = vsel %vm717, %v1019, -inf
    %v1112 = vmax.f32 %v1110, %v1111
    %v1113 = vsel %vm717, %v1020, -inf
    %v1114 = vmax.f32 %v1112, %v1113
    %v1115 = vrot.slane %v1114, 4
    %v1116 = vmax.f32 %v1114, %v1115
    %v1117 = vrot.slane %v1116, 2
    %v1118 = vmax.f32 %v1116, %v1117
    %v1119 = vrot.slane %v1118, 1
    %v1120 = vmax.f32 %v1118, %v1119
    %v1121 = vsel %vm717, %v1021, -inf
    %v1122 = vsel %vm717, %v1022, -inf
    %v1123 = vmax.f32 %v1121, %v1122
    %v1124 = vsel %vm717, %v1023, -inf
    %v1125 = vmax.f32 %v1123, %v1124
    %v1126 = vrot.slane %v1125, 4
    %v1127 = vmax.f32 %v1125, %v1126
    %v1128 = vrot.slane %v1127, 2
    %v1129 = vmax.f32 %v1127, %v1128
    %v1130 = vrot.slane %v1129, 1
    %v1131 = vmax.f32 %v1129, %v1130
    %v1132 = vsel %vm717, %v1024, -inf
    %v1133 = vsel %vm717, %v1025, -inf
    %v1134 = vmax.f32 %v1132, %v1133
    %v1135 = vsel %vm717, %v1026, -inf
    %v1136 = vmax.f32 %v1134, %v1135
    %v1137 = vrot.slane %v1136, 4
    %v1138 = vmax.f32 %v1136, %v1137
    %v1139 = vrot.slane %v1138, 2
    %v1140 = vmax.f32 %v1138, %v1139
    %v1141 = vrot.slane %v1140, 1
    %v1142 = vmax.f32 %v1140, %v1141
    %v1143 = vsel %vm717, %v1027, -inf
    %v1144 = vsel %vm717, %v1028, -inf
    %v1145 = vmax.f32 %v1143, %v1144
    %v1146 = vsel %vm717, %v1029, -inf
    %v1147 = vmax.f32 %v1145, %v1146
    %v1148 = vrot.slane %v1147, 4
    %v1149 = vmax.f32 %v1147, %v1148
    %v1150 = vrot.slane %v1149, 2
    %v1151 = vmax.f32 %v1149, %v1150
    %v1152 = vrot.slane %v1151, 1
    %v1153 = vmax.f32 %v1151, %v1152
    %v1154 = vsel %vm717, %v1030, -inf
    %v1155 = vsel %vm717, %v1031, -inf
    %v1156 = vmax.f32 %v1154, %v1155
    %v1157 = vsel %vm717, %v1032, -inf
    %v1158 = vmax.f32 %v1156, %v1157
    %v1159 = vrot.slane %v1158, 4
    %v1160 = vmax.f32 %v1158, %v1159
    %v1161 = vrot.slane %v1160, 2
    %v1162 = vmax.f32 %v1160, %v1161
    %v1163 = vrot.slane %v1162, 1
    %v1164 = vmax.f32 %v1162, %v1163
    %v1177 = vsel %vm862, %v1054, %v1043
    %v1178 = vsel %vm864, %v1065, %v1177
    %v1179 = vsel %vm866, %v1076, %v1178
    %v1180 = vsel %vm868, %v1087, %v1179
    %v1181 = vsel %vm870, %v1098, %v1180
    %v1182 = vsel %vm872, %v1109, %v1181
    %v1183 = vsel %vm874, %v1120, %v1182
    %v1184 = vsel %vm862, %v1142, %v1131
    %v1185 = vsel %vm864, %v1153, %v1184
    %v1186 = vsel %vm866, %v1164, %v1185
    %v1189 = vmul.f32 %v992, %v1183
    %v1190 = vmul.f32 %v995, %v1186
    %v1191 = vadd.f32 %v883, %v1189
    %v1192 = vadd.f32 %v884, %v1190
    %v1194 = vsel %vm895, %v1192, 0
    %1196 = vmatpush.msra.mxu0 0.0
    %1197 = vmatpush.msra.mxu0 0.0
    %1198 = vmatpush.msra.mxu0 0.0
    %1199 = vmatpush.msra.mxu0 0.0
    %1200 = vmatpush.msra.mxu0 0.0
    %1201 = vmatpush.msra.mxu0 0.0
    %1202 = vmatpush.msra.mxu0 0.0
    %1203 = vmatpush.msra.mxu0 0.0
    %1204 = vmatpush.msra.mxu0 0.0
    %1205 = vmatpush.msra.mxu0 0.0
    %1206 = vmatpush.msra.mxu0 0.0
    %1207 = vmatpush.msra.mxu0 0.0
    %1208 = vmatpush.msra.mxu0 0.0
    %1209 = vmatpush.msra.mxu0 0.0
    %1210 = vmatpush.msra.mxu0 %v1194
    %1211 = vmatpush.msra.mxu0 %v1191
    %1212 = vmatmul.f32.gmra.mxu0 %v887
    %v1213 = vpop.f32.mrf.mxu0
    %v1214 = vadd.f32 0.0, %v1213
    %1215 = vmatmul.f32.gmra.mxu0 %v890
    %v1216 = vpop.f32.mrf.mxu0
    %v1217 = vadd.f32 0.0, %v1216
    %1218 = vmatmul.f32.gmra.mxu0 %v893
    %v1219 = vpop.f32.mrf.mxu0
    %v1220 = vadd.f32 0.0, %v1219
    %1221 = vdwg.mxu0
    %s1222 = scalar_lea.vmem %s27, 32
    %v1223 = vld [vmem:[%s1222] sm:$0xff]
    %v1224 = vld [vmem:[%s1222 + $0x8] sm:$0xff]
    %v1225 = vld [vmem:[%s1222 + $0x10] sm:$0xff]
    %v1226 = vld [vmem:[%s1222 + $0x18] sm:$0xff]
    %s1227 = scalar_lea.vmem [#allocation11], 1
    %v1228 = vld [vmem:[%s1227] sm:$0x1]
    %v1230 = vperm.slane %v1228, 0
    %v1233 = vsel %vm717, %v1214, 0
    %v1236 = vsel %vm717, %v1217, 0
    %v1239 = vsel %vm717, %v1220, 0
    %1241 = vmatpush.msra.mxu0 0.0
    %1242 = vmatpush.msra.mxu0 0.0
    %1243 = vmatpush.msra.mxu0 0.0
    %1244 = vmatpush.msra.mxu0 0.0
    %1245 = vmatpush.msra.mxu0 0.0
    %1246 = vmatpush.msra.mxu0 0.0
    %1247 = vmatpush.msra.mxu0 0.0
    %1248 = vmatpush.msra.mxu0 0.0
    %1249 = vmatpush.msra.mxu0 0.0
    %1250 = vmatpush.msra.mxu0 0.0
    %1251 = vmatpush.msra.mxu0 0.0
    %1252 = vmatpush.msra.mxu0 0.0
    %1253 = vmatpush.msra.mxu0 %v1226
    %1254 = vmatpush.msra.mxu0 %v1225
    %1255 = vmatpush.msra.mxu0 %v1224
    %1256 = vmatpush.msra.mxu0 %v1223
    %1257 = vmatmul.f32.gmra.mxu0 %v1233
    %v1258 = vpop.f32.mrf.mxu0
    %v1259 = vadd.f32 %v1230, %v1258
    %1260 = vmatmul.f32.gmra.mxu0 %v1236
    %v1261 = vpop.f32.mrf.mxu0
    %v1262 = vadd.f32 %v1230, %v1261
    %1263 = vmatmul.f32.gmra.mxu0 %v1239
    %v1264 = vpop.f32.mrf.mxu0
    %v1265 = vadd.f32 %v1230, %v1264
    %1266 = vdwg.mxu0
    %v1267 = vadd.f32 %v413, %v1259
    %v1268 = vadd.f32 %v414, %v1262
    %v1269 = vadd.f32 %v415, %v1265
    %v1270 = vmax.f32 %v1267, 0.0
    %v1271 = vmax.f32 %v1268, 0.0
    %v1272 = vmax.f32 %v1269, 0.0
    %1273 = vmatpush.msra.mxu0 0.0
    %1274 = vmatpush.msra.mxu0 0.0
    %1275 = vmatpush.msra.mxu0 0.0
    %1276 = vmatpush.msra.mxu0 0.0
    %1277 = vmatpush.msra.mxu0 0.0
    %1278 = vmatpush.msra.mxu0 0.0
    %1279 = vmatpush.msra.mxu0 0.0
    %1280 = vmatpush.msra.mxu0 0.0
    %1281 = vmatpush.msra.mxu0 0.0
    %1282 = vmatpush.msra.mxu0 0.0
    %1283 = vmatpush.msra.mxu0 0.0
    %1284 = vmatpush.msra.mxu0 0.0
    %1285 = vmatpush.msra.mxu0 0.0
    %1286 = vmatpush.msra.mxu0 %v1272
    %1287 = vmatpush.msra.mxu0 %v1271
    %1288 = vmatpush.msra.mxu0 %v1270
    %1289 = vmatmul.f32.gmra.mxu0 %v425
    %v1290 = vpop.f32.mrf.mxu0
    %v1291 = vadd.f32 0.0, %v1290
    %1292 = vmatmul.f32.gmra.mxu0 %v428
    %v1293 = vpop.f32.mrf.mxu0
    %v1294 = vadd.f32 0.0, %v1293
    %1295 = vdwg.mxu0
    %v1296 = vadd.f32 %v1270, %v459
    %v1297 = vadd.f32 %v1271, %v465
    %v1298 = vadd.f32 %v1272, %v471
    %v1299 = vadd.f32 %v1270, %v478
    %v1300 = vadd.f32 %v1271, %v484
    %v1301 = vadd.f32 %v1272, %v490
    %v1302 = vadd.f32 %v1270, %v497
    %v1303 = vadd.f32 %v1271, %v503
    %v1304 = vadd.f32 %v1272, %v509
    %v1305 = vadd.f32 %v1270, %v516
    %v1306 = vadd.f32 %v1271, %v522
    %v1307 = vadd.f32 %v1272, %v528
    %v1308 = vadd.f32 %v1270, %v535
    %v1309 = vadd.f32 %v1271, %v541
    %v1310 = vadd.f32 %v1272, %v547
    %v1311 = vadd.f32 %v1270, %v554
    %v1312 = vadd.f32 %v1271, %v560
    %v1313 = vadd.f32 %v1272, %v566
    %v1314 = vadd.f32 %v1270, %v573
    %v1315 = vadd.f32 %v1271, %v579
    %v1316 = vadd.f32 %v1272, %v585
    %v1317 = vadd.f32 %v1270, %v592
    %v1318 = vadd.f32 %v1271, %v598
    %v1319 = vadd.f32 %v1272, %v604
    %v1320 = vadd.f32 %v1270, %v611
    %v1321 = vadd.f32 %v1271, %v617
    %v1322 = vadd.f32 %v1272, %v623
    %v1323 = vadd.f32 %v1270, %v630
    %v1324 = vadd.f32 %v1271, %v636
    %v1325 = vadd.f32 %v1272, %v642
    %v1326 = vadd.f32 %v1270, %v649
    %v1327 = vadd.f32 %v1271, %v655
    %v1328 = vadd.f32 %v1272, %v661
    %v1329 = vadd.f32 %v1270, %v668
    %v1330 = vadd.f32 %v1271, %v674
    %v1331 = vadd.f32 %v1272, %v680
    %v1332 = vsel %vm717, %v1296, -inf
    %v1333 = vsel %vm717, %v1297, -inf
    %v1334 = vmax.f32 %v1332, %v1333
    %v1335 = vsel %vm717, %v1298, -inf
    %v1336 = vmax.f32 %v1334, %v1335
    %v1337 = vrot.slane %v1336, 4
    %v1338 = vmax.f32 %v1336, %v1337
    %v1339 = vrot.slane %v1338, 2
    %v1340 = vmax.f32 %v1338, %v1339
    %v1341 = vrot.slane %v1340, 1
    %v1342 = vmax.f32 %v1340, %v1341
    %v1343 = vsel %vm717, %v1299, -inf
    %v1344 = vsel %vm717, %v1300, -inf
    %v1345 = vmax.f32 %v1343, %v1344
    %v1346 = vsel %vm717, %v1301, -inf
    %v1347 = vmax.f32 %v1345, %v1346
    %v1348 = vrot.slane %v1347, 4
    %v1349 = vmax.f32 %v1347, %v1348
    %v1350 = vrot.slane %v1349, 2
    %v1351 = vmax.f32 %v1349, %v1350
    %v1352 = vrot.slane %v1351, 1
    %v1353 = vmax.f32 %v1351, %v1352
    %v1354 = vsel %vm717, %v1302, -inf
    %v1355 = vsel %vm717, %v1303, -inf
    %v1356 = vmax.f32 %v1354, %v1355
    %v1357 = vsel %vm717, %v1304, -inf
    %v1358 = vmax.f32 %v1356, %v1357
    %v1359 = vrot.slane %v1358, 4
    %v1360 = vmax.f32 %v1358, %v1359
    %v1361 = vrot.slane %v1360, 2
    %v1362 = vmax.f32 %v1360, %v1361
    %v1363 = vrot.slane %v1362, 1
    %v1364 = vmax.f32 %v1362, %v1363
    %v1365 = vsel %vm717, %v1305, -inf
    %v1366 = vsel %vm717, %v1306, -inf
    %v1367 = vmax.f32 %v1365, %v1366
    %v1368 = vsel %vm717, %v1307, -inf
    %v1369 = vmax.f32 %v1367, %v1368
    %v1370 = vrot.slane %v1369, 4
    %v1371 = vmax.f32 %v1369, %v1370
    %v1372 = vrot.slane %v1371, 2
    %v1373 = vmax.f32 %v1371, %v1372
    %v1374 = vrot.slane %v1373, 1
    %v1375 = vmax.f32 %v1373, %v1374
    %v1376 = vsel %vm717, %v1308, -inf
    %v1377 = vsel %vm717, %v1309, -inf
    %v1378 = vmax.f32 %v1376, %v1377
    %v1379 = vsel %vm717, %v1310, -inf
    %v1380 = vmax.f32 %v1378, %v1379
    %v1381 = vrot.slane %v1380, 4
    %v1382 = vmax.f32 %v1380, %v1381
    %v1383 = vrot.slane %v1382, 2
    %v1384 = vmax.f32 %v1382, %v1383
    %v1385 = vrot.slane %v1384, 1
    %v1386 = vmax.f32 %v1384, %v1385
    %v1387 = vsel %vm717, %v1311, -inf
    %v1388 = vsel %vm717, %v1312, -inf
    %v1389 = vmax.f32 %v1387, %v1388
    %v1390 = vsel %vm717, %v1313, -inf
    %v1391 = vmax.f32 %v1389, %v1390
    %v1392 = vrot.slane %v1391, 4
    %v1393 = vmax.f32 %v1391, %v1392
    %v1394 = vrot.slane %v1393, 2
    %v1395 = vmax.f32 %v1393, %v1394
    %v1396 = vrot.slane %v1395, 1
    %v1397 = vmax.f32 %v1395, %v1396
    %v1398 = vsel %vm717, %v1314, -inf
    %v1399 = vsel %vm717, %v1315, -inf
    %v1400 = vmax.f32 %v1398, %v1399
    %v1401 = vsel %vm717, %v1316, -inf
    %v1402 = vmax.f32 %v1400, %v1401
    %v1403 = vrot.slane %v1402, 4
    %v1404 = vmax.f32 %v1402, %v1403
    %v1405 = vrot.slane %v1404, 2
    %v1406 = vmax.f32 %v1404, %v1405
    %v1407 = vrot.slane %v1406, 1
    %v1408 = vmax.f32 %v1406, %v1407
    %v1409 = vsel %vm717, %v1317, -inf
    %v1410 = vsel %vm717, %v1318, -inf
    %v1411 = vmax.f32 %v1409, %v1410
    %v1412 = vsel %vm717, %v1319, -inf
    %v1413 = vmax.f32 %v1411, %v1412
    %v1414 = vrot.slane %v1413, 4
    %v1415 = vmax.f32 %v1413, %v1414
    %v1416 = vrot.slane %v1415, 2
    %v1417 = vmax.f32 %v1415, %v1416
    %v1418 = vrot.slane %v1417, 1
    %v1419 = vmax.f32 %v1417, %v1418
    %v1420 = vsel %vm717, %v1320, -inf
    %v1421 = vsel %vm717, %v1321, -inf
    %v1422 = vmax.f32 %v1420, %v1421
    %v1423 = vsel %vm717, %v1322, -inf
    %v1424 = vmax.f32 %v1422, %v1423
    %v1425 = vrot.slane %v1424, 4
    %v1426 = vmax.f32 %v1424, %v1425
    %v1427 = vrot.slane %v1426, 2
    %v1428 = vmax.f32 %v1426, %v1427
    %v1429 = vrot.slane %v1428, 1
    %v1430 = vmax.f32 %v1428, %v1429
    %v1431 = vsel %vm717, %v1323, -inf
    %v1432 = vsel %vm717, %v1324, -inf
    %v1433 = vmax.f32 %v1431, %v1432
    %v1434 = vsel %vm717, %v1325, -inf
    %v1435 = vmax.f32 %v1433, %v1434
    %v1436 = vrot.slane %v1435, 4
    %v1437 = vmax.f32 %v1435, %v1436
    %v1438 = vrot.slane %v1437, 2
    %v1439 = vmax.f32 %v1437, %v1438
    %v1440 = vrot.slane %v1439, 1
    %v1441 = vmax.f32 %v1439, %v1440
    %v1442 = vsel %vm717, %v1326, -inf
    %v1443 = vsel %vm717, %v1327, -inf
    %v1444 = vmax.f32 %v1442, %v1443
    %v1445 = vsel %vm717, %v1328, -inf
    %v1446 = vmax.f32 %v1444, %v1445
    %v1447 = vrot.slane %v1446, 4
    %v1448 = vmax.f32 %v1446, %v1447
    %v1449 = vrot.slane %v1448, 2
    %v1450 = vmax.f32 %v1448, %v1449
    %v1451 = vrot.slane %v1450, 1
    %v1452 = vmax.f32 %v1450, %v1451
    %v1453 = vsel %vm717, %v1329, -inf
    %v1454 = vsel %vm717, %v1330, -inf
    %v1455 = vmax.f32 %v1453, %v1454
    %v1456 = vsel %vm717, %v1331, -inf
    %v1457 = vmax.f32 %v1455, %v1456
    %v1458 = vrot.slane %v1457, 4
    %v1459 = vmax.f32 %v1457, %v1458
    %v1460 = vrot.slane %v1459, 2
    %v1461 = vmax.f32 %v1459, %v1460
    %v1462 = vrot.slane %v1461, 1
    %v1463 = vmax.f32 %v1461, %v1462
    %v1476 = vsel %vm862, %v1353, %v1342
    %v1477 = vsel %vm864, %v1364, %v1476
    %v1478 = vsel %vm866, %v1375, %v1477
    %v1479 = vsel %vm868, %v1386, %v1478
    %v1480 = vsel %vm870, %v1397, %v1479
    %v1481 = vsel %vm872, %v1408, %v1480
    %v1482 = vsel %vm874, %v1419, %v1481
    %v1483 = vsel %vm862, %v1441, %v1430
    %v1484 = vsel %vm864, %v1452, %v1483
    %v1485 = vsel %vm866, %v1463, %v1484
    %v1488 = vmul.f32 %v1291, %v1482
    %v1489 = vmul.f32 %v1294, %v1485
    %v1490 = vld [vmem:[%s31] sm:$0xff]
    %v1491 = vld [vmem:[%s31 + $0x8] sm:$0xff]
    %v1492 = vld [vmem:[%s31 + $0x10] sm:$0xff]
    %v1493 = vld [vmem:[%s31 + $0x18] sm:$0xff]
    %v1494 = vld [vmem:[%s31 + $0x20] sm:$0xff]
    %v1495 = vld [vmem:[%s31 + $0x28] sm:$0xff]
    %v1496 = vld [vmem:[%s31 + $0x30] sm:$0xff]
    %v1497 = vld [vmem:[%s31 + $0x38] sm:$0xff]
    %v1499 = vsel %vm717, %v1191, 0
    %v1501 = vsel %vm717, %v1192, 0
    %1503 = vmatpush.msra.mxu0 0.0
    %1504 = vmatpush.msra.mxu0 0.0
    %1505 = vmatpush.msra.mxu0 0.0
    %1506 = vmatpush.msra.mxu0 0.0
    %1507 = vmatpush.msra.mxu0 0.0
    %1508 = vmatpush.msra.mxu0 0.0
    %1509 = vmatpush.msra.mxu0 0.0
    %1510 = vmatpush.msra.mxu0 0.0
    %1511 = vmatpush.msra.mxu0 0.0
    %1512 = vmatpush.msra.mxu0 0.0
    %1513 = vmatpush.msra.mxu0 0.0
    %1514 = vmatpush.msra.mxu0 0.0
    %1515 = vmatpush.msra.mxu0 %v1497
    %1516 = vmatpush.msra.mxu0 %v1496
    %1517 = vmatpush.msra.mxu0 %v1495
    %1518 = vmatpush.msra.mxu0 %v1494
    %1519 = vmatmul.f32.gmra.mxu0 %v1499
    %v1520 = vpop.f32.mrf.mxu0
    %v1521 = vadd.f32 0.0, %v1520
    %1522 = vmatmul.f32.gmra.mxu0 %v1501
    %v1523 = vpop.f32.mrf.mxu0
    %v1524 = vadd.f32 0.0, %v1523
    %1525 = vdwg.mxu0
    %v1527 = vsel %vm717, %v1488, 0
    %v1530 = vsel %vm717, %v1489, 0
    %1532 = vmatpush.msra.mxu0 0.0
    %1533 = vmatpush.msra.mxu0 0.0
    %1534 = vmatpush.msra.mxu0 0.0
    %1535 = vmatpush.msra.mxu0 0.0
    %1536 = vmatpush.msra.mxu0 0.0
    %1537 = vmatpush.msra.mxu0 0.0
    %1538 = vmatpush.msra.mxu0 0.0
    %1539 = vmatpush.msra.mxu0 0.0
    %1540 = vmatpush.msra.mxu0 0.0
    %1541 = vmatpush.msra.mxu0 0.0
    %1542 = vmatpush.msra.mxu0 0.0
    %1543 = vmatpush.msra.mxu0 0.0
    %1544 = vmatpush.msra.mxu0 %v1493
    %1545 = vmatpush.msra.mxu0 %v1492
    %1546 = vmatpush.msra.mxu0 %v1491
    %1547 = vmatpush.msra.mxu0 %v1490
    %1548 = vmatmul.f32.gmra.mxu0 %v1527
    %v1549 = vpop.f32.mrf.mxu0
    %v1550 = vadd.f32 %v1521, %v1549
    %1551 = vmatmul.f32.gmra.mxu0 %v1530
    %v1552 = vpop.f32.mrf.mxu0
    %v1553 = vadd.f32 %v1524, %v1552
    %1554 = vdwg.mxu0
    %v1555 = vld [vmem:[%s31 + $0x40] sm:$0xff]
    %v1556 = vld [vmem:[%s31 + $0x48] sm:$0xff]
    %v1557 = vld [vmem:[%s31 + $0x50] sm:$0xff]
    %v1558 = vld [vmem:[%s31 + $0x58] sm:$0xff]
    %v1560 = vsel %vm717, %v363, 0
    %v1563 = vsel %vm717, %v364, 0
    %1565 = vmatpush.msra.mxu0 0.0
    %1566 = vmatpush.msra.mxu0 0.0
    %1567 = vmatpush.msra.mxu0 0.0
    %1568 = vmatpush.msra.mxu0 0.0
    %1569 = vmatpush.msra.mxu0 0.0
    %1570 = vmatpush.msra.mxu0 0.0
    %1571 = vmatpush.msra.mxu0 0.0
    %1572 = vmatpush.msra.mxu0 0.0
    %1573 = vmatpush.msra.mxu0 0.0
    %1574 = vmatpush.msra.mxu0 0.0
    %1575 = vmatpush.msra.mxu0 0.0
    %1576 = vmatpush.msra.mxu0 0.0
    %1577 = vmatpush.msra.mxu0 %v1558
    %1578 = vmatpush.msra.mxu0 %v1557
    %1579 = vmatpush.msra.mxu0 %v1556
    %1580 = vmatpush.msra.mxu0 %v1555
    %1581 = vmatmul.f32.gmra.mxu0 %v1560
    %v1582 = vpop.f32.mrf.mxu0
    %v1583 = vadd.f32 0.0, %v1582
    %1584 = vmatmul.f32.gmra.mxu0 %v1563
    %v1585 = vpop.f32.mrf.mxu0
    %v1586 = vadd.f32 0.0, %v1585
    %1587 = vdwg.mxu0
    %v1588 = vadd.f32 %v1550, %v1583
    %v1589 = vadd.f32 %v1553, %v1586
    %v1590 = vld [vmem:[#allocation13] sm:$0x1]
    %v1592 = vperm.slane %v1590, 0
    %v1594 = vadd.f32 %v1588, %v1592
    %v1595 = vadd.f32 %v1589, %v1592
    %v1596 = vld [vmem:[#allocation14] sm:$0x1]
    %v1598 = vperm.slane %v1596, 0
    %v1600 = vadd.f32 %v1594, %v1598
    %v1601 = vadd.f32 %v1595, %v1598
    %v1602 = vmax.f32 %v1600, 0.0
    %v1603 = vmax.f32 %v1601, 0.0
    %v1604 = vld [vmem:[#allocation2] sm:$0x3]
    %v1605 = vperm.slane %v1604, 0
    %v1606 = vlaneseq
    %v1607 = vshrl.u32 %v1606, 7
    %1609 = vset.pattern.permute.xlu0 %v1607
    %1610 = vperm.xlu0 %1609, %v1605
    %v1611 = vpop.permute.xlu0 %1610
    %v1612 = vlaneseq
    %v1613 = vshrl.u32 %v1612, 7
    %v1614 = vadd.s32 %v1613, 8
    %1615 = vset.pattern.permute.xlu0 %v1614
    %1616 = vperm.xlu0 %1615, %v1605
    %v1617 = vpop.permute.xlu0 %1616
    %v1618 = vperm.slane %v1604, 1
    %v1619 = vlaneseq
    %v1620 = vshrl.u32 %v1619, 7
    %1622 = vset.pattern.permute.xlu0 %v1620
    %1623 = vperm.xlu0 %1622, %v1618
    %v1624 = vpop.permute.xlu0 %1623
    %v1625 = vlaneseq
    %v1626 = vshrl.u32 %v1625, 7
    %v1627 = vadd.s32 %v1626, 8
    %1628 = vset.pattern.permute.xlu0 %v1627
    %1629 = vperm.xlu0 %1628, %v1618
    %v1630 = vpop.permute.xlu0 %1629
    %v1631 = vadd.f32 %v1594, %v1611
    %v1632 = vadd.f32 %v1595, %v1617
    %v1633 = vadd.f32 %v1594, %v1624
    %v1634 = vadd.f32 %v1595, %v1630
    %v1635 = vsel %vm717, %v1631, -inf
    %vm1636 = vcmask 257024
    %v1637 = vsel %vm1636, %v1632, -inf
    %v1638 = vmax.f32 %v1635, %v1637
    %v1639 = vrot.slane %v1638, 4
    %v1640 = vmax.f32 %v1638, %v1639
    %v1641 = vrot.slane %v1640, 2
    %v1642 = vmax.f32 %v1640, %v1641
    %v1643 = vrot.slane %v1642, 1
    %v1644 = vmax.f32 %v1642, %v1643
    %v1645 = vsel %vm717, %v1633, -inf
    %v1646 = vsel %vm1636, %v1634, -inf
    %v1647 = vmax.f32 %v1645, %v1646
    %v1648 = vrot.slane %v1647, 4
    %v1649 = vmax.f32 %v1647, %v1648
    %v1650 = vrot.slane %v1649, 2
    %v1651 = vmax.f32 %v1649, %v1650
    %v1652 = vrot.slane %v1651, 1
    %v1653 = vmax.f32 %v1651, %v1652
    %v1654 = vld [vmem:[%s17] sm:$0xff]
    %v1655 = vld [vmem:[%s17 + $0x8] sm:$0x3f]
    %v1657 = vsel %vm885, %v1654, 0
    %v1660 = vsel %vm885, %v1655, 0
    %v1663 = vsel %vm895, %v1603, 0
    %1665 = vmatpush.msra.mxu0 0.0
    %1666 = vmatpush.msra.mxu0 0.0
    %1667 = vmatpush.msra.mxu0 0.0
    %1668 = vmatpush.msra.mxu0 0.0
    %1669 = vmatpush.msra.mxu0 0.0
    %1670 = vmatpush.msra.mxu0 0.0
    %1671 = vmatpush.msra.mxu0 0.0
    %1672 = vmatpush.msra.mxu0 0.0
    %1673 = vmatpush.msra.mxu0 0.0
    %1674 = vmatpush.msra.mxu0 0.0
    %1675 = vmatpush.msra.mxu0 0.0
    %1676 = vmatpush.msra.mxu0 0.0
    %1677 = vmatpush.msra.mxu0 0.0
    %1678 = vmatpush.msra.mxu0 0.0
    %1679 = vmatpush.msra.mxu0 %v1663
    %1680 = vmatpush.msra.mxu0 %v1602
    %1681 = vmatmul.f32.gmra.mxu0 %v1657
    %v1682 = vpop.f32.mrf.mxu0
    %v1683 = vadd.f32 0.0, %v1682
    %1684 = vmatmul.f32.gmra.mxu0 %v1660
    %v1685 = vpop.f32.mrf.mxu0
    %v1686 = vadd.f32 0.0, %v1685
    %1687 = vdwg.mxu0
    %v1688 = vld [vmem:[%s37] sm:$0xff]
    %v1689 = vld [vmem:[%s37 + $0x8] sm:$0xff]
    %v1690 = vld [vmem:[%s37 + $0x10] sm:$0xff]
    %v1691 = vld [vmem:[%s37 + $0x18] sm:$0xff]
    %v1692 = vld [vmem:[#allocation16] sm:$0x1]
    %v1694 = vperm.slane %v1692, 0
    %v1697 = vsel %vm717, %v1683, 0
    %v1700 = vsel %vm717, %v1686, 0
    %1702 = vmatpush.msra.mxu0 0.0
    %1703 = vmatpush.msra.mxu0 0.0
    %1704 = vmatpush.msra.mxu0 0.0
    %1705 = vmatpush.msra.mxu0 0.0
    %1706 = vmatpush.msra.mxu0 0.0
    %1707 = vmatpush.msra.mxu0 0.0
    %1708 = vmatpush.msra.mxu0 0.0
    %1709 = vmatpush.msra.mxu0 0.0
    %1710 = vmatpush.msra.mxu0 0.0
    %1711 = vmatpush.msra.mxu0 0.0
    %1712 = vmatpush.msra.mxu0 0.0
    %1713 = vmatpush.msra.mxu0 0.0
    %1714 = vmatpush.msra.mxu0 %v1691
    %1715 = vmatpush.msra.mxu0 %v1690
    %1716 = vmatpush.msra.mxu0 %v1689
    %1717 = vmatpush.msra.mxu0 %v1688
    %1718 = vmatmul.f32.gmra.mxu0 %v1697
    %v1719 = vpop.f32.mrf.mxu0
    %v1720 = vadd.f32 %v1694, %v1719
    %1721 = vmatmul.f32.gmra.mxu0 %v1700
    %v1722 = vpop.f32.mrf.mxu0
    %v1723 = vadd.f32 %v1694, %v1722
    %1724 = vdwg.mxu0
    %v1725 = vld [vmem:[%s45] sm:$0xff]
    %v1726 = vld [vmem:[%s45 + $0x8] sm:$0xff]
    %v1727 = vld [vmem:[%s45 + $0x10] sm:$0xff]
    %v1728 = vld [vmem:[%s45 + $0x18] sm:$0xff]
    %v1729 = vld [vmem:[#allocation19] sm:$0x1]
    %v1731 = vperm.slane %v1729, 0
    %1733 = vmatpush.msra.mxu0 0.0
    %1734 = vmatpush.msra.mxu0 0.0
    %1735 = vmatpush.msra.mxu0 0.0
    %1736 = vmatpush.msra.mxu0 0.0
    %1737 = vmatpush.msra.mxu0 0.0
    %1738 = vmatpush.msra.mxu0 0.0
    %1739 = vmatpush.msra.mxu0 0.0
    %1740 = vmatpush.msra.mxu0 0.0
    %1741 = vmatpush.msra.mxu0 0.0
    %1742 = vmatpush.msra.mxu0 0.0
    %1743 = vmatpush.msra.mxu0 0.0
    %1744 = vmatpush.msra.mxu0 0.0
    %1745 = vmatpush.msra.mxu0 %v1728
    %1746 = vmatpush.msra.mxu0 %v1727
    %1747 = vmatpush.msra.mxu0 %v1726
    %1748 = vmatpush.msra.mxu0 %v1725
    %1749 = vmatmul.f32.gmra.mxu0 %v1697
    %v1750 = vpop.f32.mrf.mxu0
    %v1751 = vadd.f32 %v1731, %v1750
    %1752 = vmatmul.f32.gmra.mxu0 %v1700
    %v1753 = vpop.f32.mrf.mxu0
    %v1754 = vadd.f32 %v1731, %v1753
    %1755 = vdwg.mxu0
    %v1756 = vld [vmem:[%s41] sm:$0xff]
    %v1757 = vld [vmem:[%s41 + $0x8] sm:$0xff]
    %v1758 = vld [vmem:[%s41 + $0x10] sm:$0xff]
    %v1759 = vld [vmem:[%s41 + $0x18] sm:$0xff]
    %v1760 = vld [vmem:[#allocation17] sm:$0x1]
    %v1761 = vld [vmem:[%s49] sm:$0xff]
    %v1762 = vld [vmem:[%s49 + $0x8] sm:$0xff]
    %v1763 = vld [vmem:[%s49 + $0x10] sm:$0xff]
    %v1764 = vld [vmem:[%s49 + $0x18] sm:$0xff]
    %v1765 = vld [vmem:[#allocation20] sm:$0x1]
    %v1766 = vld [vmem:[#allocation5] sm:$0x3]
    %v1768 = vperm.slane %v1760, 0
    %v1772 = vsel %vm862, %v1653, %v1644
    %v1773 = vsel %vm717, %v1772, 0
    %1775 = vmatpush.msra.mxu0 0.0
    %1776 = vmatpush.msra.mxu0 0.0
    %1777 = vmatpush.msra.mxu0 0.0
    %1778 = vmatpush.msra.mxu0 0.0
    %1779 = vmatpush.msra.mxu0 0.0
    %1780 = vmatpush.msra.mxu0 0.0
    %1781 = vmatpush.msra.mxu0 0.0
    %1782 = vmatpush.msra.mxu0 0.0
    %1783 = vmatpush.msra.mxu0 0.0
    %1784 = vmatpush.msra.mxu0 0.0
    %1785 = vmatpush.msra.mxu0 0.0
    %1786 = vmatpush.msra.mxu0 0.0
    %1787 = vmatpush.msra.mxu0 %v1759
    %1788 = vmatpush.msra.mxu0 %v1758
    %1789 = vmatpush.msra.mxu0 %v1757
    %1790 = vmatpush.msra.mxu0 %v1756
    %1791 = vmatmul.f32.gmra.mxu0 %v1773
    %v1792 = vpop.f32.mrf.mxu0
    %v1793 = vadd.f32 %v1768, %v1792
    %1794 = vdwg.mxu0
    %v1796 = vperm.slane %v1765, 0
    %1798 = vmatpush.msra.mxu0 0.0
    %1799 = vmatpush.msra.mxu0 0.0
    %1800 = vmatpush.msra.mxu0 0.0
    %1801 = vmatpush.msra.mxu0 0.0
    %1802 = vmatpush.msra.mxu0 0.0
    %1803 = vmatpush.msra.mxu0 0.0
    %1804 = vmatpush.msra.mxu0 0.0
    %1805 = vmatpush.msra.mxu0 0.0
    %1806 = vmatpush.msra.mxu0 0.0
    %1807 = vmatpush.msra.mxu0 0.0
    %1808 = vmatpush.msra.mxu0 0.0
    %1809 = vmatpush.msra.mxu0 0.0
    %1810 = vmatpush.msra.mxu0 %v1764
    %1811 = vmatpush.msra.mxu0 %v1763
    %1812 = vmatpush.msra.mxu0 %v1762
    %1813 = vmatpush.msra.mxu0 %v1761
    %1814 = vmatmul.f32.gmra.mxu0 %v1773
    %v1815 = vpop.f32.mrf.mxu0
    %v1816 = vadd.f32 %v1796, %v1815
    %1817 = vdwg.mxu0
    %v1818 = vadd.f32 %v1720, %v1793
    %v1819 = vxor.u32 %v1818, 2147483648
    %v1820 = vmul.f32 %v1819, 1.442695
    %v1821 = vpow.pop %v1820
    %v1822 = vadd.f32 %v1821, 1.0
    %v1823 = vrcp.pop %v1822
    %v1824 = vmul.f32 %v1822, %v1823
    %v1825 = vsub.f32 1.0, %v1824
    %v1826 = vmul.f32 %v1823, %v1825
    %v1827 = vadd.f32 %v1823, %v1826
    %vm1828 = vweird.f32 %v1822
    %vm1829 = vweird.f32 %v1823
    %vm1830 = vmor %vm1828, %vm1829
    %v1831 = vsel %vm1830, %v1823, %v1827
    %v1832 = vand.u32 2147483647, %v1822
    %vm1833 = vcmp.eq.f32.partialorder %v1832, 8.507059e+37
    %v1834 = vand.u32 %v1822, 2147483648
    %v1835 = vor.u32 1.1754944e-38, %v1834
    %v1836 = vsel %vm1833, %v1835, %v1831
    %v1837 = vmul.f32 1.0, %v1836
    %1839 = vrot.lane.b32.xlu0 %v1793, 64
    %v1840 = vpop.permute.xlu0 %1839
    %v1842 = vmul.f32 %v1837, %v1840
    %1844 = vrot.lane.b32.xlu0 %v1842, 64
    %v1845 = vpop.permute.xlu0 %1844
    %v1847 = vadd.f32 %v1720, %v1845
    %v1848 = vtanh.pop %v1847
    %v1849 = vsub.f32 1.0, %v1837
    %1851 = vrot.lane.b32.xlu0 %v1848, 96
    %v1852 = vpop.permute.xlu0 %1851
    %v1854 = vmul.f32 %v1849, %v1852
    %1855 = vrot.lane.b32.xlu0 %v1772, 32
    %v1856 = vpop.permute.xlu0 %1855
    %v1858 = vmul.f32 %v1837, %v1856
    %v1859 = vadd.f32 %v1854, %v1858
    %v1861 = vrot.slane %v1816, 4
    %v1863 = vadd.f32 %v1754, %v1861
    %v1864 = vxor.u32 %v1863, 2147483648
    %v1865 = vmul.f32 %v1864, 1.442695
    %v1866 = vpow.pop %v1865
    %v1867 = vadd.f32 %v1866, 1.0
    %v1868 = vrcp.pop %v1867
    %v1869 = vmul.f32 %v1867, %v1868
    %v1870 = vsub.f32 1.0, %v1869
    %v1871 = vmul.f32 %v1868, %v1870
    %v1872 = vadd.f32 %v1868, %v1871
    %vm1873 = vweird.f32 %v1867
    %vm1874 = vweird.f32 %v1868
    %vm1875 = vmor %vm1873, %vm1874
    %v1876 = vsel %vm1875, %v1868, %v1872
    %v1877 = vand.u32 2147483647, %v1867
    %vm1878 = vcmp.eq.f32.partialorder %v1877, 8.507059e+37
    %v1879 = vand.u32 %v1867, 2147483648
    %v1880 = vor.u32 1.1754944e-38, %v1879
    %v1881 = vsel %vm1878, %v1880, %v1876
    %v1882 = vmul.f32 1.0, %v1881
    %1883 = vrot.lane.b32.xlu0 %v1861, 64
    %v1884 = vpop.permute.xlu0 %1883
    %v1886 = vmul.f32 %v1882, %v1884
    %1888 = vrot.lane.b32.xlu0 %v1886, 64
    %v1889 = vpop.permute.xlu0 %1888
    %v1891 = vadd.f32 %v1754, %v1889
    %v1892 = vtanh.pop %v1891
    %v1893 = vsub.f32 1.0, %v1882
    %1895 = vrot.lane.b32.xlu0 %v1892, 96
    %v1896 = vpop.permute.xlu0 %1895
    %v1898 = vmul.f32 %v1893, %v1896
    %v1899 = vsel %vm870, %v1653, %v1644
    %1900 = vrot.lane.b32.xlu0 %v1899, 32
    %v1901 = vpop.permute.xlu0 %1900
    %v1903 = vmul.f32 %v1882, %v1901
    %v1904 = vadd.f32 %v1898, %v1903
    %1906 = vset.pattern.permute.xlu0 0
    %1907 = vperm.xlu0 %1906, %v1766
    %v1908 = vpop.permute.xlu0 %1907
    %v1910 = vmul.f32 %v1859, %v1908
    %v1911 = vadd.f32 %v1910, 0.0
    %1912 = vset.pattern.permute.xlu0 6
    %1913 = vperm.xlu0 %1912, %v1766
    %v1914 = vpop.permute.xlu0 %1913
    %v1915 = vrot.slane %v1914, 4
    %v1917 = vmul.f32 %v1904, %v1915
    %v1918 = vadd.f32 %v1917, 0.0
    %1920 = vrot.lane.b32.xlu0 %v1859, 96
    %v1921 = vpop.permute.xlu0 %1920
    %v1922 = vsel %vm717, %v1921, 0
    %1924 = vmatpush.msra.mxu0 0.0
    %1925 = vmatpush.msra.mxu0 0.0
    %1926 = vmatpush.msra.mxu0 0.0
    %1927 = vmatpush.msra.mxu0 0.0
    %1928 = vmatpush.msra.mxu0 0.0
    %1929 = vmatpush.msra.mxu0 0.0
    %1930 = vmatpush.msra.mxu0 0.0
    %1931 = vmatpush.msra.mxu0 0.0
    %1932 = vmatpush.msra.mxu0 0.0
    %1933 = vmatpush.msra.mxu0 0.0
    %1934 = vmatpush.msra.mxu0 0.0
    %1935 = vmatpush.msra.mxu0 0.0
    %1936 = vmatpush.msra.mxu0 %v1759
    %1937 = vmatpush.msra.mxu0 %v1758
    %1938 = vmatpush.msra.mxu0 %v1757
    %1939 = vmatpush.msra.mxu0 %v1756
    %1940 = vmatmul.f32.gmra.mxu0 %v1922
    %v1941 = vpop.f32.mrf.mxu0
    %v1942 = vadd.f32 %v1768, %v1941
    %1943 = vdwg.mxu0
    %v1945 = vrot.slane %v1904, 4
    %1946 = vrot.lane.b32.xlu0 %v1945, 96
    %v1947 = vpop.permute.xlu0 %1946
    %v1948 = vsel %vm717, %v1947, 0
    %1950 = vmatpush.msra.mxu0 0.0
    %1951 = vmatpush.msra.mxu0 0.0
    %1952 = vmatpush.msra.mxu0 0.0
    %1953 = vmatpush.msra.mxu0 0.0
    %1954 = vmatpush.msra.mxu0 0.0
    %1955 = vmatpush.msra.mxu0 0.0
    %1956 = vmatpush.msra.mxu0 0.0
    %1957 = vmatpush.msra.mxu0 0.0
    %1958 = vmatpush.msra.mxu0 0.0
    %1959 = vmatpush.msra.mxu0 0.0
    %1960 = vmatpush.msra.mxu0 0.0
    %1961 = vmatpush.msra.mxu0 0.0
    %1962 = vmatpush.msra.mxu0 %v1764
    %1963 = vmatpush.msra.mxu0 %v1763
    %1964 = vmatpush.msra.mxu0 %v1762
    %1965 = vmatpush.msra.mxu0 %v1761
    %1966 = vmatmul.f32.gmra.mxu0 %v1948
    %v1967 = vpop.f32.mrf.mxu0
    %v1968 = vadd.f32 %v1796, %v1967
    %1969 = vdwg.mxu0
    %v1971 = vrot.slane %v1942, 6
    %v1973 = vadd.f32 %v1720, %v1971
    %v1974 = vxor.u32 %v1973, 2147483648
    %v1975 = vmul.f32 %v1974, 1.442695
    %v1976 = vpow.pop %v1975
    %v1977 = vadd.f32 %v1976, 1.0
    %v1978 = vrcp.pop %v1977
    %v1979 = vmul.f32 %v1977, %v1978
    %v1980 = vsub.f32 1.0, %v1979
    %v1981 = vmul.f32 %v1978, %v1980
    %v1982 = vadd.f32 %v1978, %v1981
    %vm1983 = vweird.f32 %v1977
    %vm1984 = vweird.f32 %v1978
    %vm1985 = vmor %vm1983, %vm1984
    %v1986 = vsel %vm1985, %v1978, %v1982
    %v1987 = vand.u32 2147483647, %v1977
    %vm1988 = vcmp.eq.f32.partialorder %v1987, 8.507059e+37
    %v1989 = vand.u32 %v1977, 2147483648
    %v1990 = vor.u32 1.1754944e-38, %v1989
    %v1991 = vsel %vm1988, %v1990, %v1986
    %v1992 = vmul.f32 1.0, %v1991
    %1993 = vrot.lane.b32.xlu0 %v1971, 64
    %v1994 = vpop.permute.xlu0 %1993
    %v1996 = vmul.f32 %v1992, %v1994
    %1998 = vrot.lane.b32.xlu0 %v1996, 64
    %v1999 = vpop.permute.xlu0 %1998
    %v2001 = vadd.f32 %v1720, %v1999
    %v2002 = vtanh.pop %v2001
    %v2003 = vsub.f32 1.0, %v1992
    %2005 = vrot.lane.b32.xlu0 %v2002, 96
    %v2006 = vpop.permute.xlu0 %2005
    %v2008 = vmul.f32 %v2003, %v2006
    %v2009 = vrot.slane %v1859, 6
    %v2011 = vmul.f32 %v1992, %v2009
    %v2012 = vadd.f32 %v2008, %v2011
    %v2014 = vrot.slane %v1968, 6
    %v2016 = vadd.f32 %v1754, %v2014
    %v2017 = vxor.u32 %v2016, 2147483648
    %v2018 = vmul.f32 %v2017, 1.442695
    %v2019 = vpow.pop %v2018
    %v2020 = vadd.f32 %v2019, 1.0
    %v2021 = vrcp.pop %v2020
    %v2022 = vmul.f32 %v2020, %v2021
    %v2023 = vsub.f32 1.0, %v2022
    %v2024 = vmul.f32 %v2021, %v2023
    %v2025 = vadd.f32 %v2021, %v2024
    %vm2026 = vweird.f32 %v2020
    %vm2027 = vweird.f32 %v2021
    %vm2028 = vmor %vm2026, %vm2027
    %v2029 = vsel %vm2028, %v2021, %v2025
    %v2030 = vand.u32 2147483647, %v2020
    %vm2031 = vcmp.eq.f32.partialorder %v2030, 8.507059e+37
    %v2032 = vand.u32 %v2020, 2147483648
    %v2033 = vor.u32 1.1754944e-38, %v2032
    %v2034 = vsel %vm2031, %v2033, %v2029
    %v2035 = vmul.f32 1.0, %v2034
    %2036 = vrot.lane.b32.xlu0 %v2014, 64
    %v2037 = vpop.permute.xlu0 %2036
    %v2039 = vmul.f32 %v2035, %v2037
    %2041 = vrot.lane.b32.xlu0 %v2039, 64
    %v2042 = vpop.permute.xlu0 %2041
    %v2044 = vadd.f32 %v1754, %v2042
    %v2045 = vtanh.pop %v2044
    %v2046 = vsub.f32 1.0, %v2035
    %2048 = vrot.lane.b32.xlu0 %v2045, 96
    %v2049 = vpop.permute.xlu0 %2048
    %v2051 = vmul.f32 %v2046, %v2049
    %v2052 = vrot.slane %v1904, 2
    %v2054 = vmul.f32 %v2035, %v2052
    %v2055 = vadd.f32 %v2051, %v2054
    %2056 = vset.pattern.permute.xlu0 1
    %2057 = vperm.xlu0 %2056, %v1766
    %v2058 = vpop.permute.xlu0 %2057
    %v2059 = vrot.slane %v2058, 6
    %v2061 = vmul.f32 %v2012, %v2059
    %v2063 = vrot.slane %v2061, 2
    %v2065 = vadd.f32 %v1911, %v2063
    %2066 = vset.pattern.permute.xlu0 5
    %2067 = vperm.xlu0 %2066, %v1766
    %v2068 = vpop.permute.xlu0 %2067
    %v2069 = vrot.slane %v2068, 6
    %v2071 = vmul.f32 %v2055, %v2069
    %v2073 = vrot.slane %v2071, 6
    %v2075 = vadd.f32 %v1918, %v2073
    %v2077 = vrot.slane %v2012, 2
    %2078 = vrot.lane.b32.xlu0 %v2077, 96
    %v2079 = vpop.permute.xlu0 %2078
    %v2080 = vsel %vm717, %v2079, 0
    %2082 = vmatpush.msra.mxu0 0.0
    %2083 = vmatpush.msra.mxu0 0.0
    %2084 = vmatpush.msra.mxu0 0.0
    %2085 = vmatpush.msra.mxu0 0.0
    %2086 = vmatpush.msra.mxu0 0.0
    %2087 = vmatpush.msra.mxu0 0.0
    %2088 = vmatpush.msra.mxu0 0.0
    %2089 = vmatpush.msra.mxu0 0.0
    %2090 = vmatpush.msra.mxu0 0.0
    %2091 = vmatpush.msra.mxu0 0.0
    %2092 = vmatpush.msra.mxu0 0.0
    %2093 = vmatpush.msra.mxu0 0.0
    %2094 = vmatpush.msra.mxu0 %v1759
    %2095 = vmatpush.msra.mxu0 %v1758
    %2096 = vmatpush.msra.mxu0 %v1757
    %2097 = vmatpush.msra.mxu0 %v1756
    %2098 = vmatmul.f32.gmra.mxu0 %v2080
    %v2099 = vpop.f32.mrf.mxu0
    %v2100 = vadd.f32 %v1768, %v2099
    %2101 = vdwg.mxu0
    %v2103 = vrot.slane %v2055, 2
    %2104 = vrot.lane.b32.xlu0 %v2103, 96
    %v2105 = vpop.permute.xlu0 %2104
    %v2106 = vsel %vm717, %v2105, 0
    %2108 = vmatpush.msra.mxu0 0.0
    %2109 = vmatpush.msra.mxu0 0.0
    %2110 = vmatpush.msra.mxu0 0.0
    %2111 = vmatpush.msra.mxu0 0.0
    %2112 = vmatpush.msra.mxu0 0.0
    %2113 = vmatpush.msra.mxu0 0.0
    %2114 = vmatpush.msra.mxu0 0.0
    %2115 = vmatpush.msra.mxu0 0.0
    %2116 = vmatpush.msra.mxu0 0.0
    %2117 = vmatpush.msra.mxu0 0.0
    %2118 = vmatpush.msra.mxu0 0.0
    %2119 = vmatpush.msra.mxu0 0.0
    %2120 = vmatpush.msra.mxu0 %v1764
    %2121 = vmatpush.msra.mxu0 %v1763
    %2122 = vmatpush.msra.mxu0 %v1762
    %2123 = vmatpush.msra.mxu0 %v1761
    %2124 = vmatmul.f32.gmra.mxu0 %v2106
    %v2125 = vpop.f32.mrf.mxu0
    %v2126 = vadd.f32 %v1796, %v2125
    %2127 = vdwg.mxu0
    %v2129 = vrot.slane %v2100, 4
    %v2131 = vadd.f32 %v1720, %v2129
    %v2132 = vxor.u32 %v2131, 2147483648
    %v2133 = vmul.f32 %v2132, 1.442695
    %v2134 = vpow.pop %v2133
    %v2135 = vadd.f32 %v2134, 1.0
    %v2136 = vrcp.pop %v2135
    %v2137 = vmul.f32 %v2135, %v2136
    %v2138 = vsub.f32 1.0, %v2137
    %v2139 = vmul.f32 %v2136, %v2138
    %v2140 = vadd.f32 %v2136, %v2139
    %vm2141 = vweird.f32 %v2135
    %vm2142 = vweird.f32 %v2136
    %vm2143 = vmor %vm2141, %vm2142
    %v2144 = vsel %vm2143, %v2136, %v2140
    %v2145 = vand.u32 2147483647, %v2135
    %vm2146 = vcmp.eq.f32.partialorder %v2145, 8.507059e+37
    %v2147 = vand.u32 %v2135, 2147483648
    %v2148 = vor.u32 1.1754944e-38, %v2147
    %v2149 = vsel %vm2146, %v2148, %v2144
    %v2150 = vmul.f32 1.0, %v2149
    %2151 = vrot.lane.b32.xlu0 %v2129, 64
    %v2152 = vpop.permute.xlu0 %2151
    %v2154 = vmul.f32 %v2150, %v2152
    %2156 = vrot.lane.b32.xlu0 %v2154, 64
    %v2157 = vpop.permute.xlu0 %2156
    %v2159 = vadd.f32 %v1720, %v2157
    %v2160 = vtanh.pop %v2159
    %v2161 = vsub.f32 1.0, %v2150
    %2163 = vrot.lane.b32.xlu0 %v2160, 96
    %v2164 = vpop.permute.xlu0 %2163
    %v2166 = vmul.f32 %v2161, %v2164
    %v2167 = vrot.slane %v2012, 6
    %v2169 = vmul.f32 %v2150, %v2167
    %v2170 = vadd.f32 %v2166, %v2169
    %v2171 = vadd.f32 %v1754, %v2126
    %v2172 = vxor.u32 %v2171, 2147483648
    %v2173 = vmul.f32 %v2172, 1.442695
    %v2174 = vpow.pop %v2173
    %v2175 = vadd.f32 %v2174, 1.0
    %v2176 = vrcp.pop %v2175
    %v2177 = vmul.f32 %v2175, %v2176
    %v2178 = vsub.f32 1.0, %v2177
    %v2179 = vmul.f32 %v2176, %v2178
    %v2180 = vadd.f32 %v2176, %v2179
    %vm2181 = vweird.f32 %v2175
    %vm2182 = vweird.f32 %v2176
    %vm2183 = vmor %vm2181, %vm2182
    %v2184 = vsel %vm2183, %v2176, %v2180
    %v2185 = vand.u32 2147483647, %v2175
    %vm2186 = vcmp.eq.f32.partialorder %v2185, 8.507059e+37
    %v2187 = vand.u32 %v2175, 2147483648
    %v2188 = vor.u32 1.1754944e-38, %v2187
    %v2189 = vsel %vm2186, %v2188, %v2184
    %v2190 = vmul.f32 1.0, %v2189
    %2192 = vrot.lane.b32.xlu0 %v2126, 64
    %v2193 = vpop.permute.xlu0 %2192
    %v2195 = vmul.f32 %v2190, %v2193
    %2197 = vrot.lane.b32.xlu0 %v2195, 64
    %v2198 = vpop.permute.xlu0 %2197
    %v2200 = vadd.f32 %v1754, %v2198
    %v2201 = vtanh.pop %v2200
    %v2202 = vsub.f32 1.0, %v2190
    %2204 = vrot.lane.b32.xlu0 %v2201, 96
    %v2205 = vpop.permute.xlu0 %2204
    %v2207 = vmul.f32 %v2202, %v2205
    %v2209 = vmul.f32 %v2190, %v2103
    %v2210 = vadd.f32 %v2207, %v2209
    %2211 = vset.pattern.permute.xlu0 2
    %2212 = vperm.xlu0 %2211, %v1766
    %v2213 = vpop.permute.xlu0 %2212
    %v2214 = vrot.slane %v2213, 4
    %v2216 = vmul.f32 %v2170, %v2214
    %v2218 = vrot.slane %v2216, 4
    %v2220 = vadd.f32 %v2065, %v2218
    %2221 = vset.pattern.permute.xlu0 4
    %2222 = vperm.xlu0 %2221, %v1766
    %v2223 = vpop.permute.xlu0 %2222
    %v2225 = vmul.f32 %v2210, %v2223
    %v2227 = vrot.slane %v2225, 4
    %v2229 = vadd.f32 %v2075, %v2227
    %v2231 = vrot.slane %v2170, 4
    %2232 = vrot.lane.b32.xlu0 %v2231, 96
    %v2233 = vpop.permute.xlu0 %2232
    %v2234 = vsel %vm717, %v2233, 0
    %2236 = vmatpush.msra.mxu0 0.0
    %2237 = vmatpush.msra.mxu0 0.0
    %2238 = vmatpush.msra.mxu0 0.0
    %2239 = vmatpush.msra.mxu0 0.0
    %2240 = vmatpush.msra.mxu0 0.0
    %2241 = vmatpush.msra.mxu0 0.0
    %2242 = vmatpush.msra.mxu0 0.0
    %2243 = vmatpush.msra.mxu0 0.0
    %2244 = vmatpush.msra.mxu0 0.0
    %2245 = vmatpush.msra.mxu0 0.0
    %2246 = vmatpush.msra.mxu0 0.0
    %2247 = vmatpush.msra.mxu0 0.0
    %2248 = vmatpush.msra.mxu0 %v1759
    %2249 = vmatpush.msra.mxu0 %v1758
    %2250 = vmatpush.msra.mxu0 %v1757
    %2251 = vmatpush.msra.mxu0 %v1756
    %2252 = vmatmul.f32.gmra.mxu0 %v2234
    %v2253 = vpop.f32.mrf.mxu0
    %v2254 = vadd.f32 %v1768, %v2253
    %2255 = vdwg.mxu0
    %2257 = vrot.lane.b32.xlu0 %v2210, 96
    %v2258 = vpop.permute.xlu0 %2257
    %v2259 = vsel %vm717, %v2258, 0
    %2261 = vmatpush.msra.mxu0 0.0
    %2262 = vmatpush.msra.mxu0 0.0
    %2263 = vmatpush.msra.mxu0 0.0
    %2264 = vmatpush.msra.mxu0 0.0
    %2265 = vmatpush.msra.mxu0 0.0
    %2266 = vmatpush.msra.mxu0 0.0
    %2267 = vmatpush.msra.mxu0 0.0
    %2268 = vmatpush.msra.mxu0 0.0
    %2269 = vmatpush.msra.mxu0 0.0
    %2270 = vmatpush.msra.mxu0 0.0
    %2271 = vmatpush.msra.mxu0 0.0
    %2272 = vmatpush.msra.mxu0 0.0
    %2273 = vmatpush.msra.mxu0 %v1764
    %2274 = vmatpush.msra.mxu0 %v1763
    %2275 = vmatpush.msra.mxu0 %v1762
    %2276 = vmatpush.msra.mxu0 %v1761
    %2277 = vmatmul.f32.gmra.mxu0 %v2259
    %v2278 = vpop.f32.mrf.mxu0
    %v2279 = vadd.f32 %v1796, %v2278
    %2280 = vdwg.mxu0
    %v2282 = vrot.slane %v2254, 2
    %v2284 = vadd.f32 %v1720, %v2282
    %v2285 = vxor.u32 %v2284, 2147483648
    %v2286 = vmul.f32 %v2285, 1.442695
    %v2287 = vpow.pop %v2286
    %v2288 = vadd.f32 %v2287, 1.0
    %v2289 = vrcp.pop %v2288
    %v2290 = vmul.f32 %v2288, %v2289
    %v2291 = vsub.f32 1.0, %v2290
    %v2292 = vmul.f32 %v2289, %v2291
    %v2293 = vadd.f32 %v2289, %v2292
    %vm2294 = vweird.f32 %v2288
    %vm2295 = vweird.f32 %v2289
    %vm2296 = vmor %vm2294, %vm2295
    %v2297 = vsel %vm2296, %v2289, %v2293
    %v2298 = vand.u32 2147483647, %v2288
    %vm2299 = vcmp.eq.f32.partialorder %v2298, 8.507059e+37
    %v2300 = vand.u32 %v2288, 2147483648
    %v2301 = vor.u32 1.1754944e-38, %v2300
    %v2302 = vsel %vm2299, %v2301, %v2297
    %v2303 = vmul.f32 1.0, %v2302
    %2304 = vrot.lane.b32.xlu0 %v2282, 64
    %v2305 = vpop.permute.xlu0 %2304
    %v2307 = vmul.f32 %v2303, %v2305
    %2309 = vrot.lane.b32.xlu0 %v2307, 64
    %v2310 = vpop.permute.xlu0 %2309
    %v2312 = vadd.f32 %v1720, %v2310
    %v2313 = vtanh.pop %v2312
    %v2314 = vsub.f32 1.0, %v2303
    %2316 = vrot.lane.b32.xlu0 %v2313, 96
    %v2317 = vpop.permute.xlu0 %2316
    %v2319 = vmul.f32 %v2314, %v2317
    %v2320 = vrot.slane %v2170, 6
    %v2322 = vmul.f32 %v2303, %v2320
    %v2323 = vadd.f32 %v2319, %v2322
    %v2325 = vrot.slane %v2279, 2
    %v2327 = vadd.f32 %v1751, %v2325
    %v2328 = vxor.u32 %v2327, 2147483648
    %v2329 = vmul.f32 %v2328, 1.442695
    %v2330 = vpow.pop %v2329
    %v2331 = vadd.f32 %v2330, 1.0
    %v2332 = vrcp.pop %v2331
    %v2333 = vmul.f32 %v2331, %v2332
    %v2334 = vsub.f32 1.0, %v2333
    %v2335 = vmul.f32 %v2332, %v2334
    %v2336 = vadd.f32 %v2332, %v2335
    %vm2337 = vweird.f32 %v2331
    %vm2338 = vweird.f32 %v2332
    %vm2339 = vmor %vm2337, %vm2338
    %v2340 = vsel %vm2339, %v2332, %v2336
    %v2341 = vand.u32 2147483647, %v2331
    %vm2342 = vcmp.eq.f32.partialorder %v2341, 8.507059e+37
    %v2343 = vand.u32 %v2331, 2147483648
    %v2344 = vor.u32 1.1754944e-38, %v2343
    %v2345 = vsel %vm2342, %v2344, %v2340
    %v2346 = vmul.f32 1.0, %v2345
    %2347 = vrot.lane.b32.xlu0 %v2325, 64
    %v2348 = vpop.permute.xlu0 %2347
    %v2350 = vmul.f32 %v2346, %v2348
    %2352 = vrot.lane.b32.xlu0 %v2350, 64
    %v2353 = vpop.permute.xlu0 %2352
    %v2355 = vadd.f32 %v1751, %v2353
    %v2356 = vtanh.pop %v2355
    %v2357 = vsub.f32 1.0, %v2346
    %2359 = vrot.lane.b32.xlu0 %v2356, 96
    %v2360 = vpop.permute.xlu0 %2359
    %v2362 = vmul.f32 %v2357, %v2360
    %v2363 = vrot.slane %v2210, 2
    %v2365 = vmul.f32 %v2346, %v2363
    %v2366 = vadd.f32 %v2362, %v2365
    %2367 = vset.pattern.permute.xlu0 3
    %2368 = vperm.xlu0 %2367, %v1766
    %v2369 = vpop.permute.xlu0 %2368
    %v2370 = vrot.slane %v2369, 2
    %v2372 = vmul.f32 %v2323, %v2370
    %v2374 = vrot.slane %v2372, 6
    %v2376 = vadd.f32 %v2220, %v2374
    %v2377 = vmul.f32 %v2366, %v2370
    %v2379 = vrot.slane %v2377, 2
    %v2381 = vadd.f32 %v2229, %v2379
    %v2383 = vrot.slane %v2323, 6
    %2384 = vrot.lane.b32.xlu0 %v2383, 96
    %v2385 = vpop.permute.xlu0 %2384
    %v2386 = vsel %vm717, %v2385, 0
    %2388 = vmatpush.msra.mxu0 0.0
    %2389 = vmatpush.msra.mxu0 0.0
    %2390 = vmatpush.msra.mxu0 0.0
    %2391 = vmatpush.msra.mxu0 0.0
    %2392 = vmatpush.msra.mxu0 0.0
    %2393 = vmatpush.msra.mxu0 0.0
    %2394 = vmatpush.msra.mxu0 0.0
    %2395 = vmatpush.msra.mxu0 0.0
    %2396 = vmatpush.msra.mxu0 0.0
    %2397 = vmatpush.msra.mxu0 0.0
    %2398 = vmatpush.msra.mxu0 0.0
    %2399 = vmatpush.msra.mxu0 0.0
    %2400 = vmatpush.msra.mxu0 %v1759
    %2401 = vmatpush.msra.mxu0 %v1758
    %2402 = vmatpush.msra.mxu0 %v1757
    %2403 = vmatpush.msra.mxu0 %v1756
    %2404 = vmatmul.f32.gmra.mxu0 %v2386
    %v2405 = vpop.f32.mrf.mxu0
    %v2406 = vadd.f32 %v1768, %v2405
    %2407 = vdwg.mxu0
    %v2409 = vrot.slane %v2366, 6
    %2410 = vrot.lane.b32.xlu0 %v2409, 96
    %v2411 = vpop.permute.xlu0 %2410
    %v2412 = vsel %vm717, %v2411, 0
    %2414 = vmatpush.msra.mxu0 0.0
    %2415 = vmatpush.msra.mxu0 0.0
    %2416 = vmatpush.msra.mxu0 0.0
    %2417 = vmatpush.msra.mxu0 0.0
    %2418 = vmatpush.msra.mxu0 0.0
    %2419 = vmatpush.msra.mxu0 0.0
    %2420 = vmatpush.msra.mxu0 0.0
    %2421 = vmatpush.msra.mxu0 0.0
    %2422 = vmatpush.msra.mxu0 0.0
    %2423 = vmatpush.msra.mxu0 0.0
    %2424 = vmatpush.msra.mxu0 0.0
    %2425 = vmatpush.msra.mxu0 0.0
    %2426 = vmatpush.msra.mxu0 %v1764
    %2427 = vmatpush.msra.mxu0 %v1763
    %2428 = vmatpush.msra.mxu0 %v1762
    %2429 = vmatpush.msra.mxu0 %v1761
    %2430 = vmatmul.f32.gmra.mxu0 %v2412
    %v2431 = vpop.f32.mrf.mxu0
    %v2432 = vadd.f32 %v1796, %v2431
    %2433 = vdwg.mxu0
    %v2434 = vadd.f32 %v1723, %v2406
    %v2435 = vxor.u32 %v2434, 2147483648
    %v2436 = vmul.f32 %v2435, 1.442695
    %v2437 = vpow.pop %v2436
    %v2438 = vadd.f32 %v2437, 1.0
    %v2439 = vrcp.pop %v2438
    %v2440 = vmul.f32 %v2438, %v2439
    %v2441 = vsub.f32 1.0, %v2440
    %v2442 = vmul.f32 %v2439, %v2441
    %v2443 = vadd.f32 %v2439, %v2442
    %vm2444 = vweird.f32 %v2438
    %vm2445 = vweird.f32 %v2439
    %vm2446 = vmor %vm2444, %vm2445
    %v2447 = vsel %vm2446, %v2439, %v2443
    %v2448 = vand.u32 2147483647, %v2438
    %vm2449 = vcmp.eq.f32.partialorder %v2448, 8.507059e+37
    %v2450 = vand.u32 %v2438, 2147483648
    %v2451 = vor.u32 1.1754944e-38, %v2450
    %v2452 = vsel %vm2449, %v2451, %v2447
    %v2453 = vmul.f32 1.0, %v2452
    %2455 = vrot.lane.b32.xlu0 %v2406, 64
    %v2456 = vpop.permute.xlu0 %2455
    %v2458 = vmul.f32 %v2453, %v2456
    %2460 = vrot.lane.b32.xlu0 %v2458, 64
    %v2461 = vpop.permute.xlu0 %2460
    %v2463 = vadd.f32 %v1723, %v2461
    %v2464 = vtanh.pop %v2463
    %v2465 = vsub.f32 1.0, %v2453
    %2467 = vrot.lane.b32.xlu0 %v2464, 96
    %v2468 = vpop.permute.xlu0 %2467
    %v2470 = vmul.f32 %v2465, %v2468
    %v2472 = vmul.f32 %v2453, %v2383
    %v2473 = vadd.f32 %v2470, %v2472
    %v2475 = vrot.slane %v2432, 4
    %v2477 = vadd.f32 %v1751, %v2475
    %v2478 = vxor.u32 %v2477, 2147483648
    %v2479 = vmul.f32 %v2478, 1.442695
    %v2480 = vpow.pop %v2479
    %v2481 = vadd.f32 %v2480, 1.0
    %v2482 = vrcp.pop %v2481
    %v2483 = vmul.f32 %v2481, %v2482
    %v2484 = vsub.f32 1.0, %v2483
    %v2485 = vmul.f32 %v2482, %v2484
    %v2486 = vadd.f32 %v2482, %v2485
    %vm2487 = vweird.f32 %v2481
    %vm2488 = vweird.f32 %v2482
    %vm2489 = vmor %vm2487, %vm2488
    %v2490 = vsel %vm2489, %v2482, %v2486
    %v2491 = vand.u32 2147483647, %v2481
    %vm2492 = vcmp.eq.f32.partialorder %v2491, 8.507059e+37
    %v2493 = vand.u32 %v2481, 2147483648
    %v2494 = vor.u32 1.1754944e-38, %v2493
    %v2495 = vsel %vm2492, %v2494, %v2490
    %v2496 = vmul.f32 1.0, %v2495
    %2497 = vrot.lane.b32.xlu0 %v2475, 64
    %v2498 = vpop.permute.xlu0 %2497
    %v2500 = vmul.f32 %v2496, %v2498
    %2502 = vrot.lane.b32.xlu0 %v2500, 64
    %v2503 = vpop.permute.xlu0 %2502
    %v2505 = vadd.f32 %v1751, %v2503
    %v2506 = vtanh.pop %v2505
    %v2507 = vsub.f32 1.0, %v2496
    %2509 = vrot.lane.b32.xlu0 %v2506, 96
    %v2510 = vpop.permute.xlu0 %2509
    %v2512 = vmul.f32 %v2507, %v2510
    %v2513 = vrot.slane %v2366, 2
    %v2515 = vmul.f32 %v2496, %v2513
    %v2516 = vadd.f32 %v2512, %v2515
    %v2517 = vmul.f32 %v2473, %v2223
    %v2518 = vadd.f32 %v2376, %v2517
    %v2519 = vmul.f32 %v2516, %v2214
    %v2520 = vadd.f32 %v2381, %v2519
    %2522 = vrot.lane.b32.xlu0 %v2473, 96
    %v2523 = vpop.permute.xlu0 %2522
    %v2524 = vsel %vm717, %v2523, 0
    %2526 = vmatpush.msra.mxu0 0.0
    %2527 = vmatpush.msra.mxu0 0.0
    %2528 = vmatpush.msra.mxu0 0.0
    %2529 = vmatpush.msra.mxu0 0.0
    %2530 = vmatpush.msra.mxu0 0.0
    %2531 = vmatpush.msra.mxu0 0.0
    %2532 = vmatpush.msra.mxu0 0.0
    %2533 = vmatpush.msra.mxu0 0.0
    %2534 = vmatpush.msra.mxu0 0.0
    %2535 = vmatpush.msra.mxu0 0.0
    %2536 = vmatpush.msra.mxu0 0.0
    %2537 = vmatpush.msra.mxu0 0.0
    %2538 = vmatpush.msra.mxu0 %v1759
    %2539 = vmatpush.msra.mxu0 %v1758
    %2540 = vmatpush.msra.mxu0 %v1757
    %2541 = vmatpush.msra.mxu0 %v1756
    %2542 = vmatmul.f32.gmra.mxu0 %v2524
    %v2543 = vpop.f32.mrf.mxu0
    %v2544 = vadd.f32 %v1768, %v2543
    %2545 = vdwg.mxu0
    %v2547 = vrot.slane %v2516, 4
    %2548 = vrot.lane.b32.xlu0 %v2547, 96
    %v2549 = vpop.permute.xlu0 %2548
    %v2550 = vsel %vm717, %v2549, 0
    %2552 = vmatpush.msra.mxu0 0.0
    %2553 = vmatpush.msra.mxu0 0.0
    %2554 = vmatpush.msra.mxu0 0.0
    %2555 = vmatpush.msra.mxu0 0.0
    %2556 = vmatpush.msra.mxu0 0.0
    %2557 = vmatpush.msra.mxu0 0.0
    %2558 = vmatpush.msra.mxu0 0.0
    %2559 = vmatpush.msra.mxu0 0.0
    %2560 = vmatpush.msra.mxu0 0.0
    %2561 = vmatpush.msra.mxu0 0.0
    %2562 = vmatpush.msra.mxu0 0.0
    %2563 = vmatpush.msra.mxu0 0.0
    %2564 = vmatpush.msra.mxu0 %v1764
    %2565 = vmatpush.msra.mxu0 %v1763
    %2566 = vmatpush.msra.mxu0 %v1762
    %2567 = vmatpush.msra.mxu0 %v1761
    %2568 = vmatmul.f32.gmra.mxu0 %v2550
    %v2569 = vpop.f32.mrf.mxu0
    %v2570 = vadd.f32 %v1796, %v2569
    %2571 = vdwg.mxu0
    %v2573 = vrot.slane %v2544, 6
    %v2575 = vadd.f32 %v1723, %v2573
    %v2576 = vxor.u32 %v2575, 2147483648
    %v2577 = vmul.f32 %v2576, 1.442695
    %v2578 = vpow.pop %v2577
    %v2579 = vadd.f32 %v2578, 1.0
    %v2580 = vrcp.pop %v2579
    %v2581 = vmul.f32 %v2579, %v2580
    %v2582 = vsub.f32 1.0, %v2581
    %v2583 = vmul.f32 %v2580, %v2582
    %v2584 = vadd.f32 %v2580, %v2583
    %vm2585 = vweird.f32 %v2579
    %vm2586 = vweird.f32 %v2580
    %vm2587 = vmor %vm2585, %vm2586
    %v2588 = vsel %vm2587, %v2580, %v2584
    %v2589 = vand.u32 2147483647, %v2579
    %vm2590 = vcmp.eq.f32.partialorder %v2589, 8.507059e+37
    %v2591 = vand.u32 %v2579, 2147483648
    %v2592 = vor.u32 1.1754944e-38, %v2591
    %v2593 = vsel %vm2590, %v2592, %v2588
    %v2594 = vmul.f32 1.0, %v2593
    %2595 = vrot.lane.b32.xlu0 %v2573, 64
    %v2596 = vpop.permute.xlu0 %2595
    %v2598 = vmul.f32 %v2594, %v2596
    %2600 = vrot.lane.b32.xlu0 %v2598, 64
    %v2601 = vpop.permute.xlu0 %2600
    %v2603 = vadd.f32 %v1723, %v2601
    %v2604 = vtanh.pop %v2603
    %v2605 = vsub.f32 1.0, %v2594
    %2607 = vrot.lane.b32.xlu0 %v2604, 96
    %v2608 = vpop.permute.xlu0 %2607
    %v2610 = vmul.f32 %v2605, %v2608
    %v2611 = vrot.slane %v2473, 6
    %v2613 = vmul.f32 %v2594, %v2611
    %v2614 = vadd.f32 %v2610, %v2613
    %v2616 = vrot.slane %v2570, 6
    %v2618 = vadd.f32 %v1751, %v2616
    %v2619 = vxor.u32 %v2618, 2147483648
    %v2620 = vmul.f32 %v2619, 1.442695
    %v2621 = vpow.pop %v2620
    %v2622 = vadd.f32 %v2621, 1.0
    %v2623 = vrcp.pop %v2622
    %v2624 = vmul.f32 %v2622, %v2623
    %v2625 = vsub.f32 1.0, %v2624
    %v2626 = vmul.f32 %v2623, %v2625
    %v2627 = vadd.f32 %v2623, %v2626
    %vm2628 = vweird.f32 %v2622
    %vm2629 = vweird.f32 %v2623
    %vm2630 = vmor %vm2628, %vm2629
    %v2631 = vsel %vm2630, %v2623, %v2627
    %v2632 = vand.u32 2147483647, %v2622
    %vm2633 = vcmp.eq.f32.partialorder %v2632, 8.507059e+37
    %v2634 = vand.u32 %v2622, 2147483648
    %v2635 = vor.u32 1.1754944e-38, %v2634
    %v2636 = vsel %vm2633, %v2635, %v2631
    %v2637 = vmul.f32 1.0, %v2636
    %2638 = vrot.lane.b32.xlu0 %v2616, 64
    %v2639 = vpop.permute.xlu0 %2638
    %v2641 = vmul.f32 %v2637, %v2639
    %2643 = vrot.lane.b32.xlu0 %v2641, 64
    %v2644 = vpop.permute.xlu0 %2643
    %v2646 = vadd.f32 %v1751, %v2644
    %v2647 = vtanh.pop %v2646
    %v2648 = vsub.f32 1.0, %v2637
    %2650 = vrot.lane.b32.xlu0 %v2647, 96
    %v2651 = vpop.permute.xlu0 %2650
    %v2653 = vmul.f32 %v2648, %v2651
    %v2654 = vrot.slane %v2516, 2
    %v2656 = vmul.f32 %v2637, %v2654
    %v2657 = vadd.f32 %v2653, %v2656
    %v2658 = vmul.f32 %v2614, %v2069
    %v2660 = vrot.slane %v2658, 2
    %v2662 = vadd.f32 %v2518, %v2660
    %v2663 = vmul.f32 %v2657, %v2059
    %v2665 = vrot.slane %v2663, 6
    %v2667 = vadd.f32 %v2520, %v2665
    %v2669 = vrot.slane %v2614, 2
    %2670 = vrot.lane.b32.xlu0 %v2669, 96
    %v2671 = vpop.permute.xlu0 %2670
    %v2672 = vsel %vm717, %v2671, 0
    %2674 = vmatpush.msra.mxu0 0.0
    %2675 = vmatpush.msra.mxu0 0.0
    %2676 = vmatpush.msra.mxu0 0.0
    %2677 = vmatpush.msra.mxu0 0.0
    %2678 = vmatpush.msra.mxu0 0.0
    %2679 = vmatpush.msra.mxu0 0.0
    %2680 = vmatpush.msra.mxu0 0.0
    %2681 = vmatpush.msra.mxu0 0.0
    %2682 = vmatpush.msra.mxu0 0.0
    %2683 = vmatpush.msra.mxu0 0.0
    %2684 = vmatpush.msra.mxu0 0.0
    %2685 = vmatpush.msra.mxu0 0.0
    %2686 = vmatpush.msra.mxu0 %v1759
    %2687 = vmatpush.msra.mxu0 %v1758
    %2688 = vmatpush.msra.mxu0 %v1757
    %2689 = vmatpush.msra.mxu0 %v1756
    %2690 = vmatmul.f32.gmra.mxu0 %v2672
    %v2691 = vpop.f32.mrf.mxu0
    %v2692 = vadd.f32 %v1768, %v2691
    %2693 = vdwg.mxu0
    %v2695 = vrot.slane %v2657, 2
    %2696 = vrot.lane.b32.xlu0 %v2695, 96
    %v2697 = vpop.permute.xlu0 %2696
    %v2698 = vsel %vm717, %v2697, 0
    %2700 = vmatpush.msra.mxu0 0.0
    %2701 = vmatpush.msra.mxu0 0.0
    %2702 = vmatpush.msra.mxu0 0.0
    %2703 = vmatpush.msra.mxu0 0.0
    %2704 = vmatpush.msra.mxu0 0.0
    %2705 = vmatpush.msra.mxu0 0.0
    %2706 = vmatpush.msra.mxu0 0.0
    %2707 = vmatpush.msra.mxu0 0.0
    %2708 = vmatpush.msra.mxu0 0.0
    %2709 = vmatpush.msra.mxu0 0.0
    %2710 = vmatpush.msra.mxu0 0.0
    %2711 = vmatpush.msra.mxu0 0.0
    %2712 = vmatpush.msra.mxu0 %v1764
    %2713 = vmatpush.msra.mxu0 %v1763
    %2714 = vmatpush.msra.mxu0 %v1762
    %2715 = vmatpush.msra.mxu0 %v1761
    %2716 = vmatmul.f32.gmra.mxu0 %v2698
    %v2717 = vpop.f32.mrf.mxu0
    %v2718 = vadd.f32 %v1796, %v2717
    %2719 = vdwg.mxu0
    %v2721 = vrot.slane %v2692, 4
    %v2723 = vadd.f32 %v1723, %v2721
    %v2724 = vxor.u32 %v2723, 2147483648
    %v2725 = vmul.f32 %v2724, 1.442695
    %v2726 = vpow.pop %v2725
    %v2727 = vadd.f32 %v2726, 1.0
    %v2728 = vrcp.pop %v2727
    %v2729 = vmul.f32 %v2727, %v2728
    %v2730 = vsub.f32 1.0, %v2729
    %v2731 = vmul.f32 %v2728, %v2730
    %v2732 = vadd.f32 %v2728, %v2731
    %vm2733 = vweird.f32 %v2727
    %vm2734 = vweird.f32 %v2728
    %vm2735 = vmor %vm2733, %vm2734
    %v2736 = vsel %vm2735, %v2728, %v2732
    %v2737 = vand.u32 2147483647, %v2727
    %vm2738 = vcmp.eq.f32.partialorder %v2737, 8.507059e+37
    %v2739 = vand.u32 %v2727, 2147483648
    %v2740 = vor.u32 1.1754944e-38, %v2739
    %v2741 = vsel %vm2738, %v2740, %v2736
    %v2742 = vmul.f32 1.0, %v2741
    %2743 = vrot.lane.b32.xlu0 %v2721, 64
    %v2744 = vpop.permute.xlu0 %2743
    %v2746 = vmul.f32 %v2742, %v2744
    %2748 = vrot.lane.b32.xlu0 %v2746, 64
    %v2749 = vpop.permute.xlu0 %2748
    %v2751 = vadd.f32 %v1723, %v2749
    %v2752 = vtanh.pop %v2751
    %v2753 = vsub.f32 1.0, %v2742
    %2755 = vrot.lane.b32.xlu0 %v2752, 96
    %v2756 = vpop.permute.xlu0 %2755
    %v2758 = vmul.f32 %v2753, %v2756
    %v2759 = vrot.slane %v2614, 6
    %v2761 = vmul.f32 %v2742, %v2759
    %v2762 = vadd.f32 %v2758, %v2761
    %v2763 = vadd.f32 %v1751, %v2718
    %v2764 = vxor.u32 %v2763, 2147483648
    %v2765 = vmul.f32 %v2764, 1.442695
    %v2766 = vpow.pop %v2765
    %v2767 = vadd.f32 %v2766, 1.0
    %v2768 = vrcp.pop %v2767
    %v2769 = vmul.f32 %v2767, %v2768
    %v2770 = vsub.f32 1.0, %v2769
    %v2771 = vmul.f32 %v2768, %v2770
    %v2772 = vadd.f32 %v2768, %v2771
    %vm2773 = vweird.f32 %v2767
    %vm2774 = vweird.f32 %v2768
    %vm2775 = vmor %vm2773, %vm2774
    %v2776 = vsel %vm2775, %v2768, %v2772
    %v2777 = vand.u32 2147483647, %v2767
    %vm2778 = vcmp.eq.f32.partialorder %v2777, 8.507059e+37
    %v2779 = vand.u32 %v2767, 2147483648
    %v2780 = vor.u32 1.1754944e-38, %v2779
    %v2781 = vsel %vm2778, %v2780, %v2776
    %v2782 = vmul.f32 1.0, %v2781
    %2784 = vrot.lane.b32.xlu0 %v2718, 64
    %v2785 = vpop.permute.xlu0 %2784
    %v2787 = vmul.f32 %v2782, %v2785
    %2789 = vrot.lane.b32.xlu0 %v2787, 64
    %v2790 = vpop.permute.xlu0 %2789
    %v2792 = vadd.f32 %v1751, %v2790
    %v2793 = vtanh.pop %v2792
    %v2794 = vsub.f32 1.0, %v2782
    %2796 = vrot.lane.b32.xlu0 %v2793, 96
    %v2797 = vpop.permute.xlu0 %2796
    %v2799 = vmul.f32 %v2794, %v2797
    %v2801 = vmul.f32 %v2782, %v2695
    %v2802 = vadd.f32 %v2799, %v2801
    %v2803 = vmul.f32 %v2762, %v1915
    %v2805 = vrot.slane %v2803, 4
    %v2807 = vadd.f32 %v2662, %v2805
    %v2808 = vmul.f32 %v2802, %v1908
    %v2810 = vrot.slane %v2808, 4
    %v2812 = vadd.f32 %v2667, %v2810
    %v2813 = vld [vmem:[%s11] sm:$0x3]
    %vm2814 = vcmask 91136
    %v2815 = vsel %vm2814, %v2813, 0.0
    %2816 = vadd.xlane.f32.xlu0 %v2815
    %v2817 = vpop.xlane.xlu0 %2816
    %v2818 = vrcp.pop %v2817
    %v2819 = vmul.f32 %v2817, %v2818
    %v2820 = vsub.f32 1.0, %v2819
    %v2821 = vmul.f32 %v2818, %v2820
    %v2822 = vadd.f32 %v2818, %v2821
    %vm2823 = vweird.f32 %v2817
    %vm2824 = vweird.f32 %v2818
    %vm2825 = vmor %vm2823, %vm2824
    %v2826 = vsel %vm2825, %v2818, %v2822
    %v2827 = vand.u32 2147483647, %v2817
    %vm2828 = vcmp.eq.f32.partialorder %v2827, 8.507059e+37
    %v2829 = vand.u32 %v2817, 2147483648
    %v2830 = vor.u32 1.1754944e-38, %v2829
    %v2831 = vsel %vm2828, %v2830, %v2826
    %v2832 = vmul.f32 %v2807, %v2831
    %v2834 = vrot.slane %v2817, 4
    %v2836 = vrcp.pop %v2834
    %v2837 = vmul.f32 %v2834, %v2836
    %v2838 = vsub.f32 1.0, %v2837
    %v2839 = vmul.f32 %v2836, %v2838
    %v2840 = vadd.f32 %v2836, %v2839
    %vm2841 = vweird.f32 %v2834
    %vm2842 = vweird.f32 %v2836
    %vm2843 = vmor %vm2841, %vm2842
    %v2844 = vsel %vm2843, %v2836, %v2840
    %v2845 = vand.u32 2147483647, %v2834
    %vm2846 = vcmp.eq.f32.partialorder %v2845, 8.507059e+37
    %v2847 = vand.u32 %v2834, 2147483648
    %v2848 = vor.u32 1.1754944e-38, %v2847
    %v2849 = vsel %vm2846, %v2848, %v2844
    %v2850 = vmul.f32 %v2812, %v2849
    %v2851 = vld [vmem:[%s53] sm:$0xff]
    %v2852 = vld [vmem:[%s53 + $0x8] sm:$0xff]
    %v2853 = vld [vmem:[%s53 + $0x10] sm:$0xff]
    %v2854 = vld [vmem:[%s53 + $0x18] sm:$0xff]
    %v2855 = vld [vmem:[%s53 + $0x20] sm:$0xff]
    %v2856 = vld [vmem:[%s53 + $0x28] sm:$0xff]
    %v2857 = vld [vmem:[%s53 + $0x30] sm:$0xff]
    %v2858 = vld [vmem:[%s53 + $0x38] sm:$0xff]
    %v2860 = vrot.slane %v2850, 4
    %2861 = vrot.lane.b32.xlu0 %v2860, 96
    %v2862 = vpop.permute.xlu0 %2861
    %v2863 = vsel %vm717, %v2862, 0
    %2865 = vmatpush.msra.mxu0 0.0
    %2866 = vmatpush.msra.mxu0 0.0
    %2867 = vmatpush.msra.mxu0 0.0
    %2868 = vmatpush.msra.mxu0 0.0
    %2869 = vmatpush.msra.mxu0 0.0
    %2870 = vmatpush.msra.mxu0 0.0
    %2871 = vmatpush.msra.mxu0 0.0
    %2872 = vmatpush.msra.mxu0 0.0
    %2873 = vmatpush.msra.mxu0 0.0
    %2874 = vmatpush.msra.mxu0 0.0
    %2875 = vmatpush.msra.mxu0 0.0
    %2876 = vmatpush.msra.mxu0 0.0
    %2877 = vmatpush.msra.mxu0 %v2858
    %2878 = vmatpush.msra.mxu0 %v2857
    %2879 = vmatpush.msra.mxu0 %v2856
    %2880 = vmatpush.msra.mxu0 %v2855
    %2881 = vmatmul.f32.gmra.mxu0 %v2863
    %v2882 = vpop.f32.mrf.mxu0
    %v2883 = vadd.f32 0.0, %v2882
    %2884 = vdwg.mxu0
    %2886 = vrot.lane.b32.xlu0 %v2832, 96
    %v2887 = vpop.permute.xlu0 %2886
    %v2888 = vsel %vm717, %v2887, 0
    %2890 = vmatpush.msra.mxu0 0.0
    %2891 = vmatpush.msra.mxu0 0.0
    %2892 = vmatpush.msra.mxu0 0.0
    %2893 = vmatpush.msra.mxu0 0.0
    %2894 = vmatpush.msra.mxu0 0.0
    %2895 = vmatpush.msra.mxu0 0.0
    %2896 = vmatpush.msra.mxu0 0.0
    %2897 = vmatpush.msra.mxu0 0.0
    %2898 = vmatpush.msra.mxu0 0.0
    %2899 = vmatpush.msra.mxu0 0.0
    %2900 = vmatpush.msra.mxu0 0.0
    %2901 = vmatpush.msra.mxu0 0.0
    %2902 = vmatpush.msra.mxu0 %v2854
    %2903 = vmatpush.msra.mxu0 %v2853
    %2904 = vmatpush.msra.mxu0 %v2852
    %2905 = vmatpush.msra.mxu0 %v2851
    %2906 = vmatmul.f32.gmra.mxu0 %v2888
    %v2907 = vpop.f32.mrf.mxu0
    %v2908 = vadd.f32 %v2883, %v2907
    %2909 = vdwg.mxu0
    %v2910 = vld [vmem:[#allocation22] sm:$0x1]
    %v2912 = vperm.slane %v2910, 0
    %v2914 = vadd.f32 %v2908, %v2912
    %v2915 = vmax.f32 %v2914, 0.0
    %v2916 = vld [vmem:[%s57] sm:$0xff]
    %v2917 = vld [vmem:[%s57 + $0x8] sm:$0xff]
    %v2918 = vld [vmem:[%s57 + $0x10] sm:$0xff]
    %v2919 = vld [vmem:[%s57 + $0x18] sm:$0xff]
    %v2920 = vld [vmem:[#allocation23] sm:$0x1]
    %v2922 = vperm.slane %v2920, 0
    %v2925 = vsel %vm717, %v2915, 0
    %2927 = vmatpush.msra.mxu0 0.0
    %2928 = vmatpush.msra.mxu0 0.0
    %2929 = vmatpush.msra.mxu0 0.0
    %2930 = vmatpush.msra.mxu0 0.0
    %2931 = vmatpush.msra.mxu0 0.0
    %2932 = vmatpush.msra.mxu0 0.0
    %2933 = vmatpush.msra.mxu0 0.0
    %2934 = vmatpush.msra.mxu0 0.0
    %2935 = vmatpush.msra.mxu0 0.0
    %2936 = vmatpush.msra.mxu0 0.0
    %2937 = vmatpush.msra.mxu0 0.0
    %2938 = vmatpush.msra.mxu0 0.0
    %2939 = vmatpush.msra.mxu0 %v2919
    %2940 = vmatpush.msra.mxu0 %v2918
    %2941 = vmatpush.msra.mxu0 %v2917
    %2942 = vmatpush.msra.mxu0 %v2916
    %2943 = vmatmul.f32.gmra.mxu0 %v2925
    %v2944 = vpop.f32.mrf.mxu0
    %v2945 = vadd.f32 %v2922, %v2944
    %2946 = vdwg.mxu0
    %vm2947 = vcmask 25600
    %2948 = vst.msk [vmem:[#allocation25] sm:$0x3] %vm2947, %v2945
    // Predicated region
    $region178: #{cmpnn_forward.1} parent=1 // pred_check
      _
    $region179: #{cmpnn_forward.1} parent=1 // pred_check_branch
      %2950 = sbr.rel (0) target = $region181
    $region180: #{cmpnn_forward.1} parent=1 // pred_region
      %2952 = vsyncadd [#allocation4], 0
      %s2954 = sshll.u32 [#allocation25], 4
      %s2955 = int_to_ptr.vmem [resolvable:$true] %s2954
      %s2956 = sshll.u32 %s61, 4
      %s2957 = int_to_ptr.hbm [resolvable:$true] %s2956
      %2959 = dma.vmem_to_hbm [thread:$0]  %s2955, 32, %s2957, [#allocation4]
    $region181: #{cmpnn_forward.1} parent=1 // pred_fallthru
      _
    // Predicated region
    $region182: #{cmpnn_forward.1} parent=1 // pred_check
      _
    $region183: #{cmpnn_forward.1} parent=1 // pred_check_branch
      %2961 = sbr.rel (0) target = $region185
    $region184: #{cmpnn_forward.1} parent=1 // pred_region
      %2963 = dma.done [#allocation4], 32
    $region185: #{cmpnn_forward.1} parent=1 // pred_fallthru
      _
    %2964 = vsyncpa [#allocation3], 1
    %2965 = vsyncpa [#allocation6], 1
    %2966 = vsyncpa [#allocation9], 1
    %2967 = vsyncpa [#allocation12], 1
    %2968 = vsyncpa [#allocation15], 1
    %2969 = vsyncpa [#allocation18], 1
    %2970 = vsyncpa [#allocation21], 1
    %2971 = vsyncpa [#allocation24], 1
    %2972 = vsyncpa [#allocation4], 1

</llo_original>
